<compile_context>
chip_gen: v7x
topology: tpu7x:2x2x1
jax: 0.10.0
libtpu: 0.0.40
codegen_flags: <defaults>
</compile_context>

<pallas_src>
import jax
import jax.numpy as jnp
from jax.experimental import pallas as pl
from jax.experimental.pallas import tpu as pltpu


D = 4                 # number of hidden layers
W = 256               # hidden width
IN_DIM = 3 + 3 + 3    # pos (identity embed) + view dirs + nablas
IN_PAD = 128          # lane-dense, zero-padded input width (one MXU K-tile)
OUT_DIM = 3           # rgb
OUT_PAD = 128         # lane-dense, zero-padded output width


def _radiance_mlp_kernel(x_ref,
                         w0_ref, b0_ref,
                         w1_ref, b1_ref,
                         w2_ref, b2_ref,
                         w3_ref, b3_ref,
                         w4_ref, b4_ref,
                         o_ref):
    """Fused MLP: relu(x @ W0 + b0) -> ... -> sigmoid(h @ W4 + b4), all on the MXU."""
    h = x_ref[...]                                           # (TM, IN_PAD) bf16
    for w_ref, b_ref in ((w0_ref, b0_ref), (w1_ref, b1_ref),
                         (w2_ref, b2_ref), (w3_ref, b3_ref)):
        acc = jnp.dot(h, w_ref[...], preferred_element_type=jnp.float32)
        # relu followed by an immediate bf16 cast (exact reordering): keeps the
        # (TM, 256) activation tensor in bf16 vregs between layers.
        h = jnp.maximum(acc + b_ref[...], 0.0).astype(jnp.bfloat16)

    out = jnp.dot(h, w4_ref[...], preferred_element_type=jnp.float32) + b4_ref[...]
    o_ref[...] = jax.nn.sigmoid(out).astype(o_ref.dtype)


def _round_up(a, b):
    return ((a + b - 1) // b) * b


def radiance_net_forward(x, v, n, params, *, tm=1024):
    """JAX wrapper reproducing RadianceNet.forward semantics.

    x, v, n: [..., 3] float32 (identity embedders => passed through unchanged).
    Returns dict(radiances=[..., 3]) float32.
    """
    lead_shape = x.shape[:-1]
    xf = x.reshape(-1, 3).astype(jnp.float32)
    vf = v.reshape(-1, 3).astype(jnp.float32)
    nf = n.reshape(-1, 3).astype(jnp.float32)

    # identity embedders + concat along the feature axis (glue, stays in JAX)
    radiance_input = jnp.concatenate([xf, vf, nf], axis=-1)   # (N, 9) f32
    N = radiance_input.shape[0]

    # Row tile: cap at the (rounded-up) problem size, and keep at least 2 grid
    # tiles when possible so ("parallel",) can shard across both v7x TensorCores.
    tm = max(128, min(tm, _round_up(N, 128)))
    if N > 256 and -(-N // tm) < 2:
        tm = _round_up(-(-N // 2), 128)
    num_tiles = max(1, -(-N // tm))
    n_pad = num_tiles * tm

    # Zero-pad rows (-> n_pad) and features (-> IN_PAD), cast once to bf16:
    # lane-dense unmasked input loads + one clean K-tile MXU pass for layer 0.
    x_in = jnp.pad(radiance_input, ((0, n_pad - N), (0, IN_PAD - IN_DIM)))
    x_in = x_in.astype(jnp.bfloat16)

    w0, b0, w1, b1, w2, b2, w3, b3, w4, b4 = params

    # All matmul weights in bf16; layer-0 and output weights zero-padded to the
    # lane-dense padded widths (zeros contribute exactly nothing).
    w0p = jnp.zeros((IN_PAD, W), jnp.bfloat16).at[:IN_DIM, :].set(
        w0.astype(jnp.bfloat16))
    w1b = w1.astype(jnp.bfloat16)
    w2b = w2.astype(jnp.bfloat16)
    w3b = w3.astype(jnp.bfloat16)
    w4p = jnp.zeros((W, OUT_PAD), jnp.bfloat16).at[:, :OUT_DIM].set(
        w4.astype(jnp.bfloat16))

    b0f = b0.astype(jnp.float32)
    b1f = b1.astype(jnp.float32)
    b2f = b2.astype(jnp.float32)
    b3f = b3.astype(jnp.float32)
    b4p = jnp.zeros((1, OUT_PAD), jnp.float32).at[:, :OUT_DIM].set(
        b4.astype(jnp.float32))

    weights = (w0p, b0f, w1b, b1f, w2b, b2f, w3b, b3f, w4p, b4p)
    weight_bytes = sum(int(a.size) * a.dtype.itemsize for a in weights)

    row_in = pl.BlockSpec((tm, IN_PAD), lambda i: (i, 0))
    row_out = pl.BlockSpec((tm, OUT_PAD), lambda i: (i, 0))
    # Grid-invariant operands: whole array VMEM-resident, no pipelining.
    vmem_resident = pl.BlockSpec(memory_space=pltpu.MemorySpace.VMEM)

    flops = 2 * n_pad * (IN_PAD * W + (D - 1) * W * W + W * OUT_PAD)
    cost = pl.CostEstimate(
        flops=flops,
        transcendentals=n_pad * OUT_PAD,                      # sigmoid exps
        bytes_accessed=int(x_in.size) * 2 + n_pad * OUT_PAD * 2 + weight_bytes)

    out = pl.pallas_call(
        _radiance_mlp_kernel,
        out_shape=jax.ShapeDtypeStruct((n_pad, OUT_PAD), jnp.bfloat16),
        grid_spec=pltpu.PrefetchScalarGridSpec(
            num_scalar_prefetch=0,
            grid=(num_tiles,),
            in_specs=[row_in] + [vmem_resident] * len(weights),
            out_specs=row_out,
        ),
        compiler_params=pltpu.CompilerParams(
            dimension_semantics=("parallel",)),
        cost_estimate=cost,
    )(x_in, *weights)

    radiances = out[:N, :OUT_DIM].astype(jnp.float32).reshape(*lead_shape, OUT_DIM)
    return dict(radiances=radiances)


def init_params(key):
    """Deterministic synthetic f32 parameters matching the module's layer shapes."""
    dims = [IN_DIM] + [W] * D + [OUT_DIM]   # 9 -> 256 -> 256 -> 256 -> 256 -> 3
    params = []
    for li in range(len(dims) - 1):
        key, kw = jax.random.split(key)
        fan_in = dims[li]
        w = jax.random.normal(kw, (dims[li], dims[li + 1]), jnp.float32)
        w = w * (1.0 / jnp.sqrt(jnp.float32(fan_in)))
        b = jnp.zeros((1, dims[li + 1]), jnp.float32)
        params += [w, b]
    return params


def reference_forward_f32(x, v, n, params):
    """Pure-JAX f32 reference of the same MLP (module semantics)."""
    h = jnp.concatenate([x.reshape(-1, 3), v.reshape(-1, 3), n.reshape(-1, 3)], -1)
    w0, b0, w1, b1, w2, b2, w3, b3, w4, b4 = params
    for w, b in [(w0, b0), (w1, b1), (w2, b2), (w3, b3)]:
        h = jnp.maximum(h @ w + b, 0.0)
    return jax.nn.sigmoid(h @ w4 + b4)


def reference_forward_matched(x, v, n, params):
    """Reference matching the kernel's precision choices (bf16 MXU, f32 accum)."""
    h = jnp.concatenate([x.reshape(-1, 3), v.reshape(-1, 3), n.reshape(-1, 3)], -1)
    w0, b0, w1, b1, w2, b2, w3, b3, w4, b4 = params
    hb = h.astype(jnp.bfloat16)
    for w, b in [(w0, b0), (w1, b1), (w2, b2), (w3, b3)]:
        acc = jnp.dot(hb, w.astype(jnp.bfloat16),
                      preferred_element_type=jnp.float32) + b
        hb = jnp.maximum(acc, 0.0).astype(jnp.bfloat16)
    out = jnp.dot(hb, w4.astype(jnp.bfloat16),
                  preferred_element_type=jnp.float32) + b4
    return jax.nn.sigmoid(out)


if __name__ == "__main__":
    key = jax.random.PRNGKey(0)
    kp, kx, kv, kn = jax.random.split(key, 4)

    params = init_params(kp)

    # small shapes: 4 rays x 250 samples, each with pos / view-dir / nabla of dim 3
    # (N = 1000 exercises both the row-padding path and the >=2-tile grid guard)
    B, S = 4, 250
    x = jax.random.normal(kx, (B, S, 3), jnp.float32)
    v = jax.random.normal(kv, (B, S, 3), jnp.float32)
    nb = jax.random.normal(kn, (B, S, 3), jnp.float32)

    out = radiance_net_forward(x, v, nb, params)
    radiances = jax.block_until_ready(out["radiances"])
    assert radiances.shape == (B, S, 3)

    flat = radiances.reshape(-1, 3)
    # tight check against a precision-matched reference (bf16 matmuls, f32 accum;
    # extra slack only for the final bf16 output cast)
    ref_m = reference_forward_matched(x, v, nb, params)
    err_m = float(jnp.max(jnp.abs(flat - ref_m)))
    assert err_m < 5e-3, err_m
    # loose check against the full-f32 module semantics
    ref_f = reference_forward_f32(x, v, nb, params)
    err_f = float(jnp.max(jnp.abs(flat - ref_f)))
    assert err_f < 5e-2, err_f

    print("KERNEL_OK")
</pallas_src>

<mosaic_0001>
module attributes {stable_mosaic.version = 11 : i64} {
  func.func @_radiance_mlp_kernel(%arg0: i32, %arg1: memref<512x128xbf16, #tpu.memory_space<vmem>>, %arg2: memref<128x256xbf16, #tpu.memory_space<vmem>>, %arg3: memref<1x256xf32, #tpu.memory_space<vmem>>, %arg4: memref<256x256xbf16, #tpu.memory_space<vmem>>, %arg5: memref<1x256xf32, #tpu.memory_space<vmem>>, %arg6: memref<256x256xbf16, #tpu.memory_space<vmem>>, %arg7: memref<1x256xf32, #tpu.memory_space<vmem>>, %arg8: memref<256x256xbf16, #tpu.memory_space<vmem>>, %arg9: memref<1x256xf32, #tpu.memory_space<vmem>>, %arg10: memref<256x128xbf16, #tpu.memory_space<vmem>>, %arg11: memref<1x128xf32, #tpu.memory_space<vmem>>, %arg12: memref<512x128xbf16, #tpu.memory_space<vmem>>) attributes {dimension_semantics = [#tpu.dimension_semantics<parallel>], iteration_bounds = array<i64: 2>, scalar_prefetch = 0 : i64, scratch_operands = 0 : i64, tpu.core_type = #tpu.core_type<tc>, window_params = [{transform_indices = @transform_0, window_bounds = array<i64: 512, 128>}, {pipeline_mode = #tpu.pipeline_mode<synchronous>, transform_indices = @transform_1, window_bounds = array<i64: 128, 256>}, {pipeline_mode = #tpu.pipeline_mode<synchronous>, transform_indices = @transform_2, window_bounds = array<i64: 1, 256>}, {pipeline_mode = #tpu.pipeline_mode<synchronous>, transform_indices = @transform_3, window_bounds = array<i64: 256, 256>}, {pipeline_mode = #tpu.pipeline_mode<synchronous>, transform_indices = @transform_4, window_bounds = array<i64: 1, 256>}, {pipeline_mode = #tpu.pipeline_mode<synchronous>, transform_indices = @transform_5, window_bounds = array<i64: 256, 256>}, {pipeline_mode = #tpu.pipeline_mode<synchronous>, transform_indices = @transform_6, window_bounds = array<i64: 1, 256>}, {pipeline_mode = #tpu.pipeline_mode<synchronous>, transform_indices = @transform_7, window_bounds = array<i64: 256, 256>}, {pipeline_mode = #tpu.pipeline_mode<synchronous>, transform_indices = @transform_8, window_bounds = array<i64: 1, 256>}, {pipeline_mode = #tpu.pipeline_mode<synchronous>, transform_indices = @transform_9, window_bounds = array<i64: 256, 128>}, {pipeline_mode = #tpu.pipeline_mode<synchronous>, transform_indices = @transform_10, window_bounds = array<i64: 1, 128>}, {transform_indices = @transform_11, window_bounds = array<i64: 512, 128>}]} {
    %c0 = arith.constant 0 : index
    %c0_0 = arith.constant 0 : index
    %0 = vector.load %arg1[%c0, %c0_0] : memref<512x128xbf16, #tpu.memory_space<vmem>>, vector<512x128xbf16>
    %c0_1 = arith.constant 0 : index
    %c0_2 = arith.constant 0 : index
    %1 = vector.load %arg2[%c0_1, %c0_2] : memref<128x256xbf16, #tpu.memory_space<vmem>>, vector<128x256xbf16>
    %cst = arith.constant dense<0.000000e+00> : vector<512x256xf32>
    %2 = tpu.matmul %0, %1, %cst {dimension_numbers = #tpu.dot_dimension_numbers<[1], [0], [0], [1], [0, 0, 1, 1], [], []>} : vector<512x128xbf16>, vector<128x256xbf16>, vector<512x256xf32> -> vector<512x256xf32>
    %c0_3 = arith.constant 0 : index
    %c0_4 = arith.constant 0 : index
    %3 = vector.load %arg3[%c0_3, %c0_4] : memref<1x256xf32, #tpu.memory_space<vmem>>, vector<1x256xf32>
    %4 = vector.broadcast %3 : vector<1x256xf32> to vector<512x256xf32>
    %5 = arith.addf %2, %4 : vector<512x256xf32>
    %cst_5 = arith.constant 0.000000e+00 : f32
    %6 = vector.broadcast %cst_5 : f32 to vector<512x256xf32>
    %7 = arith.maximumf %5, %6 : vector<512x256xf32>
    %8 = arith.truncf %7 : vector<512x256xf32> to vector<512x256xbf16>
    %c0_6 = arith.constant 0 : index
    %c0_7 = arith.constant 0 : index
    %9 = vector.load %arg4[%c0_6, %c0_7] : memref<256x256xbf16, #tpu.memory_space<vmem>>, vector<256x256xbf16>
    %cst_8 = arith.constant dense<0.000000e+00> : vector<512x256xf32>
    %10 = tpu.matmul %8, %9, %cst_8 {dimension_numbers = #tpu.dot_dimension_numbers<[1], [0], [0], [1], [0, 0, 1, 1], [], []>} : vector<512x256xbf16>, vector<256x256xbf16>, vector<512x256xf32> -> vector<512x256xf32>
    %c0_9 = arith.constant 0 : index
    %c0_10 = arith.constant 0 : index
    %11 = vector.load %arg5[%c0_9, %c0_10] : memref<1x256xf32, #tpu.memory_space<vmem>>, vector<1x256xf32>
    %12 = vector.broadcast %11 : vector<1x256xf32> to vector<512x256xf32>
    %13 = arith.addf %10, %12 : vector<512x256xf32>
    %cst_11 = arith.constant 0.000000e+00 : f32
    %14 = vector.broadcast %cst_11 : f32 to vector<512x256xf32>
    %15 = arith.maximumf %13, %14 : vector<512x256xf32>
    %16 = arith.truncf %15 : vector<512x256xf32> to vector<512x256xbf16>
    %c0_12 = arith.constant 0 : index
    %c0_13 = arith.constant 0 : index
    %17 = vector.load %arg6[%c0_12, %c0_13] : memref<256x256xbf16, #tpu.memory_space<vmem>>, vector<256x256xbf16>
    %cst_14 = arith.constant dense<0.000000e+00> : vector<512x256xf32>
    %18 = tpu.matmul %16, %17, %cst_14 {dimension_numbers = #tpu.dot_dimension_numbers<[1], [0], [0], [1], [0, 0, 1, 1], [], []>} : vector<512x256xbf16>, vector<256x256xbf16>, vector<512x256xf32> -> vector<512x256xf32>
    %c0_15 = arith.constant 0 : index
    %c0_16 = arith.constant 0 : index
    %19 = vector.load %arg7[%c0_15, %c0_16] : memref<1x256xf32, #tpu.memory_space<vmem>>, vector<1x256xf32>
    %20 = vector.broadcast %19 : vector<1x256xf32> to vector<512x256xf32>
    %21 = arith.addf %18, %20 : vector<512x256xf32>
    %cst_17 = arith.constant 0.000000e+00 : f32
    %22 = vector.broadcast %cst_17 : f32 to vector<512x256xf32>
    %23 = arith.maximumf %21, %22 : vector<512x256xf32>
    %24 = arith.truncf %23 : vector<512x256xf32> to vector<512x256xbf16>
    %c0_18 = arith.constant 0 : index
    %c0_19 = arith.constant 0 : index
    %25 = vector.load %arg8[%c0_18, %c0_19] : memref<256x256xbf16, #tpu.memory_space<vmem>>, vector<256x256xbf16>
    %cst_20 = arith.constant dense<0.000000e+00> : vector<512x256xf32>
    %26 = tpu.matmul %24, %25, %cst_20 {dimension_numbers = #tpu.dot_dimension_numbers<[1], [0], [0], [1], [0, 0, 1, 1], [], []>} : vector<512x256xbf16>, vector<256x256xbf16>, vector<512x256xf32> -> vector<512x256xf32>
    %c0_21 = arith.constant 0 : index
    %c0_22 = arith.constant 0 : index
    %27 = vector.load %arg9[%c0_21, %c0_22] : memref<1x256xf32, #tpu.memory_space<vmem>>, vector<1x256xf32>
    %28 = vector.broadcast %27 : vector<1x256xf32> to vector<512x256xf32>
    %29 = arith.addf %26, %28 : vector<512x256xf32>
    %cst_23 = arith.constant 0.000000e+00 : f32
    %30 = vector.broadcast %cst_23 : f32 to vector<512x256xf32>
    %31 = arith.maximumf %29, %30 : vector<512x256xf32>
    %32 = arith.truncf %31 : vector<512x256xf32> to vector<512x256xbf16>
    %c0_24 = arith.constant 0 : index
    %c0_25 = arith.constant 0 : index
    %33 = vector.load %arg10[%c0_24, %c0_25] : memref<256x128xbf16, #tpu.memory_space<vmem>>, vector<256x128xbf16>
    %cst_26 = arith.constant dense<0.000000e+00> : vector<512x128xf32>
    %34 = tpu.matmul %32, %33, %cst_26 {dimension_numbers = #tpu.dot_dimension_numbers<[1], [0], [0], [1], [0, 0, 1, 1], [], []>} : vector<512x256xbf16>, vector<256x128xbf16>, vector<512x128xf32> -> vector<512x128xf32>
    %c0_27 = arith.constant 0 : index
    %c0_28 = arith.constant 0 : index
    %35 = vector.load %arg11[%c0_27, %c0_28] : memref<1x128xf32, #tpu.memory_space<vmem>>, vector<1x128xf32>
    %36 = vector.broadcast %35 : vector<1x128xf32> to vector<512x128xf32>
    %37 = arith.addf %34, %36 : vector<512x128xf32>
    %38 = arith.negf %37 : vector<512x128xf32>
    %39 = math.exp %38 : vector<512x128xf32>
    %cst_29 = arith.constant 1.000000e+00 : f32
    %40 = vector.broadcast %cst_29 : f32 to vector<512x128xf32>
    %41 = arith.addf %40, %39 : vector<512x128xf32>
    %42 = arith.divf %40, %41 : vector<512x128xf32>
    %43 = arith.truncf %42 : vector<512x128xf32> to vector<512x128xbf16>
    %c0_30 = arith.constant 0 : index
    %c0_31 = arith.constant 0 : index
    %44 = vector.load %arg12[%c0_30, %c0_31] : memref<512x128xbf16, #tpu.memory_space<vmem>>, vector<512x128xbf16>
    tpu.vector_store %arg12[%c0_30, %c0_31], %43 {strides = array<i32>} : memref<512x128xbf16, #tpu.memory_space<vmem>>, vector<512x128xbf16>,
    return
  }
  func.func @transform_0(%arg0: i32) -> (i32, i32) {
    %c0_i32 = arith.constant 0 : i32
    %c0_i32_0 = arith.constant 0 : i32
    return %arg0, %c0_i32 : i32, i32
  }
  func.func @transform_1(%arg0: i32) -> (i32, i32) {
    %c0_i32 = arith.constant 0 : i32
    %c0_i32_0 = arith.constant 0 : i32
    %c0_i32_1 = arith.constant 0 : i32
    return %c0_i32, %c0_i32_0 : i32, i32
  }
  func.func @transform_2(%arg0: i32) -> (i32, i32) {
    %c0_i32 = arith.constant 0 : i32
    %c0_i32_0 = arith.constant 0 : i32
    %c0_i32_1 = arith.constant 0 : i32
    return %c0_i32, %c0_i32_0 : i32, i32
  }
  func.func @transform_3(%arg0: i32) -> (i32, i32) {
    %c0_i32 = arith.constant 0 : i32
    %c0_i32_0 = arith.constant 0 : i32
    %c0_i32_1 = arith.constant 0 : i32
    return %c0_i32, %c0_i32_0 : i32, i32
  }
  func.func @transform_4(%arg0: i32) -> (i32, i32) {
    %c0_i32 = arith.constant 0 : i32
    %c0_i32_0 = arith.constant 0 : i32
    %c0_i32_1 = arith.constant 0 : i32
    return %c0_i32, %c0_i32_0 : i32, i32
  }
  func.func @transform_5(%arg0: i32) -> (i32, i32) {
    %c0_i32 = arith.constant 0 : i32
    %c0_i32_0 = arith.constant 0 : i32
    %c0_i32_1 = arith.constant 0 : i32
    return %c0_i32, %c0_i32_0 : i32, i32
  }
  func.func @transform_6(%arg0: i32) -> (i32, i32) {
    %c0_i32 = arith.constant 0 : i32
    %c0_i32_0 = arith.constant 0 : i32
    %c0_i32_1 = arith.constant 0 : i32
    return %c0_i32, %c0_i32_0 : i32, i32
  }
  func.func @transform_7(%arg0: i32) -> (i32, i32) {
    %c0_i32 = arith.constant 0 : i32
    %c0_i32_0 = arith.constant 0 : i32
    %c0_i32_1 = arith.constant 0 : i32
    return %c0_i32, %c0_i32_0 : i32, i32
  }
  func.func @transform_8(%arg0: i32) -> (i32, i32) {
    %c0_i32 = arith.constant 0 : i32
    %c0_i32_0 = arith.constant 0 : i32
    %c0_i32_1 = arith.constant 0 : i32
    return %c0_i32, %c0_i32_0 : i32, i32
  }
  func.func @transform_9(%arg0: i32) -> (i32, i32) {
    %c0_i32 = arith.constant 0 : i32
    %c0_i32_0 = arith.constant 0 : i32
    %c0_i32_1 = arith.constant 0 : i32
    return %c0_i32, %c0_i32_0 : i32, i32
  }
  func.func @transform_10(%arg0: i32) -> (i32, i32) {
    %c0_i32 = arith.constant 0 : i32
    %c0_i32_0 = arith.constant 0 : i32
    %c0_i32_1 = arith.constant 0 : i32
    return %c0_i32, %c0_i32_0 : i32, i32
  }
  func.func @transform_11(%arg0: i32) -> (i32, i32) {
    %c0_i32 = arith.constant 0 : i32
    %c0_i32_0 = arith.constant 0 : i32
    return %arg0, %c0_i32 : i32, i32
  }
}

</mosaic_0001>

<llo_original>
// kernel: tpu_custom_call.1
$region0: #{tpu_custom_call.1}
  #allocation0 [shape = 'u32[]', space=smem, size = 0x4, offset = 0x4, fixed_abs, tag = 'smem constant byte address 0x4 - core index']
  #allocation1 [shape = 'u32[144,128]{1,0:T(1,128)}', space=vmem, size = 0x12000, scoped, tag = 'internal scratch']
  %s0 = inlined_call_operand.hbm [shape: bf16[1024,128], index: 0, kind: input, shape index: {}]
  %s1 = inlined_call_operand.hbm [shape: bf16[128,256], index: 1, kind: input, shape index: {}]
  %s2 = inlined_call_operand.vmem [shape: f32[1,256], index: 2, kind: input, shape index: {}]
  %s3 = inlined_call_operand.hbm [shape: bf16[256,256], index: 3, kind: input, shape index: {}]
  %s4 = inlined_call_operand.vmem [shape: f32[1,256], index: 4, kind: input, shape index: {}]
  %s5 = inlined_call_operand.hbm [shape: bf16[256,256], index: 5, kind: input, shape index: {}]
  %s6 = inlined_call_operand.vmem [shape: f32[1,256], index: 6, kind: input, shape index: {}]
  %s7 = inlined_call_operand.hbm [shape: bf16[256,256], index: 7, kind: input, shape index: {}]
  %s8 = inlined_call_operand.vmem [shape: f32[1,256], index: 8, kind: input, shape index: {}]
  %s9 = inlined_call_operand.hbm [shape: bf16[256,128], index: 9, kind: input, shape index: {}]
  %s10 = inlined_call_operand.vmem [shape: f32[1,128], index: 10, kind: input, shape index: {}]
  %s11 = inlined_call_operand.hbm [shape: bf16[1024,128], index: 11, kind: output, shape index: {}]
  %s12 = sld [smem:[#allocation0]]
  $region101: #{tpu_custom_call.1} parent=0
    _
  %s14 = ssub.s32 1, %s12
  %s15 = scalar_select 0, %s14, %s12
  $region1: #{tpu_custom_call.1} parent=0
    #allocation2 [shape = 'u8[262144]{0}', space=vmem, size = 0x40000, scoped, tag = 'input window, operand 0']
    #allocation3 [shape = 's32[2]{0}', space=sflag, size = 0x8, scoped, tag = 'scoped memory for tpu_custom_call.1']
    #allocation4 [shape = 's32[2]{0}', space=sflag, size = 0x8, scoped, tag = 'scoped memory for tpu_custom_call.1']
    #allocation5 [shape = 'u8[65536]{0}', space=vmem, size = 0x10000, scoped, tag = 'input window, operand 1, single buffered']
    #allocation6 [shape = 's32[1]{0}', space=sflag, size = 0x4, scoped, tag = 'scoped memory for tpu_custom_call.1']
    #allocation7 [shape = 'u8[131072]{0}', space=vmem, size = 0x20000, scoped, tag = 'input window, operand 3, single buffered']
    #allocation8 [shape = 'u8[131072]{0}', space=vmem, size = 0x20000, scoped, tag = 'input window, operand 5, single buffered']
    #allocation9 [shape = 's32[1]{0}', space=sflag, size = 0x4, scoped, tag = 'scoped memory for tpu_custom_call.1']
    #allocation10 [shape = 'u8[131072]{0}', space=vmem, size = 0x20000, scoped, tag = 'input window, operand 7, single buffered']
    #allocation11 [shape = 'u8[65536]{0}', space=vmem, size = 0x10000, scoped, tag = 'input window, operand 9, single buffered']
    #allocation12 [shape = 's32[1]{0}', space=sflag, size = 0x4, scoped, tag = 'scoped memory for tpu_custom_call.1']
    #allocation13 [shape = 'u8[262144]{0}', space=vmem, size = 0x40000, scoped, tag = 'output window, operand 0']
    %16 = vsyncpa [#allocation3], 0
    %s17 = scalar_lea.sflag [#allocation3], 1
    %18 = vsyncpa %s17, 0
    %19 = vsyncpa [#allocation6], 0
    %20 = vsyncpa [#allocation9], 0
    %21 = vsyncpa [#allocation12], 0
    %22 = vsyncpa [#allocation4], 0
    %s23 = scalar_lea.sflag [#allocation4], 1
    %24 = vsyncpa %s23, 0
    loop: start=0, step=1, limit=4
    $region2: #{tpu_custom_call.1} parent=1 // loop_pre_header
      _
    $region3: #{tpu_custom_call.1} parent=1 // loop_header
      %s26 = sphi 0, %s30
      %p27 = scmp.ge.s32.totalorder %s26, 4
      %s36 = sphi 0, %s38
      %s39 = sphi 0, %s36
      %s40 = sphi 0, %s39
      %s56 = sphi 0, %s40
      %s60 = sphi 0, %s60
      %s62 = sphi 0, %s60
      %s63 = sphi 0, %s62
      %s77 = sphi 0, %s63
      %s81 = sphi 0, %s81
      %s83 = sphi 0, %s81
      %s84 = sphi 0, %s83
      %s98 = sphi 0, %s84
      %s102 = sphi 0, %s102
      %s104 = sphi 0, %s102
      %s105 = sphi 0, %s104
      %s119 = sphi 0, %s105
      %s123 = sphi 0, %s123
      %s125 = sphi 0, %s123
      %s126 = sphi 0, %s125
      %s140 = sphi 0, %s126
      %s144 = sphi 0, %s144
      %s146 = sphi 0, %s144
      %s147 = sphi 0, %s146
      %s161 = sphi 0, %s147
      %s165 = sphi 0, %s165
      %s167 = sphi 0, %s165
      %s168 = sphi 0, %s167
      %s182 = sphi 0, %s168
      %s186 = sphi 0, %s186
      %s188 = sphi 0, %s186
      %s189 = sphi 0, %s188
      %s203 = sphi 0, %s189
      %s207 = sphi 0, %s207
      %s209 = sphi 0, %s207
      %s210 = sphi 0, %s209
      %s224 = sphi 0, %s210
      %s228 = sphi 0, %s228
      %s230 = sphi 0, %s228
      %s231 = sphi 0, %s230
      %s245 = sphi 0, %s231
      %s249 = sphi 0, %s249
      %s251 = sphi 0, %s249
      %s252 = sphi 0, %s251
      %s266 = sphi 0, %s252
      %s272 = sphi 0, %s274
      %s275 = sphi 0, %s272
      %s276 = sphi 0, %s275
      %s292 = sphi 0, %s276
    $region4: #{tpu_custom_call.1} parent=1 // loop_header_branch
      %29 = sbr.rel (%p27) target = $region8
    $region5: #{tpu_custom_call.1} parent=1 // loop_body
      %s31 = ssub.s32 %s26, 1
      %s32 = ssub.s32 %s26, 2
      %s33 = sadd.s32 %s26, 1
      %s34 = ssub.s32 %s26, %s33
      %p35 = scmp.eq.s32.totalorder %s34, 0
      %s37 = sadd.s32 %s36, 1
      %s38 = scalar_select %p35, %s36, %s37
      %p41 = pneg %p35
      %p42 = scmp.eq.s32.totalorder %s26, 1
      %p43 = por %p41, %p42
      %p44 = scmp.ne.s32.totalorder %s36, %s39
      %p45 = scmp.eq.s32.totalorder %s26, 0
      %p46 = por %p44, %p45
      %p47 = scmp.ne.s32.totalorder %s36, %s39
      %p48 = scmp.eq.s32.totalorder %s31, 1
      %p49 = por %p47, %p48
      %p50 = scmp.ne.s32.totalorder %s39, %s40
      %p51 = scmp.eq.s32.totalorder %s31, 0
      %p52 = por %p50, %p51
      %p53 = scmp.ne.s32.totalorder %s39, %s40
      %p54 = scmp.eq.s32.totalorder %s32, 1
      %p55 = por %p53, %p54
      %p57 = scmp.ne.s32.totalorder %s40, %s56
      %p58 = scmp.eq.s32.totalorder %s32, 0
      %p59 = por %p57, %p58
      %s61 = sadd.s32 %s60, 1
      %p64 = scmp.eq.s32.totalorder %s26, 1
      %p65 = scmp.ne.s32.totalorder %s60, %s62
      %p66 = scmp.eq.s32.totalorder %s26, 0
      %p67 = por %p65, %p66
      %p68 = scmp.ne.s32.totalorder %s60, %s62
      %p69 = scmp.eq.s32.totalorder %s31, 1
      %p70 = por %p68, %p69
      %p71 = scmp.ne.s32.totalorder %s62, %s63
      %p72 = scmp.eq.s32.totalorder %s31, 0
      %p73 = por %p71, %p72
      %p74 = scmp.ne.s32.totalorder %s62, %s63
      %p75 = scmp.eq.s32.totalorder %s32, 1
      %p76 = por %p74, %p75
      %p78 = scmp.ne.s32.totalorder %s63, %s77
      %p79 = scmp.eq.s32.totalorder %s32, 0
      %p80 = por %p78, %p79
      %s82 = sadd.s32 %s81, 1
      %p85 = scmp.eq.s32.totalorder %s26, 1
      %p86 = scmp.ne.s32.totalorder %s81, %s83
      %p87 = scmp.eq.s32.totalorder %s26, 0
      %p88 = por %p86, %p87
      %p89 = scmp.ne.s32.totalorder %s81, %s83
      %p90 = scmp.eq.s32.totalorder %s31, 1
      %p91 = por %p89, %p90
      %p92 = scmp.ne.s32.totalorder %s83, %s84
      %p93 = scmp.eq.s32.totalorder %s31, 0
      %p94 = por %p92, %p93
      %p95 = scmp.ne.s32.totalorder %s83, %s84
      %p96 = scmp.eq.s32.totalorder %s32, 1
      %p97 = por %p95, %p96
      %p99 = scmp.ne.s32.totalorder %s84, %s98
      %p100 = scmp.eq.s32.totalorder %s32, 0
      %p101 = por %p99, %p100
      %s103 = sadd.s32 %s102, 1
      %p106 = scmp.eq.s32.totalorder %s26, 1
      %p107 = scmp.ne.s32.totalorder %s102, %s104
      %p108 = scmp.eq.s32.totalorder %s26, 0
      %p109 = por %p107, %p108
      %p110 = scmp.ne.s32.totalorder %s102, %s104
      %p111 = scmp.eq.s32.totalorder %s31, 1
      %p112 = por %p110, %p111
      %p113 = scmp.ne.s32.totalorder %s104, %s105
      %p114 = scmp.eq.s32.totalorder %s31, 0
      %p115 = por %p113, %p114
      %p116 = scmp.ne.s32.totalorder %s104, %s105
      %p117 = scmp.eq.s32.totalorder %s32, 1
      %p118 = por %p116, %p117
      %p120 = scmp.ne.s32.totalorder %s105, %s119
      %p121 = scmp.eq.s32.totalorder %s32, 0
      %p122 = por %p120, %p121
      %s124 = sadd.s32 %s123, 1
      %p127 = scmp.eq.s32.totalorder %s26, 1
      %p128 = scmp.ne.s32.totalorder %s123, %s125
      %p129 = scmp.eq.s32.totalorder %s26, 0
      %p130 = por %p128, %p129
      %p131 = scmp.ne.s32.totalorder %s123, %s125
      %p132 = scmp.eq.s32.totalorder %s31, 1
      %p133 = por %p131, %p132
      %p134 = scmp.ne.s32.totalorder %s125, %s126
      %p135 = scmp.eq.s32.totalorder %s31, 0
      %p136 = por %p134, %p135
      %p137 = scmp.ne.s32.totalorder %s125, %s126
      %p138 = scmp.eq.s32.totalorder %s32, 1
      %p139 = por %p137, %p138
      %p141 = scmp.ne.s32.totalorder %s126, %s140
      %p142 = scmp.eq.s32.totalorder %s32, 0
      %p143 = por %p141, %p142
      %s145 = sadd.s32 %s144, 1
      %p148 = scmp.eq.s32.totalorder %s26, 1
      %p149 = scmp.ne.s32.totalorder %s144, %s146
      %p150 = scmp.eq.s32.totalorder %s26, 0
      %p151 = por %p149, %p150
      %p152 = scmp.ne.s32.totalorder %s144, %s146
      %p153 = scmp.eq.s32.totalorder %s31, 1
      %p154 = por %p152, %p153
      %p155 = scmp.ne.s32.totalorder %s146, %s147
      %p156 = scmp.eq.s32.totalorder %s31, 0
      %p157 = por %p155, %p156
      %p158 = scmp.ne.s32.totalorder %s146, %s147
      %p159 = scmp.eq.s32.totalorder %s32, 1
      %p160 = por %p158, %p159
      %p162 = scmp.ne.s32.totalorder %s147, %s161
      %p163 = scmp.eq.s32.totalorder %s32, 0
      %p164 = por %p162, %p163
      %s166 = sadd.s32 %s165, 1
      %p169 = scmp.eq.s32.totalorder %s26, 1
      %p170 = scmp.ne.s32.totalorder %s165, %s167
      %p171 = scmp.eq.s32.totalorder %s26, 0
      %p172 = por %p170, %p171
      %p173 = scmp.ne.s32.totalorder %s165, %s167
      %p174 = scmp.eq.s32.totalorder %s31, 1
      %p175 = por %p173, %p174
      %p176 = scmp.ne.s32.totalorder %s167, %s168
      %p177 = scmp.eq.s32.totalorder %s31, 0
      %p178 = por %p176, %p177
      %p179 = scmp.ne.s32.totalorder %s167, %s168
      %p180 = scmp.eq.s32.totalorder %s32, 1
      %p181 = por %p179, %p180
      %p183 = scmp.ne.s32.totalorder %s168, %s182
      %p184 = scmp.eq.s32.totalorder %s32, 0
      %p185 = por %p183, %p184
      %s187 = sadd.s32 %s186, 1
      %p190 = scmp.eq.s32.totalorder %s26, 1
      %p191 = scmp.ne.s32.totalorder %s186, %s188
      %p192 = scmp.eq.s32.totalorder %s26, 0
      %p193 = por %p191, %p192
      %p194 = scmp.ne.s32.totalorder %s186, %s188
      %p195 = scmp.eq.s32.totalorder %s31, 1
      %p196 = por %p194, %p195
      %p197 = scmp.ne.s32.totalorder %s188, %s189
      %p198 = scmp.eq.s32.totalorder %s31, 0
      %p199 = por %p197, %p198
      %p200 = scmp.ne.s32.totalorder %s188, %s189
      %p201 = scmp.eq.s32.totalorder %s32, 1
      %p202 = por %p200, %p201
      %p204 = scmp.ne.s32.totalorder %s189, %s203
      %p205 = scmp.eq.s32.totalorder %s32, 0
      %p206 = por %p204, %p205
      %s208 = sadd.s32 %s207, 1
      %p211 = scmp.eq.s32.totalorder %s26, 1
      %p212 = scmp.ne.s32.totalorder %s207, %s209
      %p213 = scmp.eq.s32.totalorder %s26, 0
      %p214 = por %p212, %p213
      %p215 = scmp.ne.s32.totalorder %s207, %s209
      %p216 = scmp.eq.s32.totalorder %s31, 1
      %p217 = por %p215, %p216
      %p218 = scmp.ne.s32.totalorder %s209, %s210
      %p219 = scmp.eq.s32.totalorder %s31, 0
      %p220 = por %p218, %p219
      %p221 = scmp.ne.s32.totalorder %s209, %s210
      %p222 = scmp.eq.s32.totalorder %s32, 1
      %p223 = por %p221, %p222
      %p225 = scmp.ne.s32.totalorder %s210, %s224
      %p226 = scmp.eq.s32.totalorder %s32, 0
      %p227 = por %p225, %p226
      %s229 = sadd.s32 %s228, 1
      %p232 = scmp.eq.s32.totalorder %s26, 1
      %p233 = scmp.ne.s32.totalorder %s228, %s230
      %p234 = scmp.eq.s32.totalorder %s26, 0
      %p235 = por %p233, %p234
      %p236 = scmp.ne.s32.totalorder %s228, %s230
      %p237 = scmp.eq.s32.totalorder %s31, 1
      %p238 = por %p236, %p237
      %p239 = scmp.ne.s32.totalorder %s230, %s231
      %p240 = scmp.eq.s32.totalorder %s31, 0
      %p241 = por %p239, %p240
      %p242 = scmp.ne.s32.totalorder %s230, %s231
      %p243 = scmp.eq.s32.totalorder %s32, 1
      %p244 = por %p242, %p243
      %p246 = scmp.ne.s32.totalorder %s231, %s245
      %p247 = scmp.eq.s32.totalorder %s32, 0
      %p248 = por %p246, %p247
      %s250 = sadd.s32 %s249, 1
      %p253 = scmp.eq.s32.totalorder %s26, 1
      %p254 = scmp.ne.s32.totalorder %s249, %s251
      %p255 = scmp.eq.s32.totalorder %s26, 0
      %p256 = por %p254, %p255
      %p257 = scmp.ne.s32.totalorder %s249, %s251
      %p258 = scmp.eq.s32.totalorder %s31, 1
      %p259 = por %p257, %p258
      %p260 = scmp.ne.s32.totalorder %s251, %s252
      %p261 = scmp.eq.s32.totalorder %s31, 0
      %p262 = por %p260, %p261
      %p263 = scmp.ne.s32.totalorder %s251, %s252
      %p264 = scmp.eq.s32.totalorder %s32, 1
      %p265 = por %p263, %p264
      %p267 = scmp.ne.s32.totalorder %s252, %s266
      %p268 = scmp.eq.s32.totalorder %s32, 0
      %p269 = por %p267, %p268
      %s270 = ssub.s32 %s26, %s33
      %p271 = scmp.eq.s32.totalorder %s270, 0
      %s273 = sadd.s32 %s272, 1
      %s274 = scalar_select %p271, %s272, %s273
      %p277 = pneg %p271
      %p278 = scmp.eq.s32.totalorder %s26, 1
      %p279 = por %p277, %p278
      %p280 = scmp.ne.s32.totalorder %s272, %s275
      %p281 = scmp.eq.s32.totalorder %s26, 0
      %p282 = por %p280, %p281
      %p283 = scmp.ne.s32.totalorder %s272, %s275
      %p284 = scmp.eq.s32.totalorder %s31, 1
      %p285 = por %p283, %p284
      %p286 = scmp.ne.s32.totalorder %s275, %s276
      %p287 = scmp.eq.s32.totalorder %s31, 0
      %p288 = por %p286, %p287
      %p289 = scmp.ne.s32.totalorder %s275, %s276
      %p290 = scmp.eq.s32.totalorder %s32, 1
      %p291 = por %p289, %p290
      %p293 = scmp.ne.s32.totalorder %s276, %s292
      %p294 = scmp.eq.s32.totalorder %s32, 0
      %p295 = por %p293, %p294
      %p296 = scmp.le.s32.totalorder 1, %s26
      %p297 = scmp.lt.s32.totalorder %s26, 3
      %p298 = pnand %p296, %p297
      %p299 = pneg %p298
      // Predicated region
      $region9: #{tpu_custom_call.1} parent=5 // pred_check
        _
      $region10: #{tpu_custom_call.1} parent=5 // pred_check_branch
        %301 = sbr.rel (%p298) target = $region12
      $region11: #{tpu_custom_call.1} parent=5 // pred_region
        %s302 = ssub.s32 %s26, 1
        // Predicated region
        $region13: #{tpu_custom_call.1} parent=11 // pred_check
          %p303 = pneg %p73
        $region14: #{tpu_custom_call.1} parent=11 // pred_check_branch
          %305 = sbr.rel (%p303) target = $region16
        $region15: #{tpu_custom_call.1} parent=11 // pred_region
          %s307 = ssub.s32 2048, 2048
          %308 = vsyncadd [#allocation6], %s307
          %s309 = sshll.u32 [#allocation5], 4
          %s310 = int_to_ptr.vmem [resolvable:$true] %s309
          %315 = dma.hbm_to_vmem [thread:$0]  %s1, 2048, %s310, [#allocation6], 128, 128, 8
        $region16: #{tpu_custom_call.1} parent=11 // pred_fallthru
          _
        // Predicated region
        $region17: #{tpu_custom_call.1} parent=11 // pred_check
          %p316 = pneg %p94
        $region18: #{tpu_custom_call.1} parent=11 // pred_check_branch
          %318 = sbr.rel (%p316) target = $region20
        $region19: #{tpu_custom_call.1} parent=11 // pred_region
          _
        $region20: #{tpu_custom_call.1} parent=11 // pred_fallthru
          _
        // Predicated region
        $region21: #{tpu_custom_call.1} parent=11 // pred_check
          %p319 = pneg %p115
        $region22: #{tpu_custom_call.1} parent=11 // pred_check_branch
          %321 = sbr.rel (%p319) target = $region24
        $region23: #{tpu_custom_call.1} parent=11 // pred_region
          %s323 = ssub.s32 4096, 4096
          %324 = vsyncadd [#allocation6], %s323
          %s325 = sshll.u32 [#allocation7], 4
          %s326 = int_to_ptr.vmem [resolvable:$true] %s325
          %331 = dma.hbm_to_vmem [thread:$0]  %s3, 4096, %s326, [#allocation6], 128, 128, 8
        $region24: #{tpu_custom_call.1} parent=11 // pred_fallthru
          _
        // Predicated region
        $region25: #{tpu_custom_call.1} parent=11 // pred_check
          %p332 = pneg %p136
        $region26: #{tpu_custom_call.1} parent=11 // pred_check_branch
          %334 = sbr.rel (%p332) target = $region28
        $region27: #{tpu_custom_call.1} parent=11 // pred_region
          _
        $region28: #{tpu_custom_call.1} parent=11 // pred_fallthru
          _
        // Predicated region
        $region29: #{tpu_custom_call.1} parent=11 // pred_check
          %p335 = pneg %p157
        $region30: #{tpu_custom_call.1} parent=11 // pred_check_branch
          %337 = sbr.rel (%p335) target = $region32
        $region31: #{tpu_custom_call.1} parent=11 // pred_region
          %s339 = ssub.s32 4096, 4096
          %340 = vsyncadd [#allocation9], %s339
          %s341 = sshll.u32 [#allocation8], 4
          %s342 = int_to_ptr.vmem [resolvable:$true] %s341
          %347 = dma.hbm_to_vmem [thread:$0]  %s5, 4096, %s342, [#allocation9], 128, 128, 8
        $region32: #{tpu_custom_call.1} parent=11 // pred_fallthru
          _
        // Predicated region
        $region33: #{tpu_custom_call.1} parent=11 // pred_check
          %p348 = pneg %p178
        $region34: #{tpu_custom_call.1} parent=11 // pred_check_branch
          %350 = sbr.rel (%p348) target = $region36
        $region35: #{tpu_custom_call.1} parent=11 // pred_region
          _
        $region36: #{tpu_custom_call.1} parent=11 // pred_fallthru
          _
        // Predicated region
        $region37: #{tpu_custom_call.1} parent=11 // pred_check
          %p351 = pneg %p199
        $region38: #{tpu_custom_call.1} parent=11 // pred_check_branch
          %353 = sbr.rel (%p351) target = $region40
        $region39: #{tpu_custom_call.1} parent=11 // pred_region
          %s355 = ssub.s32 4096, 4096
          %356 = vsyncadd [#allocation9], %s355
          %s357 = sshll.u32 [#allocation10], 4
          %s358 = int_to_ptr.vmem [resolvable:$true] %s357
          %363 = dma.hbm_to_vmem [thread:$0]  %s7, 4096, %s358, [#allocation9], 128, 128, 8
        $region40: #{tpu_custom_call.1} parent=11 // pred_fallthru
          _
        // Predicated region
        $region41: #{tpu_custom_call.1} parent=11 // pred_check
          %p364 = pneg %p220
        $region42: #{tpu_custom_call.1} parent=11 // pred_check_branch
          %366 = sbr.rel (%p364) target = $region44
        $region43: #{tpu_custom_call.1} parent=11 // pred_region
          _
        $region44: #{tpu_custom_call.1} parent=11 // pred_fallthru
          _
        // Predicated region
        $region45: #{tpu_custom_call.1} parent=11 // pred_check
          %p367 = pneg %p241
        $region46: #{tpu_custom_call.1} parent=11 // pred_check_branch
          %369 = sbr.rel (%p367) target = $region48
        $region47: #{tpu_custom_call.1} parent=11 // pred_region
          %s371 = ssub.s32 2048, 2048
          %372 = vsyncadd [#allocation12], %s371
          %s373 = sshll.u32 [#allocation11], 4
          %s374 = int_to_ptr.vmem [resolvable:$true] %s373
          %379 = dma.hbm_to_vmem [thread:$0]  %s9, 2048, %s374, [#allocation12], 64, 64, 4
        $region48: #{tpu_custom_call.1} parent=11 // pred_fallthru
          _
        // Predicated region
        $region49: #{tpu_custom_call.1} parent=11 // pred_check
          %p380 = pneg %p262
        $region50: #{tpu_custom_call.1} parent=11 // pred_check_branch
          %382 = sbr.rel (%p380) target = $region52
        $region51: #{tpu_custom_call.1} parent=11 // pred_region
          _
        $region52: #{tpu_custom_call.1} parent=11 // pred_fallthru
          _
      $region12: #{tpu_custom_call.1} parent=5 // pred_fallthru
        _
      %p383 = scmp.lt.s32.totalorder %s26, 2
      // Predicated region
      $region53: #{tpu_custom_call.1} parent=5 // pred_check
        %p384 = pneg %p383
      $region54: #{tpu_custom_call.1} parent=5 // pred_check_branch
        %386 = sbr.rel (%p384) target = $region56
      $region55: #{tpu_custom_call.1} parent=5 // pred_region
        // Predicated region
        $region57: #{tpu_custom_call.1} parent=55 // pred_check
          %p387 = pneg %p46
        $region58: #{tpu_custom_call.1} parent=55 // pred_check_branch
          %389 = sbr.rel (%p387) target = $region60
        $region59: #{tpu_custom_call.1} parent=55 // pred_region
          %s390 = sand.u32 %s36, 1
          %s391 = scalar_lea.sflag [#allocation3], %s390
          %s392 = sand.u32 %s36, 1
          %s393 = smul.addr %s392, 256
          %s394 = scalar_lea.vmem [#allocation2], %s393
          %s395 = smul.u32 64, %s26
          %s397 = ssub.s32 4096, 4096
          %398 = vsyncadd %s391, %s397
          %s399 = smul.addr %s395, 64
          %s400 = scalar_lea.hbm %s0, %s399
          %s401 = sshll.u32 %s394, 4
          %s402 = int_to_ptr.vmem [resolvable:$true] %s401
          %407 = dma.hbm_to_vmem [thread:$0]  %s400, 4096, %s402, %s391, 64, 64, 4
        $region60: #{tpu_custom_call.1} parent=55 // pred_fallthru
          _
      $region56: #{tpu_custom_call.1} parent=5 // pred_fallthru
        _
      %p408 = scmp.le.s32.totalorder 1, %s26
      %p409 = scmp.lt.s32.totalorder %s26, 3
      %p410 = pnand %p408, %p409
      %p411 = pneg %p410
      // Predicated region
      $region61: #{tpu_custom_call.1} parent=5 // pred_check
        _
      $region62: #{tpu_custom_call.1} parent=5 // pred_check_branch
        %413 = sbr.rel (%p410) target = $region64
      $region63: #{tpu_custom_call.1} parent=5 // pred_region
        %s414 = ssub.s32 %s26, 1
        %s415 = sand.u32 %s39, 1
        %s416 = scalar_lea.sflag [#allocation3], %s415
        %s417 = sand.u32 %s39, 1
        %s418 = smul.addr %s417, 256
        %s419 = scalar_lea.vmem [#allocation2], %s418
        // Predicated region
        $region65: #{tpu_custom_call.1} parent=63 // pred_check
          %p420 = pneg %p52
        $region66: #{tpu_custom_call.1} parent=63 // pred_check_branch
          %422 = sbr.rel (%p420) target = $region68
        $region67: #{tpu_custom_call.1} parent=63 // pred_region
          %423 = dma.done %s416, 4096
        $region68: #{tpu_custom_call.1} parent=63 // pred_fallthru
          _
        // Predicated region
        $region69: #{tpu_custom_call.1} parent=63 // pred_check
          %p424 = pneg %p73
        $region70: #{tpu_custom_call.1} parent=63 // pred_check_branch
          %426 = sbr.rel (%p424) target = $region72
        $region71: #{tpu_custom_call.1} parent=63 // pred_region
          %427 = dma.done [#allocation6], 2048
        $region72: #{tpu_custom_call.1} parent=63 // pred_fallthru
          _
        // Predicated region
        $region73: #{tpu_custom_call.1} parent=63 // pred_check
          %p428 = pneg %p115
        $region74: #{tpu_custom_call.1} parent=63 // pred_check_branch
          %430 = sbr.rel (%p428) target = $region76
        $region75: #{tpu_custom_call.1} parent=63 // pred_region
          %431 = dma.done [#allocation6], 4096
        $region76: #{tpu_custom_call.1} parent=63 // pred_fallthru
          _
        // Predicated region
        $region77: #{tpu_custom_call.1} parent=63 // pred_check
          %p432 = pneg %p157
        $region78: #{tpu_custom_call.1} parent=63 // pred_check_branch
          %434 = sbr.rel (%p432) target = $region80
        $region79: #{tpu_custom_call.1} parent=63 // pred_region
          %435 = dma.done [#allocation9], 4096
        $region80: #{tpu_custom_call.1} parent=63 // pred_fallthru
          _
        // Predicated region
        $region81: #{tpu_custom_call.1} parent=63 // pred_check
          %p436 = pneg %p199
        $region82: #{tpu_custom_call.1} parent=63 // pred_check_branch
          %438 = sbr.rel (%p436) target = $region84
        $region83: #{tpu_custom_call.1} parent=63 // pred_region
          %439 = dma.done [#allocation9], 4096
        $region84: #{tpu_custom_call.1} parent=63 // pred_fallthru
          _
        // Predicated region
        $region85: #{tpu_custom_call.1} parent=63 // pred_check
          %p440 = pneg %p241
        $region86: #{tpu_custom_call.1} parent=63 // pred_check_branch
          %442 = sbr.rel (%p440) target = $region88
        $region87: #{tpu_custom_call.1} parent=63 // pred_region
          %443 = dma.done [#allocation12], 2048
        $region88: #{tpu_custom_call.1} parent=63 // pred_fallthru
          _
        %s444 = sand.u32 %s39, 1
        %s445 = scalar_lea.sflag [#allocation3], %s444
        %s446 = sand.u32 %s39, 1
        %s447 = smul.addr %s446, 256
        %s448 = scalar_lea.vmem [#allocation2], %s447
        %p449 = pneg %p52
        %p450 = pneg %p49
        %p451 = pneg %p73
        %p452 = pneg %p70
        %p453 = pneg %p94
        %p454 = pneg %p91
        %p455 = pneg %p115
        %p456 = pneg %p112
        %p457 = pneg %p136
        %p458 = pneg %p133
        %p459 = pneg %p157
        %p460 = pneg %p154
        %p461 = pneg %p178
        %p462 = pneg %p175
        %p463 = pneg %p199
        %p464 = pneg %p196
        %p465 = pneg %p220
        %p466 = pneg %p217
        %p467 = pneg %p241
        %p468 = pneg %p238
        %p469 = pneg %p262
        %p470 = pneg %p259
        %p471 = pneg %p288
        %p472 = pneg %p285
        %s473 = sand.u32 %s275, 1
        %s474 = scalar_lea.sflag [#allocation4], %s473
        %s475 = sand.u32 %s275, 1
        %s476 = smul.addr %s475, 256
        %s477 = scalar_lea.vmem [#allocation13], %s476
        %s478 = smul.u32 64, %s31
        %s479 = smul.u32 64, %s31
        %v481 = vld [vmem:[%s419] sm:$0xf]
        %v482 = vld [vmem:[%s419 + $0x4] sm:$0xf]
        %v483 = vld [vmem:[%s419 + $0x8] sm:$0xf]
        %v484 = vld [vmem:[%s419 + $0xc] sm:$0xf]
        %v485 = vld [vmem:[%s419 + $0x10] sm:$0xf]
        %v486 = vld [vmem:[%s419 + $0x14] sm:$0xf]
        %v487 = vld [vmem:[%s419 + $0x18] sm:$0xf]
        %v488 = vld [vmem:[%s419 + $0x1c] sm:$0xf]
        %v489 = vld [vmem:[%s419 + $0x20] sm:$0xf]
        %v490 = vld [vmem:[%s419 + $0x24] sm:$0xf]
        %v491 = vld [vmem:[%s419 + $0x28] sm:$0xf]
        %v492 = vld [vmem:[%s419 + $0x2c] sm:$0xf]
        %v493 = vld [vmem:[%s419 + $0x30] sm:$0xf]
        %v494 = vld [vmem:[%s419 + $0x34] sm:$0xf]
        %v495 = vld [vmem:[%s419 + $0x38] sm:$0xf]
        %v496 = vld [vmem:[%s419 + $0x3c] sm:$0xf]
        %v497 = vld [vmem:[%s419 + $0x40] sm:$0xf]
        %v498 = vld [vmem:[%s419 + $0x44] sm:$0xf]
        %v499 = vld [vmem:[%s419 + $0x48] sm:$0xf]
        %v500 = vld [vmem:[%s419 + $0x4c] sm:$0xf]
        %v501 = vld [vmem:[%s419 + $0x50] sm:$0xf]
        %v502 = vld [vmem:[%s419 + $0x54] sm:$0xf]
        %v503 = vld [vmem:[%s419 + $0x58] sm:$0xf]
        %v504 = vld [vmem:[%s419 + $0x5c] sm:$0xf]
        %v505 = vld [vmem:[%s419 + $0x60] sm:$0xf]
        %v506 = vld [vmem:[%s419 + $0x64] sm:$0xf]
        %v507 = vld [vmem:[%s419 + $0x68] sm:$0xf]
        %v508 = vld [vmem:[%s419 + $0x6c] sm:$0xf]
        %v509 = vld [vmem:[%s419 + $0x70] sm:$0xf]
        %v510 = vld [vmem:[%s419 + $0x74] sm:$0xf]
        %v511 = vld [vmem:[%s419 + $0x78] sm:$0xf]
        %v512 = vld [vmem:[%s419 + $0x7c] sm:$0xf]
        %v513 = vld [vmem:[%s419 + $0x80] sm:$0xf]
        %v514 = vld [vmem:[%s419 + $0x84] sm:$0xf]
        %v515 = vld [vmem:[%s419 + $0x88] sm:$0xf]
        %v516 = vld [vmem:[%s419 + $0x8c] sm:$0xf]
        %v517 = vld [vmem:[%s419 + $0x90] sm:$0xf]
        %v518 = vld [vmem:[%s419 + $0x94] sm:$0xf]
        %v519 = vld [vmem:[%s419 + $0x98] sm:$0xf]
        %v520 = vld [vmem:[%s419 + $0x9c] sm:$0xf]
        %v521 = vld [vmem:[%s419 + $0xa0] sm:$0xf]
        %v522 = vld [vmem:[%s419 + $0xa4] sm:$0xf]
        %v523 = vld [vmem:[%s419 + $0xa8] sm:$0xf]
        %v524 = vld [vmem:[%s419 + $0xac] sm:$0xf]
        %v525 = vld [vmem:[%s419 + $0xb0] sm:$0xf]
        %v526 = vld [vmem:[%s419 + $0xb4] sm:$0xf]
        %v527 = vld [vmem:[%s419 + $0xb8] sm:$0xf]
        %v528 = vld [vmem:[%s419 + $0xbc] sm:$0xf]
        %v529 = vld [vmem:[%s419 + $0xc0] sm:$0xf]
        %v530 = vld [vmem:[%s419 + $0xc4] sm:$0xf]
        %v531 = vld [vmem:[%s419 + $0xc8] sm:$0xf]
        %v532 = vld [vmem:[%s419 + $0xcc] sm:$0xf]
        %v533 = vld [vmem:[%s419 + $0xd0] sm:$0xf]
        %v534 = vld [vmem:[%s419 + $0xd4] sm:$0xf]
        %v535 = vld [vmem:[%s419 + $0xd8] sm:$0xf]
        %v536 = vld [vmem:[%s419 + $0xdc] sm:$0xf]
        %v537 = vld [vmem:[%s419 + $0xe0] sm:$0xf]
        %v538 = vld [vmem:[%s419 + $0xe4] sm:$0xf]
        %v539 = vld [vmem:[%s419 + $0xe8] sm:$0xf]
        %v540 = vld [vmem:[%s419 + $0xec] sm:$0xf]
        %v541 = vld [vmem:[%s419 + $0xf0] sm:$0xf]
        %v542 = vld [vmem:[%s419 + $0xf4] sm:$0xf]
        %v543 = vld [vmem:[%s419 + $0xf8] sm:$0xf]
        %v544 = vld [vmem:[%s419 + $0xfc] sm:$0xf]
        %v545 = vld [vmem:[#allocation5] sm:$0xff]
        %v546 = vld [vmem:[#allocation5 + $0x8] sm:$0xff]
        %v547 = vld [vmem:[#allocation5 + $0x10] sm:$0xff]
        %v548 = vld [vmem:[#allocation5 + $0x18] sm:$0xff]
        %v549 = vld [vmem:[#allocation5 + $0x20] sm:$0xff]
        %v550 = vld [vmem:[#allocation5 + $0x28] sm:$0xff]
        %v551 = vld [vmem:[#allocation5 + $0x30] sm:$0xff]
        %v552 = vld [vmem:[#allocation5 + $0x38] sm:$0xff]
        %v553 = vld [vmem:[#allocation5 + $0x40] sm:$0xff]
        %v554 = vld [vmem:[#allocation5 + $0x48] sm:$0xff]
        %v555 = vld [vmem:[#allocation5 + $0x50] sm:$0xff]
        %v556 = vld [vmem:[#allocation5 + $0x58] sm:$0xff]
        %v557 = vld [vmem:[#allocation5 + $0x60] sm:$0xff]
        %v558 = vld [vmem:[#allocation5 + $0x68] sm:$0xff]
        %v559 = vld [vmem:[#allocation5 + $0x70] sm:$0xff]
        %v560 = vld [vmem:[#allocation5 + $0x78] sm:$0xff]
        %v561 = vld [vmem:[%s2] sm:$0x3]
        %v563 = vlaneseq
        %v564 = vshrl.u32 %v563, 7
        %v565 = vsub.s32 0, %v564
        %v566 = vrot.slane %v561, %v565
        %v567 = vlaneseq
        %v568 = vshrl.u32 %v567, 7
        %v569 = vsub.s32 1, %v568
        %v570 = vrot.slane %v561, %v569
        %v637 = vunpack.c.l.b16 %v481
        %v638 = vunpack.c.l.b16 %v482
        %v639 = vunpack.c.l.b16 %v483
        %v640 = vunpack.c.l.b16 %v484
        %v641 = vunpack.c.l.b16 %v485
        %v642 = vunpack.c.l.b16 %v486
        %v643 = vunpack.c.l.b16 %v487
        %v644 = vunpack.c.l.b16 %v488
        %v645 = vunpack.c.l.b16 %v489
        %v646 = vunpack.c.l.b16 %v490
        %v647 = vunpack.c.l.b16 %v491
        %v648 = vunpack.c.l.b16 %v492
        %v649 = vunpack.c.l.b16 %v493
        %v650 = vunpack.c.l.b16 %v494
        %v651 = vunpack.c.l.b16 %v495
        %v652 = vunpack.c.l.b16 %v496
        %v653 = vunpack.c.l.b16 %v497
        %v654 = vunpack.c.l.b16 %v498
        %v655 = vunpack.c.l.b16 %v499
        %v656 = vunpack.c.l.b16 %v500
        %v657 = vunpack.c.l.b16 %v501
        %v658 = vunpack.c.l.b16 %v502
        %v659 = vunpack.c.l.b16 %v503
        %v660 = vunpack.c.l.b16 %v504
        %v661 = vunpack.c.l.b16 %v505
        %v662 = vunpack.c.l.b16 %v506
        %v663 = vunpack.c.l.b16 %v507
        %v664 = vunpack.c.l.b16 %v508
        %v665 = vunpack.c.l.b16 %v509
        %v666 = vunpack.c.l.b16 %v510
        %v667 = vunpack.c.l.b16 %v511
        %v668 = vunpack.c.l.b16 %v512
        %v669 = vunpack.c.l.b16 %v513
        %v670 = vunpack.c.l.b16 %v514
        %v671 = vunpack.c.l.b16 %v515
        %v672 = vunpack.c.l.b16 %v516
        %v673 = vunpack.c.l.b16 %v517
        %v674 = vunpack.c.l.b16 %v518
        %v675 = vunpack.c.l.b16 %v519
        %v676 = vunpack.c.l.b16 %v520
        %v677 = vunpack.c.l.b16 %v521
        %v678 = vunpack.c.l.b16 %v522
        %v679 = vunpack.c.l.b16 %v523
        %v680 = vunpack.c.l.b16 %v524
        %v681 = vunpack.c.l.b16 %v525
        %v682 = vunpack.c.l.b16 %v526
        %v683 = vunpack.c.l.b16 %v527
        %v684 = vunpack.c.l.b16 %v528
        %v685 = vunpack.c.l.b16 %v529
        %v686 = vunpack.c.l.b16 %v530
        %v687 = vunpack.c.l.b16 %v531
        %v688 = vunpack.c.l.b16 %v532
        %v689 = vunpack.c.l.b16 %v533
        %v690 = vunpack.c.l.b16 %v534
        %v691 = vunpack.c.l.b16 %v535
        %v692 = vunpack.c.l.b16 %v536
        %v693 = vunpack.c.l.b16 %v537
        %v694 = vunpack.c.l.b16 %v538
        %v695 = vunpack.c.l.b16 %v539
        %v696 = vunpack.c.l.b16 %v540
        %v697 = vunpack.c.l.b16 %v541
        %v698 = vunpack.c.l.b16 %v542
        %v699 = vunpack.c.l.b16 %v543
        %v700 = vunpack.c.l.b16 %v544
        %v701 = vpack.c.b16 %v638, %v637
        %v702 = vpack.c.b16 %v640, %v639
        %v703 = vpack.c.b16 %v642, %v641
        %v704 = vpack.c.b16 %v644, %v643
        %v705 = vpack.c.b16 %v646, %v645
        %v706 = vpack.c.b16 %v648, %v647
        %v707 = vpack.c.b16 %v650, %v649
        %v708 = vpack.c.b16 %v652, %v651
        %v709 = vpack.c.b16 %v654, %v653
        %v710 = vpack.c.b16 %v656, %v655
        %v711 = vpack.c.b16 %v658, %v657
        %v712 = vpack.c.b16 %v660, %v659
        %v713 = vpack.c.b16 %v662, %v661
        %v714 = vpack.c.b16 %v664, %v663
        %v715 = vpack.c.b16 %v666, %v665
        %v716 = vpack.c.b16 %v668, %v667
        %v717 = vpack.c.b16 %v670, %v669
        %v718 = vpack.c.b16 %v672, %v671
        %v719 = vpack.c.b16 %v674, %v673
        %v720 = vpack.c.b16 %v676, %v675
        %v721 = vpack.c.b16 %v678, %v677
        %v722 = vpack.c.b16 %v680, %v679
        %v723 = vpack.c.b16 %v682, %v681
        %v724 = vpack.c.b16 %v684, %v683
        %v725 = vpack.c.b16 %v686, %v685
        %v726 = vpack.c.b16 %v688, %v687
        %v727 = vpack.c.b16 %v690, %v689
        %v728 = vpack.c.b16 %v692, %v691
        %v729 = vpack.c.b16 %v694, %v693
        %v730 = vpack.c.b16 %v696, %v695
        %v731 = vpack.c.b16 %v698, %v697
        %v732 = vpack.c.b16 %v700, %v699
        %v781 = vunpack.c.l.b16 %v545
        %v782 = vunpack.c.h.b16 %v545
        %v783 = vunpack.c.l.b16 %v546
        %v784 = vunpack.c.h.b16 %v546
        %v785 = vunpack.c.l.b16 %v547
        %v786 = vunpack.c.h.b16 %v547
        %v787 = vunpack.c.l.b16 %v548
        %v788 = vunpack.c.h.b16 %v548
        %v789 = vunpack.c.l.b16 %v549
        %v790 = vunpack.c.h.b16 %v549
        %v791 = vunpack.c.l.b16 %v550
        %v792 = vunpack.c.h.b16 %v550
        %v793 = vunpack.c.l.b16 %v551
        %v794 = vunpack.c.h.b16 %v551
        %v795 = vunpack.c.l.b16 %v552
        %v796 = vunpack.c.h.b16 %v552
        %v797 = vunpack.c.l.b16 %v553
        %v798 = vunpack.c.h.b16 %v553
        %v799 = vunpack.c.l.b16 %v554
        %v800 = vunpack.c.h.b16 %v554
        %v801 = vunpack.c.l.b16 %v555
        %v802 = vunpack.c.h.b16 %v555
        %v803 = vunpack.c.l.b16 %v556
        %v804 = vunpack.c.h.b16 %v556
        %v805 = vunpack.c.l.b16 %v557
        %v806 = vunpack.c.h.b16 %v557
        %v807 = vunpack.c.l.b16 %v558
        %v808 = vunpack.c.h.b16 %v558
        %v809 = vunpack.c.l.b16 %v559
        %v810 = vunpack.c.h.b16 %v559
        %v811 = vunpack.c.l.b16 %v560
        %v812 = vunpack.c.h.b16 %v560
        %v813 = vpack.c.b16 %v783, %v781
        %v814 = vpack.c.b16 %v784, %v782
        %v815 = vpack.c.b16 %v787, %v785
        %v816 = vpack.c.b16 %v788, %v786
        %v817 = vpack.c.b16 %v791, %v789
        %v818 = vpack.c.b16 %v792, %v790
        %v819 = vpack.c.b16 %v795, %v793
        %v820 = vpack.c.b16 %v796, %v794
        %v821 = vpack.c.b16 %v799, %v797
        %v822 = vpack.c.b16 %v800, %v798
        %v823 = vpack.c.b16 %v803, %v801
        %v824 = vpack.c.b16 %v804, %v802
        %v825 = vpack.c.b16 %v807, %v805
        %v826 = vpack.c.b16 %v808, %v806
        %v827 = vpack.c.b16 %v811, %v809
        %v828 = vpack.c.b16 %v812, %v810
        %845 = vmatprep.subr.bf16.mxu0 %v814
        %846 = vmatpush1.bf16.msra.mxu0 %v813
        %847 = vmatprep.subr.bf16.mxu0 %v816
        %848 = vmatpush1.bf16.msra.mxu0 %v815
        %849 = vmatprep.subr.bf16.mxu0 %v818
        %850 = vmatpush1.bf16.msra.mxu0 %v817
        %851 = vmatprep.subr.bf16.mxu0 %v820
        %852 = vmatpush1.bf16.msra.mxu0 %v819
        %853 = vmatprep.subr.bf16.mxu0 %v822
        %854 = vmatpush1.bf16.msra.mxu0 %v821
        %855 = vmatprep.subr.bf16.mxu0 %v824
        %856 = vmatpush1.bf16.msra.mxu0 %v823
        %857 = vmatprep.subr.bf16.mxu0 %v826
        %858 = vmatpush1.bf16.msra.mxu0 %v825
        %859 = vmatprep.subr.bf16.mxu0 %v828
        %860 = vmatpush1.bf16.msra.mxu0 %v827
        %861 = vmatprep.subr.bf16.mxu0 0
        %862 = vmatpush1.bf16.msra.mxu0 0
        %863 = vmatprep.subr.bf16.mxu0 0
        %864 = vmatpush1.bf16.msra.mxu0 0
        %865 = vmatprep.subr.bf16.mxu0 0
        %866 = vmatpush1.bf16.msra.mxu0 0
        %867 = vmatprep.subr.bf16.mxu0 0
        %868 = vmatpush1.bf16.msra.mxu0 0
        %869 = vmatprep.subr.bf16.mxu0 0
        %870 = vmatpush1.bf16.msra.mxu0 0
        %871 = vmatprep.subr.bf16.mxu0 0
        %872 = vmatpush1.bf16.msra.mxu0 0
        %873 = vmatprep.subr.bf16.mxu0 0
        %874 = vmatpush1.bf16.msra.mxu0 0
        %875 = vmatprep.subr.bf16.mxu0 0
        %876 = vmatpush1.bf16.msra.mxu0 0
        %877 = vmatprep.mubr.bf16.mxu0 0
        %878 = vmatmul.mubr.bf16.gmra.mrb[0].mxu0 %v701
        %v879 = vpop.f32.mrb[0].mxu0
        %v880 = vadd.f32 %v566, %v879
        %v881 = vpop.f32.mrb[0].mxu0
        %v882 = vadd.f32 %v570, %v881
        %v883 = vpop.f32.mrb[0].mxu0
        %v884 = vadd.f32 %v566, %v883
        %v885 = vpop.f32.mrb[0].mxu0
        %v886 = vadd.f32 %v570, %v885
        %887 = vmatprep.mubr.bf16.mxu0 0
        %888 = vmatmul.mubr.bf16.gmra.mrb[0].mxu0 %v702
        %v889 = vpop.f32.mrb[0].mxu0
        %v890 = vadd.f32 %v566, %v889
        %v891 = vpop.f32.mrb[0].mxu0
        %v892 = vadd.f32 %v570, %v891
        %v893 = vpop.f32.mrb[0].mxu0
        %v894 = vadd.f32 %v566, %v893
        %v895 = vpop.f32.mrb[0].mxu0
        %v896 = vadd.f32 %v570, %v895
        %897 = vmatprep.mubr.bf16.mxu0 0
        %898 = vmatmul.mubr.bf16.gmra.mrb[0].mxu0 %v703
        %v899 = vpop.f32.mrb[0].mxu0
        %v900 = vadd.f32 %v566, %v899
        %v901 = vpop.f32.mrb[0].mxu0
        %v902 = vadd.f32 %v570, %v901
        %v903 = vpop.f32.mrb[0].mxu0
        %v904 = vadd.f32 %v566, %v903
        %v905 = vpop.f32.mrb[0].mxu0
        %v906 = vadd.f32 %v570, %v905
        %907 = vmatprep.mubr.bf16.mxu0 0
        %908 = vmatmul.mubr.bf16.gmra.mrb[0].mxu0 %v704
        %v909 = vpop.f32.mrb[0].mxu0
        %v910 = vadd.f32 %v566, %v909
        %v911 = vpop.f32.mrb[0].mxu0
        %v912 = vadd.f32 %v570, %v911
        %v913 = vpop.f32.mrb[0].mxu0
        %v914 = vadd.f32 %v566, %v913
        %v915 = vpop.f32.mrb[0].mxu0
        %v916 = vadd.f32 %v570, %v915
        %917 = vmatprep.mubr.bf16.mxu0 0
        %918 = vmatmul.mubr.bf16.gmra.mrb[0].mxu0 %v705
        %v919 = vpop.f32.mrb[0].mxu0
        %v920 = vadd.f32 %v566, %v919
        %v921 = vpop.f32.mrb[0].mxu0
        %v922 = vadd.f32 %v570, %v921
        %v923 = vpop.f32.mrb[0].mxu0
        %v924 = vadd.f32 %v566, %v923
        %v925 = vpop.f32.mrb[0].mxu0
        %v926 = vadd.f32 %v570, %v925
        %927 = vmatprep.mubr.bf16.mxu0 0
        %928 = vmatmul.mubr.bf16.gmra.mrb[0].mxu0 %v706
        %v929 = vpop.f32.mrb[0].mxu0
        %v930 = vadd.f32 %v566, %v929
        %v931 = vpop.f32.mrb[0].mxu0
        %v932 = vadd.f32 %v570, %v931
        %v933 = vpop.f32.mrb[0].mxu0
        %v934 = vadd.f32 %v566, %v933
        %v935 = vpop.f32.mrb[0].mxu0
        %v936 = vadd.f32 %v570, %v935
        %937 = vmatprep.mubr.bf16.mxu0 0
        %938 = vmatmul.mubr.bf16.gmra.mrb[0].mxu0 %v707
        %v939 = vpop.f32.mrb[0].mxu0
        %v940 = vadd.f32 %v566, %v939
        %v941 = vpop.f32.mrb[0].mxu0
        %v942 = vadd.f32 %v570, %v941
        %v943 = vpop.f32.mrb[0].mxu0
        %v944 = vadd.f32 %v566, %v943
        %v945 = vpop.f32.mrb[0].mxu0
        %v946 = vadd.f32 %v570, %v945
        %947 = vmatprep.mubr.bf16.mxu0 0
        %948 = vmatmul.mubr.bf16.gmra.mrb[0].mxu0 %v708
        %v949 = vpop.f32.mrb[0].mxu0
        %v950 = vadd.f32 %v566, %v949
        %v951 = vpop.f32.mrb[0].mxu0
        %v952 = vadd.f32 %v570, %v951
        %v953 = vpop.f32.mrb[0].mxu0
        %v954 = vadd.f32 %v566, %v953
        %v955 = vpop.f32.mrb[0].mxu0
        %v956 = vadd.f32 %v570, %v955
        %957 = vmatprep.mubr.bf16.mxu0 0
        %958 = vmatmul.mubr.bf16.gmra.mrb[0].mxu0 %v709
        %v959 = vpop.f32.mrb[0].mxu0
        %v960 = vadd.f32 %v566, %v959
        %v961 = vpop.f32.mrb[0].mxu0
        %v962 = vadd.f32 %v570, %v961
        %v963 = vpop.f32.mrb[0].mxu0
        %v964 = vadd.f32 %v566, %v963
        %v965 = vpop.f32.mrb[0].mxu0
        %v966 = vadd.f32 %v570, %v965
        %967 = vmatprep.mubr.bf16.mxu0 0
        %968 = vmatmul.mubr.bf16.gmra.mrb[0].mxu0 %v710
        %v969 = vpop.f32.mrb[0].mxu0
        %v970 = vadd.f32 %v566, %v969
        %v971 = vpop.f32.mrb[0].mxu0
        %v972 = vadd.f32 %v570, %v971
        %v973 = vpop.f32.mrb[0].mxu0
        %v974 = vadd.f32 %v566, %v973
        %v975 = vpop.f32.mrb[0].mxu0
        %v976 = vadd.f32 %v570, %v975
        %977 = vmatprep.mubr.bf16.mxu0 0
        %978 = vmatmul.mubr.bf16.gmra.mrb[0].mxu0 %v711
        %v979 = vpop.f32.mrb[0].mxu0
        %v980 = vadd.f32 %v566, %v979
        %v981 = vpop.f32.mrb[0].mxu0
        %v982 = vadd.f32 %v570, %v981
        %v983 = vpop.f32.mrb[0].mxu0
        %v984 = vadd.f32 %v566, %v983
        %v985 = vpop.f32.mrb[0].mxu0
        %v986 = vadd.f32 %v570, %v985
        %987 = vmatprep.mubr.bf16.mxu0 0
        %988 = vmatmul.mubr.bf16.gmra.mrb[0].mxu0 %v712
        %v989 = vpop.f32.mrb[0].mxu0
        %v990 = vadd.f32 %v566, %v989
        %v991 = vpop.f32.mrb[0].mxu0
        %v992 = vadd.f32 %v570, %v991
        %v993 = vpop.f32.mrb[0].mxu0
        %v994 = vadd.f32 %v566, %v993
        %v995 = vpop.f32.mrb[0].mxu0
        %v996 = vadd.f32 %v570, %v995
        %997 = vmatprep.mubr.bf16.mxu0 0
        %998 = vmatmul.mubr.bf16.gmra.mrb[0].mxu0 %v713
        %v999 = vpop.f32.mrb[0].mxu0
        %v1000 = vadd.f32 %v566, %v999
        %v1001 = vpop.f32.mrb[0].mxu0
        %v1002 = vadd.f32 %v570, %v1001
        %v1003 = vpop.f32.mrb[0].mxu0
        %v1004 = vadd.f32 %v566, %v1003
        %v1005 = vpop.f32.mrb[0].mxu0
        %v1006 = vadd.f32 %v570, %v1005
        %1007 = vmatprep.mubr.bf16.mxu0 0
        %1008 = vmatmul.mubr.bf16.gmra.mrb[0].mxu0 %v714
        %v1009 = vpop.f32.mrb[0].mxu0
        %v1010 = vadd.f32 %v566, %v1009
        %v1011 = vpop.f32.mrb[0].mxu0
        %v1012 = vadd.f32 %v570, %v1011
        %v1013 = vpop.f32.mrb[0].mxu0
        %v1014 = vadd.f32 %v566, %v1013
        %v1015 = vpop.f32.mrb[0].mxu0
        %v1016 = vadd.f32 %v570, %v1015
        %1017 = vmatprep.mubr.bf16.mxu0 0
        %1018 = vmatmul.mubr.bf16.gmra.mrb[0].mxu0 %v715
        %v1019 = vpop.f32.mrb[0].mxu0
        %v1020 = vadd.f32 %v566, %v1019
        %v1021 = vpop.f32.mrb[0].mxu0
        %v1022 = vadd.f32 %v570, %v1021
        %v1023 = vpop.f32.mrb[0].mxu0
        %v1024 = vadd.f32 %v566, %v1023
        %v1025 = vpop.f32.mrb[0].mxu0
        %v1026 = vadd.f32 %v570, %v1025
        %1027 = vmatprep.mubr.bf16.mxu0 0
        %1028 = vmatmul.mubr.bf16.gmra.mrb[0].mxu0 %v716
        %v1029 = vpop.f32.mrb[0].mxu0
        %v1030 = vadd.f32 %v566, %v1029
        %v1031 = vpop.f32.mrb[0].mxu0
        %v1032 = vadd.f32 %v570, %v1031
        %v1033 = vpop.f32.mrb[0].mxu0
        %v1034 = vadd.f32 %v566, %v1033
        %v1035 = vpop.f32.mrb[0].mxu0
        %v1036 = vadd.f32 %v570, %v1035
        %1037 = vmatprep.mubr.bf16.mxu0 0
        %1038 = vmatmul.mubr.bf16.gmra.mrb[0].mxu0 %v717
        %v1039 = vpop.f32.mrb[0].mxu0
        %v1040 = vadd.f32 %v566, %v1039
        %v1041 = vpop.f32.mrb[0].mxu0
        %v1042 = vadd.f32 %v570, %v1041
        %v1043 = vpop.f32.mrb[0].mxu0
        %v1044 = vadd.f32 %v566, %v1043
        %v1045 = vpop.f32.mrb[0].mxu0
        %v1046 = vadd.f32 %v570, %v1045
        %1047 = vmatprep.mubr.bf16.mxu0 0
        %1048 = vmatmul.mubr.bf16.gmra.mrb[0].mxu0 %v718
        %v1049 = vpop.f32.mrb[0].mxu0
        %v1050 = vadd.f32 %v566, %v1049
        %v1051 = vpop.f32.mrb[0].mxu0
        %v1052 = vadd.f32 %v570, %v1051
        %v1053 = vpop.f32.mrb[0].mxu0
        %v1054 = vadd.f32 %v566, %v1053
        %v1055 = vpop.f32.mrb[0].mxu0
        %v1056 = vadd.f32 %v570, %v1055
        %1057 = vmatprep.mubr.bf16.mxu0 0
        %1058 = vmatmul.mubr.bf16.gmra.mrb[0].mxu0 %v719
        %v1059 = vpop.f32.mrb[0].mxu0
        %v1060 = vadd.f32 %v566, %v1059
        %v1061 = vpop.f32.mrb[0].mxu0
        %v1062 = vadd.f32 %v570, %v1061
        %v1063 = vpop.f32.mrb[0].mxu0
        %v1064 = vadd.f32 %v566, %v1063
        %v1065 = vpop.f32.mrb[0].mxu0
        %v1066 = vadd.f32 %v570, %v1065
        %1067 = vmatprep.mubr.bf16.mxu0 0
        %1068 = vmatmul.mubr.bf16.gmra.mrb[0].mxu0 %v720
        %v1069 = vpop.f32.mrb[0].mxu0
        %v1070 = vadd.f32 %v566, %v1069
        %v1071 = vpop.f32.mrb[0].mxu0
        %v1072 = vadd.f32 %v570, %v1071
        %v1073 = vpop.f32.mrb[0].mxu0
        %v1074 = vadd.f32 %v566, %v1073
        %v1075 = vpop.f32.mrb[0].mxu0
        %v1076 = vadd.f32 %v570, %v1075
        %1077 = vmatprep.mubr.bf16.mxu0 0
        %1078 = vmatmul.mubr.bf16.gmra.mrb[0].mxu0 %v721
        %v1079 = vpop.f32.mrb[0].mxu0
        %v1080 = vadd.f32 %v566, %v1079
        %v1081 = vpop.f32.mrb[0].mxu0
        %v1082 = vadd.f32 %v570, %v1081
        %v1083 = vpop.f32.mrb[0].mxu0
        %v1084 = vadd.f32 %v566, %v1083
        %v1085 = vpop.f32.mrb[0].mxu0
        %v1086 = vadd.f32 %v570, %v1085
        %1087 = vmatprep.mubr.bf16.mxu0 0
        %1088 = vmatmul.mubr.bf16.gmra.mrb[0].mxu0 %v722
        %v1089 = vpop.f32.mrb[0].mxu0
        %v1090 = vadd.f32 %v566, %v1089
        %v1091 = vpop.f32.mrb[0].mxu0
        %v1092 = vadd.f32 %v570, %v1091
        %v1093 = vpop.f32.mrb[0].mxu0
        %v1094 = vadd.f32 %v566, %v1093
        %v1095 = vpop.f32.mrb[0].mxu0
        %v1096 = vadd.f32 %v570, %v1095
        %1097 = vmatprep.mubr.bf16.mxu0 0
        %1098 = vmatmul.mubr.bf16.gmra.mrb[0].mxu0 %v723
        %v1099 = vpop.f32.mrb[0].mxu0
        %v1100 = vadd.f32 %v566, %v1099
        %v1101 = vpop.f32.mrb[0].mxu0
        %v1102 = vadd.f32 %v570, %v1101
        %v1103 = vpop.f32.mrb[0].mxu0
        %v1104 = vadd.f32 %v566, %v1103
        %v1105 = vpop.f32.mrb[0].mxu0
        %v1106 = vadd.f32 %v570, %v1105
        %1107 = vmatprep.mubr.bf16.mxu0 0
        %1108 = vmatmul.mubr.bf16.gmra.mrb[0].mxu0 %v724
        %v1109 = vpop.f32.mrb[0].mxu0
        %v1110 = vadd.f32 %v566, %v1109
        %v1111 = vpop.f32.mrb[0].mxu0
        %v1112 = vadd.f32 %v570, %v1111
        %v1113 = vpop.f32.mrb[0].mxu0
        %v1114 = vadd.f32 %v566, %v1113
        %v1115 = vpop.f32.mrb[0].mxu0
        %v1116 = vadd.f32 %v570, %v1115
        %1117 = vmatprep.mubr.bf16.mxu0 0
        %1118 = vmatmul.mubr.bf16.gmra.mrb[0].mxu0 %v725
        %v1119 = vpop.f32.mrb[0].mxu0
        %v1120 = vadd.f32 %v566, %v1119
        %v1121 = vpop.f32.mrb[0].mxu0
        %v1122 = vadd.f32 %v570, %v1121
        %v1123 = vpop.f32.mrb[0].mxu0
        %v1124 = vadd.f32 %v566, %v1123
        %v1125 = vpop.f32.mrb[0].mxu0
        %v1126 = vadd.f32 %v570, %v1125
        %1127 = vmatprep.mubr.bf16.mxu0 0
        %1128 = vmatmul.mubr.bf16.gmra.mrb[0].mxu0 %v726
        %v1129 = vpop.f32.mrb[0].mxu0
        %v1130 = vadd.f32 %v566, %v1129
        %v1131 = vpop.f32.mrb[0].mxu0
        %v1132 = vadd.f32 %v570, %v1131
        %v1133 = vpop.f32.mrb[0].mxu0
        %v1134 = vadd.f32 %v566, %v1133
        %v1135 = vpop.f32.mrb[0].mxu0
        %v1136 = vadd.f32 %v570, %v1135
        %1137 = vmatprep.mubr.bf16.mxu0 0
        %1138 = vmatmul.mubr.bf16.gmra.mrb[0].mxu0 %v727
        %v1139 = vpop.f32.mrb[0].mxu0
        %v1140 = vadd.f32 %v566, %v1139
        %v1141 = vpop.f32.mrb[0].mxu0
        %v1142 = vadd.f32 %v570, %v1141
        %v1143 = vpop.f32.mrb[0].mxu0
        %v1144 = vadd.f32 %v566, %v1143
        %v1145 = vpop.f32.mrb[0].mxu0
        %v1146 = vadd.f32 %v570, %v1145
        %1147 = vmatprep.mubr.bf16.mxu0 0
        %1148 = vmatmul.mubr.bf16.gmra.mrb[0].mxu0 %v728
        %v1149 = vpop.f32.mrb[0].mxu0
        %v1150 = vadd.f32 %v566, %v1149
        %v1151 = vpop.f32.mrb[0].mxu0
        %v1152 = vadd.f32 %v570, %v1151
        %v1153 = vpop.f32.mrb[0].mxu0
        %v1154 = vadd.f32 %v566, %v1153
        %v1155 = vpop.f32.mrb[0].mxu0
        %v1156 = vadd.f32 %v570, %v1155
        %1157 = vmatprep.mubr.bf16.mxu0 0
        %1158 = vmatmul.mubr.bf16.gmra.mrb[0].mxu0 %v729
        %v1159 = vpop.f32.mrb[0].mxu0
        %v1160 = vadd.f32 %v566, %v1159
        %v1161 = vpop.f32.mrb[0].mxu0
        %v1162 = vadd.f32 %v570, %v1161
        %v1163 = vpop.f32.mrb[0].mxu0
        %v1164 = vadd.f32 %v566, %v1163
        %v1165 = vpop.f32.mrb[0].mxu0
        %v1166 = vadd.f32 %v570, %v1165
        %1167 = vmatprep.mubr.bf16.mxu0 0
        %1168 = vmatmul.mubr.bf16.gmra.mrb[0].mxu0 %v730
        %v1169 = vpop.f32.mrb[0].mxu0
        %v1170 = vadd.f32 %v566, %v1169
        %v1171 = vpop.f32.mrb[0].mxu0
        %v1172 = vadd.f32 %v570, %v1171
        %v1173 = vpop.f32.mrb[0].mxu0
        %v1174 = vadd.f32 %v566, %v1173
        %v1175 = vpop.f32.mrb[0].mxu0
        %v1176 = vadd.f32 %v570, %v1175
        %1177 = vmatprep.mubr.bf16.mxu0 0
        %1178 = vmatmul.mubr.bf16.gmra.mrb[0].mxu0 %v731
        %v1179 = vpop.f32.mrb[0].mxu0
        %v1180 = vadd.f32 %v566, %v1179
        %v1181 = vpop.f32.mrb[0].mxu0
        %v1182 = vadd.f32 %v570, %v1181
        %v1183 = vpop.f32.mrb[0].mxu0
        %v1184 = vadd.f32 %v566, %v1183
        %v1185 = vpop.f32.mrb[0].mxu0
        %v1186 = vadd.f32 %v570, %v1185
        %1187 = vmatprep.mubr.bf16.mxu0 0
        %1188 = vmatmul.mubr.bf16.gmra.mrb[0].mxu0 %v732
        %v1189 = vpop.f32.mrb[0].mxu0
        %v1190 = vadd.f32 %v566, %v1189
        %v1191 = vpop.f32.mrb[0].mxu0
        %v1192 = vadd.f32 %v570, %v1191
        %v1193 = vpop.f32.mrb[0].mxu0
        %v1194 = vadd.f32 %v566, %v1193
        %v1195 = vpop.f32.mrb[0].mxu0
        %v1196 = vadd.f32 %v570, %v1195
        %1197 = vdwg.mxu0
        %v1198 = vmax.f32 %v880, 0.0
        %v1199 = vmax.f32 %v882, 0.0
        %v1200 = vmax.f32 %v884, 0.0
        %v1201 = vmax.f32 %v886, 0.0
        %v1202 = vmax.f32 %v890, 0.0
        %v1203 = vmax.f32 %v892, 0.0
        %v1204 = vmax.f32 %v894, 0.0
        %v1205 = vmax.f32 %v896, 0.0
        %v1206 = vmax.f32 %v900, 0.0
        %v1207 = vmax.f32 %v902, 0.0
        %v1208 = vmax.f32 %v904, 0.0
        %v1209 = vmax.f32 %v906, 0.0
        %v1210 = vmax.f32 %v910, 0.0
        %v1211 = vmax.f32 %v912, 0.0
        %v1212 = vmax.f32 %v914, 0.0
        %v1213 = vmax.f32 %v916, 0.0
        %v1214 = vmax.f32 %v920, 0.0
        %v1215 = vmax.f32 %v922, 0.0
        %v1216 = vmax.f32 %v924, 0.0
        %v1217 = vmax.f32 %v926, 0.0
        %v1218 = vmax.f32 %v930, 0.0
        %v1219 = vmax.f32 %v932, 0.0
        %v1220 = vmax.f32 %v934, 0.0
        %v1221 = vmax.f32 %v936, 0.0
        %v1222 = vmax.f32 %v940, 0.0
        %v1223 = vmax.f32 %v942, 0.0
        %v1224 = vmax.f32 %v944, 0.0
        %v1225 = vmax.f32 %v946, 0.0
        %v1226 = vmax.f32 %v950, 0.0
        %v1227 = vmax.f32 %v952, 0.0
        %v1228 = vmax.f32 %v954, 0.0
        %v1229 = vmax.f32 %v956, 0.0
        %v1230 = vmax.f32 %v960, 0.0
        %v1231 = vmax.f32 %v962, 0.0
        %v1232 = vmax.f32 %v964, 0.0
        %v1233 = vmax.f32 %v966, 0.0
        %v1234 = vmax.f32 %v970, 0.0
        %v1235 = vmax.f32 %v972, 0.0
        %v1236 = vmax.f32 %v974, 0.0
        %v1237 = vmax.f32 %v976, 0.0
        %v1238 = vmax.f32 %v980, 0.0
        %v1239 = vmax.f32 %v982, 0.0
        %v1240 = vmax.f32 %v984, 0.0
        %v1241 = vmax.f32 %v986, 0.0
        %v1242 = vmax.f32 %v990, 0.0
        %v1243 = vmax.f32 %v992, 0.0
        %v1244 = vmax.f32 %v994, 0.0
        %v1245 = vmax.f32 %v996, 0.0
        %v1246 = vmax.f32 %v1000, 0.0
        %v1247 = vmax.f32 %v1002, 0.0
        %v1248 = vmax.f32 %v1004, 0.0
        %v1249 = vmax.f32 %v1006, 0.0
        %v1250 = vmax.f32 %v1010, 0.0
        %v1251 = vmax.f32 %v1012, 0.0
        %v1252 = vmax.f32 %v1014, 0.0
        %v1253 = vmax.f32 %v1016, 0.0
        %v1254 = vmax.f32 %v1020, 0.0
        %v1255 = vmax.f32 %v1022, 0.0
        %v1256 = vmax.f32 %v1024, 0.0
        %v1257 = vmax.f32 %v1026, 0.0
        %v1258 = vmax.f32 %v1030, 0.0
        %v1259 = vmax.f32 %v1032, 0.0
        %v1260 = vmax.f32 %v1034, 0.0
        %v1261 = vmax.f32 %v1036, 0.0
        %v1262 = vmax.f32 %v1040, 0.0
        %v1263 = vmax.f32 %v1042, 0.0
        %v1264 = vmax.f32 %v1044, 0.0
        %v1265 = vmax.f32 %v1046, 0.0
        %v1266 = vmax.f32 %v1050, 0.0
        %v1267 = vmax.f32 %v1052, 0.0
        %v1268 = vmax.f32 %v1054, 0.0
        %v1269 = vmax.f32 %v1056, 0.0
        %v1270 = vmax.f32 %v1060, 0.0
        %v1271 = vmax.f32 %v1062, 0.0
        %v1272 = vmax.f32 %v1064, 0.0
        %v1273 = vmax.f32 %v1066, 0.0
        %v1274 = vmax.f32 %v1070, 0.0
        %v1275 = vmax.f32 %v1072, 0.0
        %v1276 = vmax.f32 %v1074, 0.0
        %v1277 = vmax.f32 %v1076, 0.0
        %v1278 = vmax.f32 %v1080, 0.0
        %v1279 = vmax.f32 %v1082, 0.0
        %v1280 = vmax.f32 %v1084, 0.0
        %v1281 = vmax.f32 %v1086, 0.0
        %v1282 = vmax.f32 %v1090, 0.0
        %v1283 = vmax.f32 %v1092, 0.0
        %v1284 = vmax.f32 %v1094, 0.0
        %v1285 = vmax.f32 %v1096, 0.0
        %v1286 = vmax.f32 %v1100, 0.0
        %v1287 = vmax.f32 %v1102, 0.0
        %v1288 = vmax.f32 %v1104, 0.0
        %v1289 = vmax.f32 %v1106, 0.0
        %v1290 = vmax.f32 %v1110, 0.0
        %v1291 = vmax.f32 %v1112, 0.0
        %v1292 = vmax.f32 %v1114, 0.0
        %v1293 = vmax.f32 %v1116, 0.0
        %v1294 = vmax.f32 %v1120, 0.0
        %v1295 = vmax.f32 %v1122, 0.0
        %v1296 = vmax.f32 %v1124, 0.0
        %v1297 = vmax.f32 %v1126, 0.0
        %v1298 = vmax.f32 %v1130, 0.0
        %v1299 = vmax.f32 %v1132, 0.0
        %v1300 = vmax.f32 %v1134, 0.0
        %v1301 = vmax.f32 %v1136, 0.0
        %v1302 = vmax.f32 %v1140, 0.0
        %v1303 = vmax.f32 %v1142, 0.0
        %v1304 = vmax.f32 %v1144, 0.0
        %v1305 = vmax.f32 %v1146, 0.0
        %v1306 = vmax.f32 %v1150, 0.0
        %v1307 = vmax.f32 %v1152, 0.0
        %v1308 = vmax.f32 %v1154, 0.0
        %v1309 = vmax.f32 %v1156, 0.0
        %v1310 = vmax.f32 %v1160, 0.0
        %v1311 = vmax.f32 %v1162, 0.0
        %v1312 = vmax.f32 %v1164, 0.0
        %v1313 = vmax.f32 %v1166, 0.0
        %v1314 = vmax.f32 %v1170, 0.0
        %v1315 = vmax.f32 %v1172, 0.0
        %v1316 = vmax.f32 %v1174, 0.0
        %v1317 = vmax.f32 %v1176, 0.0
        %v1318 = vmax.f32 %v1180, 0.0
        %v1319 = vmax.f32 %v1182, 0.0
        %v1320 = vmax.f32 %v1184, 0.0
        %v1321 = vmax.f32 %v1186, 0.0
        %v1322 = vmax.f32 %v1190, 0.0
        %v1323 = vmax.f32 %v1192, 0.0
        %v1324 = vmax.f32 %v1194, 0.0
        %v1325 = vmax.f32 %v1196, 0.0
        %v1326 = vpack.c.bf16 %v1200, %v1198
        %v1327 = vpack.c.bf16 %v1201, %v1199
        %v1328 = vpack.c.bf16 %v1204, %v1202
        %v1329 = vpack.c.bf16 %v1205, %v1203
        %v1330 = vpack.c.bf16 %v1208, %v1206
        %v1331 = vpack.c.bf16 %v1209, %v1207
        %v1332 = vpack.c.bf16 %v1212, %v1210
        %v1333 = vpack.c.bf16 %v1213, %v1211
        %v1334 = vpack.c.bf16 %v1216, %v1214
        %v1335 = vpack.c.bf16 %v1217, %v1215
        %v1336 = vpack.c.bf16 %v1220, %v1218
        %v1337 = vpack.c.bf16 %v1221, %v1219
        %v1338 = vpack.c.bf16 %v1224, %v1222
        %v1339 = vpack.c.bf16 %v1225, %v1223
        %v1340 = vpack.c.bf16 %v1228, %v1226
        %v1341 = vpack.c.bf16 %v1229, %v1227
        %v1342 = vpack.c.bf16 %v1232, %v1230
        %v1343 = vpack.c.bf16 %v1233, %v1231
        %v1344 = vpack.c.bf16 %v1236, %v1234
        %v1345 = vpack.c.bf16 %v1237, %v1235
        %v1346 = vpack.c.bf16 %v1240, %v1238
        %v1347 = vpack.c.bf16 %v1241, %v1239
        %v1348 = vpack.c.bf16 %v1244, %v1242
        %v1349 = vpack.c.bf16 %v1245, %v1243
        %v1350 = vpack.c.bf16 %v1248, %v1246
        %v1351 = vpack.c.bf16 %v1249, %v1247
        %v1352 = vpack.c.bf16 %v1252, %v1250
        %v1353 = vpack.c.bf16 %v1253, %v1251
        %v1354 = vpack.c.bf16 %v1256, %v1254
        %v1355 = vpack.c.bf16 %v1257, %v1255
        %v1356 = vpack.c.bf16 %v1260, %v1258
        %v1357 = vpack.c.bf16 %v1261, %v1259
        %v1358 = vpack.c.bf16 %v1264, %v1262
        %v1359 = vpack.c.bf16 %v1265, %v1263
        %v1360 = vpack.c.bf16 %v1268, %v1266
        %v1361 = vpack.c.bf16 %v1269, %v1267
        %v1362 = vpack.c.bf16 %v1272, %v1270
        %v1363 = vpack.c.bf16 %v1273, %v1271
        %v1364 = vpack.c.bf16 %v1276, %v1274
        %v1365 = vpack.c.bf16 %v1277, %v1275
        %v1366 = vpack.c.bf16 %v1280, %v1278
        %v1367 = vpack.c.bf16 %v1281, %v1279
        %v1368 = vpack.c.bf16 %v1284, %v1282
        %v1369 = vpack.c.bf16 %v1285, %v1283
        %v1370 = vpack.c.bf16 %v1288, %v1286
        %v1371 = vpack.c.bf16 %v1289, %v1287
        %v1372 = vpack.c.bf16 %v1292, %v1290
        %v1373 = vpack.c.bf16 %v1293, %v1291
        %v1374 = vpack.c.bf16 %v1296, %v1294
        %v1375 = vpack.c.bf16 %v1297, %v1295
        %v1376 = vpack.c.bf16 %v1300, %v1298
        %v1377 = vpack.c.bf16 %v1301, %v1299
        %v1378 = vpack.c.bf16 %v1304, %v1302
        %v1379 = vpack.c.bf16 %v1305, %v1303
        %v1380 = vpack.c.bf16 %v1308, %v1306
        %v1381 = vpack.c.bf16 %v1309, %v1307
        %v1382 = vpack.c.bf16 %v1312, %v1310
        %v1383 = vpack.c.bf16 %v1313, %v1311
        %v1384 = vpack.c.bf16 %v1316, %v1314
        %v1385 = vpack.c.bf16 %v1317, %v1315
        %v1386 = vpack.c.bf16 %v1320, %v1318
        %v1387 = vpack.c.bf16 %v1321, %v1319
        %v1388 = vpack.c.bf16 %v1324, %v1322
        %v1389 = vpack.c.bf16 %v1325, %v1323
        %v1390 = vld [vmem:[#allocation7] sm:$0xff]
        %v1391 = vld [vmem:[#allocation7 + $0x8] sm:$0xff]
        %v1392 = vld [vmem:[#allocation7 + $0x10] sm:$0xff]
        %v1393 = vld [vmem:[#allocation7 + $0x18] sm:$0xff]
        %v1394 = vld [vmem:[#allocation7 + $0x20] sm:$0xff]
        %v1395 = vld [vmem:[#allocation7 + $0x28] sm:$0xff]
        %v1396 = vld [vmem:[#allocation7 + $0x30] sm:$0xff]
        %v1397 = vld [vmem:[#allocation7 + $0x38] sm:$0xff]
        %v1398 = vld [vmem:[#allocation7 + $0x40] sm:$0xff]
        %v1399 = vld [vmem:[#allocation7 + $0x48] sm:$0xff]
        %v1400 = vld [vmem:[#allocation7 + $0x50] sm:$0xff]
        %v1401 = vld [vmem:[#allocation7 + $0x58] sm:$0xff]
        %v1402 = vld [vmem:[#allocation7 + $0x60] sm:$0xff]
        %v1403 = vld [vmem:[#allocation7 + $0x68] sm:$0xff]
        %v1404 = vld [vmem:[#allocation7 + $0x70] sm:$0xff]
        %v1405 = vld [vmem:[#allocation7 + $0x78] sm:$0xff]
        %v1406 = vld [vmem:[#allocation7 + $0x80] sm:$0xff]
        %v1407 = vld [vmem:[#allocation7 + $0x88] sm:$0xff]
        %v1408 = vld [vmem:[#allocation7 + $0x90] sm:$0xff]
        %v1409 = vld [vmem:[#allocation7 + $0x98] sm:$0xff]
        %v1410 = vld [vmem:[#allocation7 + $0xa0] sm:$0xff]
        %v1411 = vld [vmem:[#allocation7 + $0xa8] sm:$0xff]
        %v1412 = vld [vmem:[#allocation7 + $0xb0] sm:$0xff]
        %v1413 = vld [vmem:[#allocation7 + $0xb8] sm:$0xff]
        %v1414 = vld [vmem:[#allocation7 + $0xc0] sm:$0xff]
        %v1415 = vld [vmem:[#allocation7 + $0xc8] sm:$0xff]
        %v1416 = vld [vmem:[#allocation7 + $0xd0] sm:$0xff]
        %v1417 = vld [vmem:[#allocation7 + $0xd8] sm:$0xff]
        %v1418 = vld [vmem:[#allocation7 + $0xe0] sm:$0xff]
        %v1419 = vld [vmem:[#allocation7 + $0xe8] sm:$0xff]
        %v1420 = vld [vmem:[#allocation7 + $0xf0] sm:$0xff]
        %v1421 = vld [vmem:[#allocation7 + $0xf8] sm:$0xff]
        %v1422 = vld [vmem:[%s4] sm:$0x3]
        %v1424 = vlaneseq
        %v1425 = vshrl.u32 %v1424, 7
        %v1426 = vsub.s32 0, %v1425
        %v1427 = vrot.slane %v1422, %v1426
        %v1428 = vlaneseq
        %v1429 = vshrl.u32 %v1428, 7
        %v1430 = vsub.s32 1, %v1429
        %v1431 = vrot.slane %v1422, %v1430
        %v1466 = vunpack.c.l.b16 %v1390
        %v1467 = vunpack.c.h.b16 %v1390
        %v1468 = vunpack.c.l.b16 %v1391
        %v1469 = vunpack.c.h.b16 %v1391
        %v1470 = vunpack.c.l.b16 %v1392
        %v1471 = vunpack.c.h.b16 %v1392
        %v1472 = vunpack.c.l.b16 %v1393
        %v1473 = vunpack.c.h.b16 %v1393
        %v1474 = vunpack.c.l.b16 %v1394
        %v1475 = vunpack.c.h.b16 %v1394
        %v1476 = vunpack.c.l.b16 %v1395
        %v1477 = vunpack.c.h.b16 %v1395
        %v1478 = vunpack.c.l.b16 %v1396
        %v1479 = vunpack.c.h.b16 %v1396
        %v1480 = vunpack.c.l.b16 %v1397
        %v1481 = vunpack.c.h.b16 %v1397
        %v1482 = vunpack.c.l.b16 %v1398
        %v1483 = vunpack.c.h.b16 %v1398
        %v1484 = vunpack.c.l.b16 %v1399
        %v1485 = vunpack.c.h.b16 %v1399
        %v1486 = vunpack.c.l.b16 %v1400
        %v1487 = vunpack.c.h.b16 %v1400
        %v1488 = vunpack.c.l.b16 %v1401
        %v1489 = vunpack.c.h.b16 %v1401
        %v1490 = vunpack.c.l.b16 %v1402
        %v1491 = vunpack.c.h.b16 %v1402
        %v1492 = vunpack.c.l.b16 %v1403
        %v1493 = vunpack.c.h.b16 %v1403
        %v1494 = vunpack.c.l.b16 %v1404
        %v1495 = vunpack.c.h.b16 %v1404
        %v1496 = vunpack.c.l.b16 %v1405
        %v1497 = vunpack.c.h.b16 %v1405
        %v1498 = vunpack.c.l.b16 %v1406
        %v1499 = vunpack.c.h.b16 %v1406
        %v1500 = vunpack.c.l.b16 %v1407
        %v1501 = vunpack.c.h.b16 %v1407
        %v1502 = vunpack.c.l.b16 %v1408
        %v1503 = vunpack.c.h.b16 %v1408
        %v1504 = vunpack.c.l.b16 %v1409
        %v1505 = vunpack.c.h.b16 %v1409
        %v1506 = vunpack.c.l.b16 %v1410
        %v1507 = vunpack.c.h.b16 %v1410
        %v1508 = vunpack.c.l.b16 %v1411
        %v1509 = vunpack.c.h.b16 %v1411
        %v1510 = vunpack.c.l.b16 %v1412
        %v1511 = vunpack.c.h.b16 %v1412
        %v1512 = vunpack.c.l.b16 %v1413
        %v1513 = vunpack.c.h.b16 %v1413
        %v1514 = vunpack.c.l.b16 %v1414
        %v1515 = vunpack.c.h.b16 %v1414
        %v1516 = vunpack.c.l.b16 %v1415
        %v1517 = vunpack.c.h.b16 %v1415
        %v1518 = vunpack.c.l.b16 %v1416
        %v1519 = vunpack.c.h.b16 %v1416
        %v1520 = vunpack.c.l.b16 %v1417
        %v1521 = vunpack.c.h.b16 %v1417
        %v1522 = vunpack.c.l.b16 %v1418
        %v1523 = vunpack.c.h.b16 %v1418
        %v1524 = vunpack.c.l.b16 %v1419
        %v1525 = vunpack.c.h.b16 %v1419
        %v1526 = vunpack.c.l.b16 %v1420
        %v1527 = vunpack.c.h.b16 %v1420
        %v1528 = vunpack.c.l.b16 %v1421
        %v1529 = vunpack.c.h.b16 %v1421
        %v1530 = vpack.c.b16 %v1468, %v1466
        %v1531 = vpack.c.b16 %v1469, %v1467
        %v1532 = vpack.c.b16 %v1472, %v1470
        %v1533 = vpack.c.b16 %v1473, %v1471
        %v1534 = vpack.c.b16 %v1476, %v1474
        %v1535 = vpack.c.b16 %v1477, %v1475
        %v1536 = vpack.c.b16 %v1480, %v1478
        %v1537 = vpack.c.b16 %v1481, %v1479
        %v1538 = vpack.c.b16 %v1484, %v1482
        %v1539 = vpack.c.b16 %v1485, %v1483
        %v1540 = vpack.c.b16 %v1488, %v1486
        %v1541 = vpack.c.b16 %v1489, %v1487
        %v1542 = vpack.c.b16 %v1492, %v1490
        %v1543 = vpack.c.b16 %v1493, %v1491
        %v1544 = vpack.c.b16 %v1496, %v1494
        %v1545 = vpack.c.b16 %v1497, %v1495
        %v1546 = vpack.c.b16 %v1500, %v1498
        %v1547 = vpack.c.b16 %v1501, %v1499
        %v1548 = vpack.c.b16 %v1504, %v1502
        %v1549 = vpack.c.b16 %v1505, %v1503
        %v1550 = vpack.c.b16 %v1508, %v1506
        %v1551 = vpack.c.b16 %v1509, %v1507
        %v1552 = vpack.c.b16 %v1512, %v1510
        %v1553 = vpack.c.b16 %v1513, %v1511
        %v1554 = vpack.c.b16 %v1516, %v1514
        %v1555 = vpack.c.b16 %v1517, %v1515
        %v1556 = vpack.c.b16 %v1520, %v1518
        %v1557 = vpack.c.b16 %v1521, %v1519
        %v1558 = vpack.c.b16 %v1524, %v1522
        %v1559 = vpack.c.b16 %v1525, %v1523
        %v1560 = vpack.c.b16 %v1528, %v1526
        %v1561 = vpack.c.b16 %v1529, %v1527
        %1594 = vmatprep.subr.bf16.mxu0 %v1531
        %1595 = vmatpush1.bf16.msra.mxu0 %v1530
        %1596 = vmatprep.subr.bf16.mxu0 %v1533
        %1597 = vmatpush1.bf16.msra.mxu0 %v1532
        %1598 = vmatprep.subr.bf16.mxu0 %v1535
        %1599 = vmatpush1.bf16.msra.mxu0 %v1534
        %1600 = vmatprep.subr.bf16.mxu0 %v1537
        %1601 = vmatpush1.bf16.msra.mxu0 %v1536
        %1602 = vmatprep.subr.bf16.mxu0 %v1539
        %1603 = vmatpush1.bf16.msra.mxu0 %v1538
        %1604 = vmatprep.subr.bf16.mxu0 %v1541
        %1605 = vmatpush1.bf16.msra.mxu0 %v1540
        %1606 = vmatprep.subr.bf16.mxu0 %v1543
        %1607 = vmatpush1.bf16.msra.mxu0 %v1542
        %1608 = vmatprep.subr.bf16.mxu0 %v1545
        %1609 = vmatpush1.bf16.msra.mxu0 %v1544
        %1610 = vmatprep.subr.bf16.mxu0 %v1547
        %1611 = vmatpush1.bf16.msra.mxu0 %v1546
        %1612 = vmatprep.subr.bf16.mxu0 %v1549
        %1613 = vmatpush1.bf16.msra.mxu0 %v1548
        %1614 = vmatprep.subr.bf16.mxu0 %v1551
        %1615 = vmatpush1.bf16.msra.mxu0 %v1550
        %1616 = vmatprep.subr.bf16.mxu0 %v1553
        %1617 = vmatpush1.bf16.msra.mxu0 %v1552
        %1618 = vmatprep.subr.bf16.mxu0 %v1555
        %1619 = vmatpush1.bf16.msra.mxu0 %v1554
        %1620 = vmatprep.subr.bf16.mxu0 %v1557
        %1621 = vmatpush1.bf16.msra.mxu0 %v1556
        %1622 = vmatprep.subr.bf16.mxu0 %v1559
        %1623 = vmatpush1.bf16.msra.mxu0 %v1558
        %1624 = vmatprep.subr.bf16.mxu0 %v1561
        %1625 = vmatpush1.bf16.msra.mxu0 %v1560
        %1626 = vmatprep.mubr.bf16.mxu0 %v1327
        %1627 = vmatmul.mubr.bf16.gmra.mrb[0].mxu0 %v1326
        %v1628 = vpop.f32.mrb[0].mxu0
        %v1629 = vadd.f32 %v1427, %v1628
        %v1630 = vpop.f32.mrb[0].mxu0
        %v1631 = vadd.f32 %v1431, %v1630
        %v1632 = vpop.f32.mrb[0].mxu0
        %v1633 = vadd.f32 %v1427, %v1632
        %v1634 = vpop.f32.mrb[0].mxu0
        %v1635 = vadd.f32 %v1431, %v1634
        %1636 = vmatprep.mubr.bf16.mxu0 %v1329
        %1637 = vmatmul.mubr.bf16.gmra.mrb[0].mxu0 %v1328
        %v1638 = vpop.f32.mrb[0].mxu0
        %v1639 = vadd.f32 %v1427, %v1638
        %v1640 = vpop.f32.mrb[0].mxu0
        %v1641 = vadd.f32 %v1431, %v1640
        %v1642 = vpop.f32.mrb[0].mxu0
        %v1643 = vadd.f32 %v1427, %v1642
        %v1644 = vpop.f32.mrb[0].mxu0
        %v1645 = vadd.f32 %v1431, %v1644
        %1646 = vmatprep.mubr.bf16.mxu0 %v1331
        %1647 = vmatmul.mubr.bf16.gmra.mrb[0].mxu0 %v1330
        %v1648 = vpop.f32.mrb[0].mxu0
        %v1649 = vadd.f32 %v1427, %v1648
        %v1650 = vpop.f32.mrb[0].mxu0
        %v1651 = vadd.f32 %v1431, %v1650
        %v1652 = vpop.f32.mrb[0].mxu0
        %v1653 = vadd.f32 %v1427, %v1652
        %v1654 = vpop.f32.mrb[0].mxu0
        %v1655 = vadd.f32 %v1431, %v1654
        %1656 = vmatprep.mubr.bf16.mxu0 %v1333
        %1657 = vmatmul.mubr.bf16.gmra.mrb[0].mxu0 %v1332
        %v1658 = vpop.f32.mrb[0].mxu0
        %v1659 = vadd.f32 %v1427, %v1658
        %v1660 = vpop.f32.mrb[0].mxu0
        %v1661 = vadd.f32 %v1431, %v1660
        %v1662 = vpop.f32.mrb[0].mxu0
        %v1663 = vadd.f32 %v1427, %v1662
        %v1664 = vpop.f32.mrb[0].mxu0
        %v1665 = vadd.f32 %v1431, %v1664
        %1666 = vmatprep.mubr.bf16.mxu0 %v1335
        %1667 = vmatmul.mubr.bf16.gmra.mrb[0].mxu0 %v1334
        %v1668 = vpop.f32.mrb[0].mxu0
        %v1669 = vadd.f32 %v1427, %v1668
        %v1670 = vpop.f32.mrb[0].mxu0
        %v1671 = vadd.f32 %v1431, %v1670
        %v1672 = vpop.f32.mrb[0].mxu0
        %v1673 = vadd.f32 %v1427, %v1672
        %v1674 = vpop.f32.mrb[0].mxu0
        %v1675 = vadd.f32 %v1431, %v1674
        %1676 = vmatprep.mubr.bf16.mxu0 %v1337
        %1677 = vmatmul.mubr.bf16.gmra.mrb[0].mxu0 %v1336
        %v1678 = vpop.f32.mrb[0].mxu0
        %v1679 = vadd.f32 %v1427, %v1678
        %v1680 = vpop.f32.mrb[0].mxu0
        %v1681 = vadd.f32 %v1431, %v1680
        %v1682 = vpop.f32.mrb[0].mxu0
        %v1683 = vadd.f32 %v1427, %v1682
        %v1684 = vpop.f32.mrb[0].mxu0
        %v1685 = vadd.f32 %v1431, %v1684
        %1686 = vmatprep.mubr.bf16.mxu0 %v1339
        %1687 = vmatmul.mubr.bf16.gmra.mrb[0].mxu0 %v1338
        %v1688 = vpop.f32.mrb[0].mxu0
        %v1689 = vadd.f32 %v1427, %v1688
        %v1690 = vpop.f32.mrb[0].mxu0
        %v1691 = vadd.f32 %v1431, %v1690
        %v1692 = vpop.f32.mrb[0].mxu0
        %v1693 = vadd.f32 %v1427, %v1692
        %v1694 = vpop.f32.mrb[0].mxu0
        %v1695 = vadd.f32 %v1431, %v1694
        %1696 = vmatprep.mubr.bf16.mxu0 %v1341
        %1697 = vmatmul.mubr.bf16.gmra.mrb[0].mxu0 %v1340
        %v1698 = vpop.f32.mrb[0].mxu0
        %v1699 = vadd.f32 %v1427, %v1698
        %v1700 = vpop.f32.mrb[0].mxu0
        %v1701 = vadd.f32 %v1431, %v1700
        %v1702 = vpop.f32.mrb[0].mxu0
        %v1703 = vadd.f32 %v1427, %v1702
        %v1704 = vpop.f32.mrb[0].mxu0
        %v1705 = vadd.f32 %v1431, %v1704
        %1706 = vmatprep.mubr.bf16.mxu0 %v1343
        %1707 = vmatmul.mubr.bf16.gmra.mrb[0].mxu0 %v1342
        %v1708 = vpop.f32.mrb[0].mxu0
        %v1709 = vadd.f32 %v1427, %v1708
        %v1710 = vpop.f32.mrb[0].mxu0
        %v1711 = vadd.f32 %v1431, %v1710
        %v1712 = vpop.f32.mrb[0].mxu0
        %v1713 = vadd.f32 %v1427, %v1712
        %v1714 = vpop.f32.mrb[0].mxu0
        %v1715 = vadd.f32 %v1431, %v1714
        %1716 = vmatprep.mubr.bf16.mxu0 %v1345
        %1717 = vmatmul.mubr.bf16.gmra.mrb[0].mxu0 %v1344
        %v1718 = vpop.f32.mrb[0].mxu0
        %v1719 = vadd.f32 %v1427, %v1718
        %v1720 = vpop.f32.mrb[0].mxu0
        %v1721 = vadd.f32 %v1431, %v1720
        %v1722 = vpop.f32.mrb[0].mxu0
        %v1723 = vadd.f32 %v1427, %v1722
        %v1724 = vpop.f32.mrb[0].mxu0
        %v1725 = vadd.f32 %v1431, %v1724
        %1726 = vmatprep.mubr.bf16.mxu0 %v1347
        %1727 = vmatmul.mubr.bf16.gmra.mrb[0].mxu0 %v1346
        %v1728 = vpop.f32.mrb[0].mxu0
        %v1729 = vadd.f32 %v1427, %v1728
        %v1730 = vpop.f32.mrb[0].mxu0
        %v1731 = vadd.f32 %v1431, %v1730
        %v1732 = vpop.f32.mrb[0].mxu0
        %v1733 = vadd.f32 %v1427, %v1732
        %v1734 = vpop.f32.mrb[0].mxu0
        %v1735 = vadd.f32 %v1431, %v1734
        %1736 = vmatprep.mubr.bf16.mxu0 %v1349
        %1737 = vmatmul.mubr.bf16.gmra.mrb[0].mxu0 %v1348
        %v1738 = vpop.f32.mrb[0].mxu0
        %v1739 = vadd.f32 %v1427, %v1738
        %v1740 = vpop.f32.mrb[0].mxu0
        %v1741 = vadd.f32 %v1431, %v1740
        %v1742 = vpop.f32.mrb[0].mxu0
        %v1743 = vadd.f32 %v1427, %v1742
        %v1744 = vpop.f32.mrb[0].mxu0
        %v1745 = vadd.f32 %v1431, %v1744
        %1746 = vmatprep.mubr.bf16.mxu0 %v1351
        %1747 = vmatmul.mubr.bf16.gmra.mrb[0].mxu0 %v1350
        %v1748 = vpop.f32.mrb[0].mxu0
        %v1749 = vadd.f32 %v1427, %v1748
        %v1750 = vpop.f32.mrb[0].mxu0
        %v1751 = vadd.f32 %v1431, %v1750
        %v1752 = vpop.f32.mrb[0].mxu0
        %v1753 = vadd.f32 %v1427, %v1752
        %v1754 = vpop.f32.mrb[0].mxu0
        %v1755 = vadd.f32 %v1431, %v1754
        %1756 = vmatprep.mubr.bf16.mxu0 %v1353
        %1757 = vmatmul.mubr.bf16.gmra.mrb[0].mxu0 %v1352
        %v1758 = vpop.f32.mrb[0].mxu0
        %v1759 = vadd.f32 %v1427, %v1758
        %v1760 = vpop.f32.mrb[0].mxu0
        %v1761 = vadd.f32 %v1431, %v1760
        %v1762 = vpop.f32.mrb[0].mxu0
        %v1763 = vadd.f32 %v1427, %v1762
        %v1764 = vpop.f32.mrb[0].mxu0
        %v1765 = vadd.f32 %v1431, %v1764
        %1766 = vmatprep.mubr.bf16.mxu0 %v1355
        %1767 = vmatmul.mubr.bf16.gmra.mrb[0].mxu0 %v1354
        %v1768 = vpop.f32.mrb[0].mxu0
        %v1769 = vadd.f32 %v1427, %v1768
        %v1770 = vpop.f32.mrb[0].mxu0
        %v1771 = vadd.f32 %v1431, %v1770
        %v1772 = vpop.f32.mrb[0].mxu0
        %v1773 = vadd.f32 %v1427, %v1772
        %v1774 = vpop.f32.mrb[0].mxu0
        %v1775 = vadd.f32 %v1431, %v1774
        %1776 = vmatprep.mubr.bf16.mxu0 %v1357
        %1777 = vmatmul.mubr.bf16.gmra.mrb[0].mxu0 %v1356
        %v1778 = vpop.f32.mrb[0].mxu0
        %v1779 = vadd.f32 %v1427, %v1778
        %v1780 = vpop.f32.mrb[0].mxu0
        %v1781 = vadd.f32 %v1431, %v1780
        %v1782 = vpop.f32.mrb[0].mxu0
        %v1783 = vadd.f32 %v1427, %v1782
        %v1784 = vpop.f32.mrb[0].mxu0
        %v1785 = vadd.f32 %v1431, %v1784
        %1786 = vmatprep.mubr.bf16.mxu0 %v1359
        %1787 = vmatmul.mubr.bf16.gmra.mrb[0].mxu0 %v1358
        %v1788 = vpop.f32.mrb[0].mxu0
        %v1789 = vadd.f32 %v1427, %v1788
        %v1790 = vpop.f32.mrb[0].mxu0
        %v1791 = vadd.f32 %v1431, %v1790
        %v1792 = vpop.f32.mrb[0].mxu0
        %v1793 = vadd.f32 %v1427, %v1792
        %v1794 = vpop.f32.mrb[0].mxu0
        %v1795 = vadd.f32 %v1431, %v1794
        %1796 = vmatprep.mubr.bf16.mxu0 %v1361
        %1797 = vmatmul.mubr.bf16.gmra.mrb[0].mxu0 %v1360
        %v1798 = vpop.f32.mrb[0].mxu0
        %v1799 = vadd.f32 %v1427, %v1798
        %v1800 = vpop.f32.mrb[0].mxu0
        %v1801 = vadd.f32 %v1431, %v1800
        %v1802 = vpop.f32.mrb[0].mxu0
        %v1803 = vadd.f32 %v1427, %v1802
        %v1804 = vpop.f32.mrb[0].mxu0
        %v1805 = vadd.f32 %v1431, %v1804
        %1806 = vmatprep.mubr.bf16.mxu0 %v1363
        %1807 = vmatmul.mubr.bf16.gmra.mrb[0].mxu0 %v1362
        %v1808 = vpop.f32.mrb[0].mxu0
        %v1809 = vadd.f32 %v1427, %v1808
        %v1810 = vpop.f32.mrb[0].mxu0
        %v1811 = vadd.f32 %v1431, %v1810
        %v1812 = vpop.f32.mrb[0].mxu0
        %v1813 = vadd.f32 %v1427, %v1812
        %v1814 = vpop.f32.mrb[0].mxu0
        %v1815 = vadd.f32 %v1431, %v1814
        %1816 = vmatprep.mubr.bf16.mxu0 %v1365
        %1817 = vmatmul.mubr.bf16.gmra.mrb[0].mxu0 %v1364
        %v1818 = vpop.f32.mrb[0].mxu0
        %v1819 = vadd.f32 %v1427, %v1818
        %v1820 = vpop.f32.mrb[0].mxu0
        %v1821 = vadd.f32 %v1431, %v1820
        %v1822 = vpop.f32.mrb[0].mxu0
        %v1823 = vadd.f32 %v1427, %v1822
        %v1824 = vpop.f32.mrb[0].mxu0
        %v1825 = vadd.f32 %v1431, %v1824
        %1826 = vmatprep.mubr.bf16.mxu0 %v1367
        %1827 = vmatmul.mubr.bf16.gmra.mrb[0].mxu0 %v1366
        %v1828 = vpop.f32.mrb[0].mxu0
        %v1829 = vadd.f32 %v1427, %v1828
        %v1830 = vpop.f32.mrb[0].mxu0
        %v1831 = vadd.f32 %v1431, %v1830
        %v1832 = vpop.f32.mrb[0].mxu0
        %v1833 = vadd.f32 %v1427, %v1832
        %v1834 = vpop.f32.mrb[0].mxu0
        %v1835 = vadd.f32 %v1431, %v1834
        %1836 = vmatprep.mubr.bf16.mxu0 %v1369
        %1837 = vmatmul.mubr.bf16.gmra.mrb[0].mxu0 %v1368
        %v1838 = vpop.f32.mrb[0].mxu0
        %v1839 = vadd.f32 %v1427, %v1838
        %v1840 = vpop.f32.mrb[0].mxu0
        %v1841 = vadd.f32 %v1431, %v1840
        %v1842 = vpop.f32.mrb[0].mxu0
        %v1843 = vadd.f32 %v1427, %v1842
        %v1844 = vpop.f32.mrb[0].mxu0
        %v1845 = vadd.f32 %v1431, %v1844
        %1846 = vmatprep.mubr.bf16.mxu0 %v1371
        %1847 = vmatmul.mubr.bf16.gmra.mrb[0].mxu0 %v1370
        %v1848 = vpop.f32.mrb[0].mxu0
        %v1849 = vadd.f32 %v1427, %v1848
        %v1850 = vpop.f32.mrb[0].mxu0
        %v1851 = vadd.f32 %v1431, %v1850
        %v1852 = vpop.f32.mrb[0].mxu0
        %v1853 = vadd.f32 %v1427, %v1852
        %v1854 = vpop.f32.mrb[0].mxu0
        %v1855 = vadd.f32 %v1431, %v1854
        %1856 = vmatprep.mubr.bf16.mxu0 %v1373
        %1857 = vmatmul.mubr.bf16.gmra.mrb[0].mxu0 %v1372
        %v1858 = vpop.f32.mrb[0].mxu0
        %v1859 = vadd.f32 %v1427, %v1858
        %v1860 = vpop.f32.mrb[0].mxu0
        %v1861 = vadd.f32 %v1431, %v1860
        %v1862 = vpop.f32.mrb[0].mxu0
        %v1863 = vadd.f32 %v1427, %v1862
        %v1864 = vpop.f32.mrb[0].mxu0
        %v1865 = vadd.f32 %v1431, %v1864
        %1866 = vmatprep.mubr.bf16.mxu0 %v1375
        %1867 = vmatmul.mubr.bf16.gmra.mrb[0].mxu0 %v1374
        %v1868 = vpop.f32.mrb[0].mxu0
        %v1869 = vadd.f32 %v1427, %v1868
        %v1870 = vpop.f32.mrb[0].mxu0
        %v1871 = vadd.f32 %v1431, %v1870
        %v1872 = vpop.f32.mrb[0].mxu0
        %v1873 = vadd.f32 %v1427, %v1872
        %v1874 = vpop.f32.mrb[0].mxu0
        %v1875 = vadd.f32 %v1431, %v1874
        %1876 = vmatprep.mubr.bf16.mxu0 %v1377
        %1877 = vmatmul.mubr.bf16.gmra.mrb[0].mxu0 %v1376
        %v1878 = vpop.f32.mrb[0].mxu0
        %v1879 = vadd.f32 %v1427, %v1878
        %v1880 = vpop.f32.mrb[0].mxu0
        %v1881 = vadd.f32 %v1431, %v1880
        %v1882 = vpop.f32.mrb[0].mxu0
        %v1883 = vadd.f32 %v1427, %v1882
        %v1884 = vpop.f32.mrb[0].mxu0
        %v1885 = vadd.f32 %v1431, %v1884
        %1886 = vmatprep.mubr.bf16.mxu0 %v1379
        %1887 = vmatmul.mubr.bf16.gmra.mrb[0].mxu0 %v1378
        %v1888 = vpop.f32.mrb[0].mxu0
        %v1889 = vadd.f32 %v1427, %v1888
        %v1890 = vpop.f32.mrb[0].mxu0
        %v1891 = vadd.f32 %v1431, %v1890
        %v1892 = vpop.f32.mrb[0].mxu0
        %v1893 = vadd.f32 %v1427, %v1892
        %v1894 = vpop.f32.mrb[0].mxu0
        %v1895 = vadd.f32 %v1431, %v1894
        %1896 = vmatprep.mubr.bf16.mxu0 %v1381
        %1897 = vmatmul.mubr.bf16.gmra.mrb[0].mxu0 %v1380
        %v1898 = vpop.f32.mrb[0].mxu0
        %v1899 = vadd.f32 %v1427, %v1898
        %v1900 = vpop.f32.mrb[0].mxu0
        %v1901 = vadd.f32 %v1431, %v1900
        %v1902 = vpop.f32.mrb[0].mxu0
        %v1903 = vadd.f32 %v1427, %v1902
        %v1904 = vpop.f32.mrb[0].mxu0
        %v1905 = vadd.f32 %v1431, %v1904
        %1906 = vmatprep.mubr.bf16.mxu0 %v1383
        %1907 = vmatmul.mubr.bf16.gmra.mrb[0].mxu0 %v1382
        %v1908 = vpop.f32.mrb[0].mxu0
        %v1909 = vadd.f32 %v1427, %v1908
        %v1910 = vpop.f32.mrb[0].mxu0
        %v1911 = vadd.f32 %v1431, %v1910
        %v1912 = vpop.f32.mrb[0].mxu0
        %v1913 = vadd.f32 %v1427, %v1912
        %v1914 = vpop.f32.mrb[0].mxu0
        %v1915 = vadd.f32 %v1431, %v1914
        %1916 = vmatprep.mubr.bf16.mxu0 %v1385
        %1917 = vmatmul.mubr.bf16.gmra.mrb[0].mxu0 %v1384
        %v1918 = vpop.f32.mrb[0].mxu0
        %v1919 = vadd.f32 %v1427, %v1918
        %v1920 = vpop.f32.mrb[0].mxu0
        %v1921 = vadd.f32 %v1431, %v1920
        %v1922 = vpop.f32.mrb[0].mxu0
        %v1923 = vadd.f32 %v1427, %v1922
        %v1924 = vpop.f32.mrb[0].mxu0
        %v1925 = vadd.f32 %v1431, %v1924
        %1926 = vmatprep.mubr.bf16.mxu0 %v1387
        %1927 = vmatmul.mubr.bf16.gmra.mrb[0].mxu0 %v1386
        %v1928 = vpop.f32.mrb[0].mxu0
        %v1929 = vadd.f32 %v1427, %v1928
        %v1930 = vpop.f32.mrb[0].mxu0
        %v1931 = vadd.f32 %v1431, %v1930
        %v1932 = vpop.f32.mrb[0].mxu0
        %v1933 = vadd.f32 %v1427, %v1932
        %v1934 = vpop.f32.mrb[0].mxu0
        %v1935 = vadd.f32 %v1431, %v1934
        %1936 = vmatprep.mubr.bf16.mxu0 %v1389
        %1937 = vmatmul.mubr.bf16.gmra.mrb[0].mxu0 %v1388
        %v1938 = vpop.f32.mrb[0].mxu0
        %v1939 = vadd.f32 %v1427, %v1938
        %v1940 = vpop.f32.mrb[0].mxu0
        %v1941 = vadd.f32 %v1431, %v1940
        %v1942 = vpop.f32.mrb[0].mxu0
        %v1943 = vadd.f32 %v1427, %v1942
        %v1944 = vpop.f32.mrb[0].mxu0
        %v1945 = vadd.f32 %v1431, %v1944
        %1946 = vdwg.mxu0
        %v1947 = vmax.f32 %v1629, 0.0
        %v1948 = vmax.f32 %v1631, 0.0
        %v1949 = vmax.f32 %v1633, 0.0
        %v1950 = vmax.f32 %v1635, 0.0
        %v1951 = vmax.f32 %v1639, 0.0
        %v1952 = vmax.f32 %v1641, 0.0
        %v1953 = vmax.f32 %v1643, 0.0
        %v1954 = vmax.f32 %v1645, 0.0
        %v1955 = vmax.f32 %v1649, 0.0
        %v1956 = vmax.f32 %v1651, 0.0
        %v1957 = vmax.f32 %v1653, 0.0
        %v1958 = vmax.f32 %v1655, 0.0
        %v1959 = vmax.f32 %v1659, 0.0
        %v1960 = vmax.f32 %v1661, 0.0
        %v1961 = vmax.f32 %v1663, 0.0
        %v1962 = vmax.f32 %v1665, 0.0
        %v1963 = vmax.f32 %v1669, 0.0
        %v1964 = vmax.f32 %v1671, 0.0
        %v1965 = vmax.f32 %v1673, 0.0
        %v1966 = vmax.f32 %v1675, 0.0
        %v1967 = vmax.f32 %v1679, 0.0
        %v1968 = vmax.f32 %v1681, 0.0
        %v1969 = vmax.f32 %v1683, 0.0
        %v1970 = vmax.f32 %v1685, 0.0
        %v1971 = vmax.f32 %v1689, 0.0
        %v1972 = vmax.f32 %v1691, 0.0
        %v1973 = vmax.f32 %v1693, 0.0
        %v1974 = vmax.f32 %v1695, 0.0
        %v1975 = vmax.f32 %v1699, 0.0
        %v1976 = vmax.f32 %v1701, 0.0
        %v1977 = vmax.f32 %v1703, 0.0
        %v1978 = vmax.f32 %v1705, 0.0
        %v1979 = vmax.f32 %v1709, 0.0
        %v1980 = vmax.f32 %v1711, 0.0
        %v1981 = vmax.f32 %v1713, 0.0
        %v1982 = vmax.f32 %v1715, 0.0
        %v1983 = vmax.f32 %v1719, 0.0
        %v1984 = vmax.f32 %v1721, 0.0
        %v1985 = vmax.f32 %v1723, 0.0
        %v1986 = vmax.f32 %v1725, 0.0
        %v1987 = vmax.f32 %v1729, 0.0
        %v1988 = vmax.f32 %v1731, 0.0
        %v1989 = vmax.f32 %v1733, 0.0
        %v1990 = vmax.f32 %v1735, 0.0
        %v1991 = vmax.f32 %v1739, 0.0
        %v1992 = vmax.f32 %v1741, 0.0
        %v1993 = vmax.f32 %v1743, 0.0
        %v1994 = vmax.f32 %v1745, 0.0
        %v1995 = vmax.f32 %v1749, 0.0
        %v1996 = vmax.f32 %v1751, 0.0
        %v1997 = vmax.f32 %v1753, 0.0
        %v1998 = vmax.f32 %v1755, 0.0
        %v1999 = vmax.f32 %v1759, 0.0
        %v2000 = vmax.f32 %v1761, 0.0
        %v2001 = vmax.f32 %v1763, 0.0
        %v2002 = vmax.f32 %v1765, 0.0
        %v2003 = vmax.f32 %v1769, 0.0
        %v2004 = vmax.f32 %v1771, 0.0
        %v2005 = vmax.f32 %v1773, 0.0
        %v2006 = vmax.f32 %v1775, 0.0
        %v2007 = vmax.f32 %v1779, 0.0
        %v2008 = vmax.f32 %v1781, 0.0
        %v2009 = vmax.f32 %v1783, 0.0
        %v2010 = vmax.f32 %v1785, 0.0
        %v2011 = vmax.f32 %v1789, 0.0
        %v2012 = vmax.f32 %v1791, 0.0
        %v2013 = vmax.f32 %v1793, 0.0
        %v2014 = vmax.f32 %v1795, 0.0
        %v2015 = vmax.f32 %v1799, 0.0
        %v2016 = vmax.f32 %v1801, 0.0
        %v2017 = vmax.f32 %v1803, 0.0
        %v2018 = vmax.f32 %v1805, 0.0
        %v2019 = vmax.f32 %v1809, 0.0
        %v2020 = vmax.f32 %v1811, 0.0
        %v2021 = vmax.f32 %v1813, 0.0
        %v2022 = vmax.f32 %v1815, 0.0
        %v2023 = vmax.f32 %v1819, 0.0
        %v2024 = vmax.f32 %v1821, 0.0
        %v2025 = vmax.f32 %v1823, 0.0
        %v2026 = vmax.f32 %v1825, 0.0
        %v2027 = vmax.f32 %v1829, 0.0
        %v2028 = vmax.f32 %v1831, 0.0
        %v2029 = vmax.f32 %v1833, 0.0
        %v2030 = vmax.f32 %v1835, 0.0
        %v2031 = vmax.f32 %v1839, 0.0
        %v2032 = vmax.f32 %v1841, 0.0
        %v2033 = vmax.f32 %v1843, 0.0
        %v2034 = vmax.f32 %v1845, 0.0
        %v2035 = vmax.f32 %v1849, 0.0
        %v2036 = vmax.f32 %v1851, 0.0
        %v2037 = vmax.f32 %v1853, 0.0
        %v2038 = vmax.f32 %v1855, 0.0
        %v2039 = vmax.f32 %v1859, 0.0
        %v2040 = vmax.f32 %v1861, 0.0
        %v2041 = vmax.f32 %v1863, 0.0
        %v2042 = vmax.f32 %v1865, 0.0
        %v2043 = vmax.f32 %v1869, 0.0
        %v2044 = vmax.f32 %v1871, 0.0
        %v2045 = vmax.f32 %v1873, 0.0
        %v2046 = vmax.f32 %v1875, 0.0
        %v2047 = vmax.f32 %v1879, 0.0
        %v2048 = vmax.f32 %v1881, 0.0
        %v2049 = vmax.f32 %v1883, 0.0
        %v2050 = vmax.f32 %v1885, 0.0
        %v2051 = vmax.f32 %v1889, 0.0
        %v2052 = vmax.f32 %v1891, 0.0
        %v2053 = vmax.f32 %v1893, 0.0
        %v2054 = vmax.f32 %v1895, 0.0
        %v2055 = vmax.f32 %v1899, 0.0
        %v2056 = vmax.f32 %v1901, 0.0
        %v2057 = vmax.f32 %v1903, 0.0
        %v2058 = vmax.f32 %v1905, 0.0
        %v2059 = vmax.f32 %v1909, 0.0
        %v2060 = vmax.f32 %v1911, 0.0
        %v2061 = vmax.f32 %v1913, 0.0
        %v2062 = vmax.f32 %v1915, 0.0
        %v2063 = vmax.f32 %v1919, 0.0
        %v2064 = vmax.f32 %v1921, 0.0
        %v2065 = vmax.f32 %v1923, 0.0
        %v2066 = vmax.f32 %v1925, 0.0
        %v2067 = vmax.f32 %v1929, 0.0
        %v2068 = vmax.f32 %v1931, 0.0
        %v2069 = vmax.f32 %v1933, 0.0
        %v2070 = vmax.f32 %v1935, 0.0
        %v2071 = vmax.f32 %v1939, 0.0
        %v2072 = vmax.f32 %v1941, 0.0
        %v2073 = vmax.f32 %v1943, 0.0
        %v2074 = vmax.f32 %v1945, 0.0
        %v2075 = vpack.c.bf16 %v1949, %v1947
        %v2076 = vpack.c.bf16 %v1950, %v1948
        %v2077 = vpack.c.bf16 %v1953, %v1951
        %v2078 = vpack.c.bf16 %v1954, %v1952
        %v2079 = vpack.c.bf16 %v1957, %v1955
        %v2080 = vpack.c.bf16 %v1958, %v1956
        %v2081 = vpack.c.bf16 %v1961, %v1959
        %v2082 = vpack.c.bf16 %v1962, %v1960
        %v2083 = vpack.c.bf16 %v1965, %v1963
        %v2084 = vpack.c.bf16 %v1966, %v1964
        %v2085 = vpack.c.bf16 %v1969, %v1967
        %v2086 = vpack.c.bf16 %v1970, %v1968
        %v2087 = vpack.c.bf16 %v1973, %v1971
        %v2088 = vpack.c.bf16 %v1974, %v1972
        %v2089 = vpack.c.bf16 %v1977, %v1975
        %v2090 = vpack.c.bf16 %v1978, %v1976
        %v2091 = vpack.c.bf16 %v1981, %v1979
        %v2092 = vpack.c.bf16 %v1982, %v1980
        %v2093 = vpack.c.bf16 %v1985, %v1983
        %v2094 = vpack.c.bf16 %v1986, %v1984
        %v2095 = vpack.c.bf16 %v1989, %v1987
        %v2096 = vpack.c.bf16 %v1990, %v1988
        %v2097 = vpack.c.bf16 %v1993, %v1991
        %v2098 = vpack.c.bf16 %v1994, %v1992
        %v2099 = vpack.c.bf16 %v1997, %v1995
        %v2100 = vpack.c.bf16 %v1998, %v1996
        %v2101 = vpack.c.bf16 %v2001, %v1999
        %v2102 = vpack.c.bf16 %v2002, %v2000
        %v2103 = vpack.c.bf16 %v2005, %v2003
        %v2104 = vpack.c.bf16 %v2006, %v2004
        %v2105 = vpack.c.bf16 %v2009, %v2007
        %v2106 = vpack.c.bf16 %v2010, %v2008
        %v2107 = vpack.c.bf16 %v2013, %v2011
        %v2108 = vpack.c.bf16 %v2014, %v2012
        %v2109 = vpack.c.bf16 %v2017, %v2015
        %v2110 = vpack.c.bf16 %v2018, %v2016
        %v2111 = vpack.c.bf16 %v2021, %v2019
        %v2112 = vpack.c.bf16 %v2022, %v2020
        %v2113 = vpack.c.bf16 %v2025, %v2023
        %v2114 = vpack.c.bf16 %v2026, %v2024
        %v2115 = vpack.c.bf16 %v2029, %v2027
        %v2116 = vpack.c.bf16 %v2030, %v2028
        %v2117 = vpack.c.bf16 %v2033, %v2031
        %v2118 = vpack.c.bf16 %v2034, %v2032
        %v2119 = vpack.c.bf16 %v2037, %v2035
        %v2120 = vpack.c.bf16 %v2038, %v2036
        %v2121 = vpack.c.bf16 %v2041, %v2039
        %v2122 = vpack.c.bf16 %v2042, %v2040
        %v2123 = vpack.c.bf16 %v2045, %v2043
        %v2124 = vpack.c.bf16 %v2046, %v2044
        %v2125 = vpack.c.bf16 %v2049, %v2047
        %v2126 = vpack.c.bf16 %v2050, %v2048
        %v2127 = vpack.c.bf16 %v2053, %v2051
        %v2128 = vpack.c.bf16 %v2054, %v2052
        %v2129 = vpack.c.bf16 %v2057, %v2055
        %v2130 = vpack.c.bf16 %v2058, %v2056
        %v2131 = vpack.c.bf16 %v2061, %v2059
        %v2132 = vpack.c.bf16 %v2062, %v2060
        %v2133 = vpack.c.bf16 %v2065, %v2063
        %v2134 = vpack.c.bf16 %v2066, %v2064
        %v2135 = vpack.c.bf16 %v2069, %v2067
        %v2136 = vpack.c.bf16 %v2070, %v2068
        %v2137 = vpack.c.bf16 %v2073, %v2071
        %v2138 = vpack.c.bf16 %v2074, %v2072
        %v2139 = vld [vmem:[#allocation8] sm:$0xff]
        %v2140 = vld [vmem:[#allocation8 + $0x8] sm:$0xff]
        %v2141 = vld [vmem:[#allocation8 + $0x10] sm:$0xff]
        %v2142 = vld [vmem:[#allocation8 + $0x18] sm:$0xff]
        %v2143 = vld [vmem:[#allocation8 + $0x20] sm:$0xff]
        %v2144 = vld [vmem:[#allocation8 + $0x28] sm:$0xff]
        %v2145 = vld [vmem:[#allocation8 + $0x30] sm:$0xff]
        %v2146 = vld [vmem:[#allocation8 + $0x38] sm:$0xff]
        %v2147 = vld [vmem:[#allocation8 + $0x40] sm:$0xff]
        %v2148 = vld [vmem:[#allocation8 + $0x48] sm:$0xff]
        %v2149 = vld [vmem:[#allocation8 + $0x50] sm:$0xff]
        %v2150 = vld [vmem:[#allocation8 + $0x58] sm:$0xff]
        %v2151 = vld [vmem:[#allocation8 + $0x60] sm:$0xff]
        %v2152 = vld [vmem:[#allocation8 + $0x68] sm:$0xff]
        %v2153 = vld [vmem:[#allocation8 + $0x70] sm:$0xff]
        %v2154 = vld [vmem:[#allocation8 + $0x78] sm:$0xff]
        %v2155 = vld [vmem:[#allocation8 + $0x80] sm:$0xff]
        %v2156 = vld [vmem:[#allocation8 + $0x88] sm:$0xff]
        %v2157 = vld [vmem:[#allocation8 + $0x90] sm:$0xff]
        %v2158 = vld [vmem:[#allocation8 + $0x98] sm:$0xff]
        %v2159 = vld [vmem:[#allocation8 + $0xa0] sm:$0xff]
        %v2160 = vld [vmem:[#allocation8 + $0xa8] sm:$0xff]
        %v2161 = vld [vmem:[#allocation8 + $0xb0] sm:$0xff]
        %v2162 = vld [vmem:[#allocation8 + $0xb8] sm:$0xff]
        %v2163 = vld [vmem:[#allocation8 + $0xc0] sm:$0xff]
        %v2164 = vld [vmem:[#allocation8 + $0xc8] sm:$0xff]
        %v2165 = vld [vmem:[#allocation8 + $0xd0] sm:$0xff]
        %v2166 = vld [vmem:[#allocation8 + $0xd8] sm:$0xff]
        %v2167 = vld [vmem:[#allocation8 + $0xe0] sm:$0xff]
        %v2168 = vld [vmem:[#allocation8 + $0xe8] sm:$0xff]
        %v2169 = vld [vmem:[#allocation8 + $0xf0] sm:$0xff]
        %v2170 = vld [vmem:[#allocation8 + $0xf8] sm:$0xff]
        %v2171 = vld [vmem:[%s6] sm:$0x3]
        %v2173 = vlaneseq
        %v2174 = vshrl.u32 %v2173, 7
        %v2175 = vsub.s32 0, %v2174
        %v2176 = vrot.slane %v2171, %v2175
        %v2177 = vlaneseq
        %v2178 = vshrl.u32 %v2177, 7
        %v2179 = vsub.s32 1, %v2178
        %v2180 = vrot.slane %v2171, %v2179
        %v2215 = vunpack.c.l.b16 %v2139
        %v2216 = vunpack.c.h.b16 %v2139
        %v2217 = vunpack.c.l.b16 %v2140
        %v2218 = vunpack.c.h.b16 %v2140
        %v2219 = vunpack.c.l.b16 %v2141
        %v2220 = vunpack.c.h.b16 %v2141
        %v2221 = vunpack.c.l.b16 %v2142
        %v2222 = vunpack.c.h.b16 %v2142
        %v2223 = vunpack.c.l.b16 %v2143
        %v2224 = vunpack.c.h.b16 %v2143
        %v2225 = vunpack.c.l.b16 %v2144
        %v2226 = vunpack.c.h.b16 %v2144
        %v2227 = vunpack.c.l.b16 %v2145
        %v2228 = vunpack.c.h.b16 %v2145
        %v2229 = vunpack.c.l.b16 %v2146
        %v2230 = vunpack.c.h.b16 %v2146
        %v2231 = vunpack.c.l.b16 %v2147
        %v2232 = vunpack.c.h.b16 %v2147
        %v2233 = vunpack.c.l.b16 %v2148
        %v2234 = vunpack.c.h.b16 %v2148
        %v2235 = vunpack.c.l.b16 %v2149
        %v2236 = vunpack.c.h.b16 %v2149
        %v2237 = vunpack.c.l.b16 %v2150
        %v2238 = vunpack.c.h.b16 %v2150
        %v2239 = vunpack.c.l.b16 %v2151
        %v2240 = vunpack.c.h.b16 %v2151
        %v2241 = vunpack.c.l.b16 %v2152
        %v2242 = vunpack.c.h.b16 %v2152
        %v2243 = vunpack.c.l.b16 %v2153
        %v2244 = vunpack.c.h.b16 %v2153
        %v2245 = vunpack.c.l.b16 %v2154
        %v2246 = vunpack.c.h.b16 %v2154
        %v2247 = vunpack.c.l.b16 %v2155
        %v2248 = vunpack.c.h.b16 %v2155
        %v2249 = vunpack.c.l.b16 %v2156
        %v2250 = vunpack.c.h.b16 %v2156
        %v2251 = vunpack.c.l.b16 %v2157
        %v2252 = vunpack.c.h.b16 %v2157
        %v2253 = vunpack.c.l.b16 %v2158
        %v2254 = vunpack.c.h.b16 %v2158
        %v2255 = vunpack.c.l.b16 %v2159
        %v2256 = vunpack.c.h.b16 %v2159
        %v2257 = vunpack.c.l.b16 %v2160
        %v2258 = vunpack.c.h.b16 %v2160
        %v2259 = vunpack.c.l.b16 %v2161
        %v2260 = vunpack.c.h.b16 %v2161
        %v2261 = vunpack.c.l.b16 %v2162
        %v2262 = vunpack.c.h.b16 %v2162
        %v2263 = vunpack.c.l.b16 %v2163
        %v2264 = vunpack.c.h.b16 %v2163
        %v2265 = vunpack.c.l.b16 %v2164
        %v2266 = vunpack.c.h.b16 %v2164
        %v2267 = vunpack.c.l.b16 %v2165
        %v2268 = vunpack.c.h.b16 %v2165
        %v2269 = vunpack.c.l.b16 %v2166
        %v2270 = vunpack.c.h.b16 %v2166
        %v2271 = vunpack.c.l.b16 %v2167
        %v2272 = vunpack.c.h.b16 %v2167
        %v2273 = vunpack.c.l.b16 %v2168
        %v2274 = vunpack.c.h.b16 %v2168
        %v2275 = vunpack.c.l.b16 %v2169
        %v2276 = vunpack.c.h.b16 %v2169
        %v2277 = vunpack.c.l.b16 %v2170
        %v2278 = vunpack.c.h.b16 %v2170
        %v2279 = vpack.c.b16 %v2217, %v2215
        %v2280 = vpack.c.b16 %v2218, %v2216
        %v2281 = vpack.c.b16 %v2221, %v2219
        %v2282 = vpack.c.b16 %v2222, %v2220
        %v2283 = vpack.c.b16 %v2225, %v2223
        %v2284 = vpack.c.b16 %v2226, %v2224
        %v2285 = vpack.c.b16 %v2229, %v2227
        %v2286 = vpack.c.b16 %v2230, %v2228
        %v2287 = vpack.c.b16 %v2233, %v2231
        %v2288 = vpack.c.b16 %v2234, %v2232
        %v2289 = vpack.c.b16 %v2237, %v2235
        %v2290 = vpack.c.b16 %v2238, %v2236
        %v2291 = vpack.c.b16 %v2241, %v2239
        %v2292 = vpack.c.b16 %v2242, %v2240
        %v2293 = vpack.c.b16 %v2245, %v2243
        %v2294 = vpack.c.b16 %v2246, %v2244
        %v2295 = vpack.c.b16 %v2249, %v2247
        %v2296 = vpack.c.b16 %v2250, %v2248
        %v2297 = vpack.c.b16 %v2253, %v2251
        %v2298 = vpack.c.b16 %v2254, %v2252
        %v2299 = vpack.c.b16 %v2257, %v2255
        %v2300 = vpack.c.b16 %v2258, %v2256
        %v2301 = vpack.c.b16 %v2261, %v2259
        %v2302 = vpack.c.b16 %v2262, %v2260
        %v2303 = vpack.c.b16 %v2265, %v2263
        %v2304 = vpack.c.b16 %v2266, %v2264
        %v2305 = vpack.c.b16 %v2269, %v2267
        %v2306 = vpack.c.b16 %v2270, %v2268
        %v2307 = vpack.c.b16 %v2273, %v2271
        %v2308 = vpack.c.b16 %v2274, %v2272
        %v2309 = vpack.c.b16 %v2277, %v2275
        %v2310 = vpack.c.b16 %v2278, %v2276
        %2343 = vmatprep.subr.bf16.mxu0 %v2280
        %2344 = vmatpush1.bf16.msra.mxu0 %v2279
        %2345 = vmatprep.subr.bf16.mxu0 %v2282
        %2346 = vmatpush1.bf16.msra.mxu0 %v2281
        %2347 = vmatprep.subr.bf16.mxu0 %v2284
        %2348 = vmatpush1.bf16.msra.mxu0 %v2283
        %2349 = vmatprep.subr.bf16.mxu0 %v2286
        %2350 = vmatpush1.bf16.msra.mxu0 %v2285
        %2351 = vmatprep.subr.bf16.mxu0 %v2288
        %2352 = vmatpush1.bf16.msra.mxu0 %v2287
        %2353 = vmatprep.subr.bf16.mxu0 %v2290
        %2354 = vmatpush1.bf16.msra.mxu0 %v2289
        %2355 = vmatprep.subr.bf16.mxu0 %v2292
        %2356 = vmatpush1.bf16.msra.mxu0 %v2291
        %2357 = vmatprep.subr.bf16.mxu0 %v2294
        %2358 = vmatpush1.bf16.msra.mxu0 %v2293
        %2359 = vmatprep.subr.bf16.mxu0 %v2296
        %2360 = vmatpush1.bf16.msra.mxu0 %v2295
        %2361 = vmatprep.subr.bf16.mxu0 %v2298
        %2362 = vmatpush1.bf16.msra.mxu0 %v2297
        %2363 = vmatprep.subr.bf16.mxu0 %v2300
        %2364 = vmatpush1.bf16.msra.mxu0 %v2299
        %2365 = vmatprep.subr.bf16.mxu0 %v2302
        %2366 = vmatpush1.bf16.msra.mxu0 %v2301
        %2367 = vmatprep.subr.bf16.mxu0 %v2304
        %2368 = vmatpush1.bf16.msra.mxu0 %v2303
        %2369 = vmatprep.subr.bf16.mxu0 %v2306
        %2370 = vmatpush1.bf16.msra.mxu0 %v2305
        %2371 = vmatprep.subr.bf16.mxu0 %v2308
        %2372 = vmatpush1.bf16.msra.mxu0 %v2307
        %2373 = vmatprep.subr.bf16.mxu0 %v2310
        %2374 = vmatpush1.bf16.msra.mxu0 %v2309
        %2375 = vmatprep.mubr.bf16.mxu0 %v2076
        %2376 = vmatmul.mubr.bf16.gmra.mrb[0].mxu0 %v2075
        %v2377 = vpop.f32.mrb[0].mxu0
        %v2378 = vadd.f32 %v2176, %v2377
        %v2379 = vpop.f32.mrb[0].mxu0
        %v2380 = vadd.f32 %v2180, %v2379
        %v2381 = vpop.f32.mrb[0].mxu0
        %v2382 = vadd.f32 %v2176, %v2381
        %v2383 = vpop.f32.mrb[0].mxu0
        %v2384 = vadd.f32 %v2180, %v2383
        %2385 = vmatprep.mubr.bf16.mxu0 %v2078
        %2386 = vmatmul.mubr.bf16.gmra.mrb[0].mxu0 %v2077
        %v2387 = vpop.f32.mrb[0].mxu0
        %v2388 = vadd.f32 %v2176, %v2387
        %v2389 = vpop.f32.mrb[0].mxu0
        %v2390 = vadd.f32 %v2180, %v2389
        %v2391 = vpop.f32.mrb[0].mxu0
        %v2392 = vadd.f32 %v2176, %v2391
        %v2393 = vpop.f32.mrb[0].mxu0
        %v2394 = vadd.f32 %v2180, %v2393
        %2395 = vmatprep.mubr.bf16.mxu0 %v2080
        %2396 = vmatmul.mubr.bf16.gmra.mrb[0].mxu0 %v2079
        %v2397 = vpop.f32.mrb[0].mxu0
        %v2398 = vadd.f32 %v2176, %v2397
        %v2399 = vpop.f32.mrb[0].mxu0
        %v2400 = vadd.f32 %v2180, %v2399
        %v2401 = vpop.f32.mrb[0].mxu0
        %v2402 = vadd.f32 %v2176, %v2401
        %v2403 = vpop.f32.mrb[0].mxu0
        %v2404 = vadd.f32 %v2180, %v2403
        %2405 = vmatprep.mubr.bf16.mxu0 %v2082
        %2406 = vmatmul.mubr.bf16.gmra.mrb[0].mxu0 %v2081
        %v2407 = vpop.f32.mrb[0].mxu0
        %v2408 = vadd.f32 %v2176, %v2407
        %v2409 = vpop.f32.mrb[0].mxu0
        %v2410 = vadd.f32 %v2180, %v2409
        %v2411 = vpop.f32.mrb[0].mxu0
        %v2412 = vadd.f32 %v2176, %v2411
        %v2413 = vpop.f32.mrb[0].mxu0
        %v2414 = vadd.f32 %v2180, %v2413
        %2415 = vmatprep.mubr.bf16.mxu0 %v2084
        %2416 = vmatmul.mubr.bf16.gmra.mrb[0].mxu0 %v2083
        %v2417 = vpop.f32.mrb[0].mxu0
        %v2418 = vadd.f32 %v2176, %v2417
        %v2419 = vpop.f32.mrb[0].mxu0
        %v2420 = vadd.f32 %v2180, %v2419
        %v2421 = vpop.f32.mrb[0].mxu0
        %v2422 = vadd.f32 %v2176, %v2421
        %v2423 = vpop.f32.mrb[0].mxu0
        %v2424 = vadd.f32 %v2180, %v2423
        %2425 = vmatprep.mubr.bf16.mxu0 %v2086
        %2426 = vmatmul.mubr.bf16.gmra.mrb[0].mxu0 %v2085
        %v2427 = vpop.f32.mrb[0].mxu0
        %v2428 = vadd.f32 %v2176, %v2427
        %v2429 = vpop.f32.mrb[0].mxu0
        %v2430 = vadd.f32 %v2180, %v2429
        %v2431 = vpop.f32.mrb[0].mxu0
        %v2432 = vadd.f32 %v2176, %v2431
        %v2433 = vpop.f32.mrb[0].mxu0
        %v2434 = vadd.f32 %v2180, %v2433
        %2435 = vmatprep.mubr.bf16.mxu0 %v2088
        %2436 = vmatmul.mubr.bf16.gmra.mrb[0].mxu0 %v2087
        %v2437 = vpop.f32.mrb[0].mxu0
        %v2438 = vadd.f32 %v2176, %v2437
        %v2439 = vpop.f32.mrb[0].mxu0
        %v2440 = vadd.f32 %v2180, %v2439
        %v2441 = vpop.f32.mrb[0].mxu0
        %v2442 = vadd.f32 %v2176, %v2441
        %v2443 = vpop.f32.mrb[0].mxu0
        %v2444 = vadd.f32 %v2180, %v2443
        %2445 = vmatprep.mubr.bf16.mxu0 %v2090
        %2446 = vmatmul.mubr.bf16.gmra.mrb[0].mxu0 %v2089
        %v2447 = vpop.f32.mrb[0].mxu0
        %v2448 = vadd.f32 %v2176, %v2447
        %v2449 = vpop.f32.mrb[0].mxu0
        %v2450 = vadd.f32 %v2180, %v2449
        %v2451 = vpop.f32.mrb[0].mxu0
        %v2452 = vadd.f32 %v2176, %v2451
        %v2453 = vpop.f32.mrb[0].mxu0
        %v2454 = vadd.f32 %v2180, %v2453
        %2455 = vmatprep.mubr.bf16.mxu0 %v2092
        %2456 = vmatmul.mubr.bf16.gmra.mrb[0].mxu0 %v2091
        %v2457 = vpop.f32.mrb[0].mxu0
        %v2458 = vadd.f32 %v2176, %v2457
        %v2459 = vpop.f32.mrb[0].mxu0
        %v2460 = vadd.f32 %v2180, %v2459
        %v2461 = vpop.f32.mrb[0].mxu0
        %v2462 = vadd.f32 %v2176, %v2461
        %v2463 = vpop.f32.mrb[0].mxu0
        %v2464 = vadd.f32 %v2180, %v2463
        %2465 = vmatprep.mubr.bf16.mxu0 %v2094
        %2466 = vmatmul.mubr.bf16.gmra.mrb[0].mxu0 %v2093
        %v2467 = vpop.f32.mrb[0].mxu0
        %v2468 = vadd.f32 %v2176, %v2467
        %v2469 = vpop.f32.mrb[0].mxu0
        %v2470 = vadd.f32 %v2180, %v2469
        %v2471 = vpop.f32.mrb[0].mxu0
        %v2472 = vadd.f32 %v2176, %v2471
        %v2473 = vpop.f32.mrb[0].mxu0
        %v2474 = vadd.f32 %v2180, %v2473
        %2475 = vmatprep.mubr.bf16.mxu0 %v2096
        %2476 = vmatmul.mubr.bf16.gmra.mrb[0].mxu0 %v2095
        %v2477 = vpop.f32.mrb[0].mxu0
        %v2478 = vadd.f32 %v2176, %v2477
        %v2479 = vpop.f32.mrb[0].mxu0
        %v2480 = vadd.f32 %v2180, %v2479
        %v2481 = vpop.f32.mrb[0].mxu0
        %v2482 = vadd.f32 %v2176, %v2481
        %v2483 = vpop.f32.mrb[0].mxu0
        %v2484 = vadd.f32 %v2180, %v2483
        %2485 = vmatprep.mubr.bf16.mxu0 %v2098
        %2486 = vmatmul.mubr.bf16.gmra.mrb[0].mxu0 %v2097
        %v2487 = vpop.f32.mrb[0].mxu0
        %v2488 = vadd.f32 %v2176, %v2487
        %v2489 = vpop.f32.mrb[0].mxu0
        %v2490 = vadd.f32 %v2180, %v2489
        %v2491 = vpop.f32.mrb[0].mxu0
        %v2492 = vadd.f32 %v2176, %v2491
        %v2493 = vpop.f32.mrb[0].mxu0
        %v2494 = vadd.f32 %v2180, %v2493
        %2495 = vmatprep.mubr.bf16.mxu0 %v2100
        %2496 = vmatmul.mubr.bf16.gmra.mrb[0].mxu0 %v2099
        %v2497 = vpop.f32.mrb[0].mxu0
        %v2498 = vadd.f32 %v2176, %v2497
        %v2499 = vpop.f32.mrb[0].mxu0
        %v2500 = vadd.f32 %v2180, %v2499
        %v2501 = vpop.f32.mrb[0].mxu0
        %v2502 = vadd.f32 %v2176, %v2501
        %v2503 = vpop.f32.mrb[0].mxu0
        %v2504 = vadd.f32 %v2180, %v2503
        %2505 = vmatprep.mubr.bf16.mxu0 %v2102
        %2506 = vmatmul.mubr.bf16.gmra.mrb[0].mxu0 %v2101
        %v2507 = vpop.f32.mrb[0].mxu0
        %v2508 = vadd.f32 %v2176, %v2507
        %v2509 = vpop.f32.mrb[0].mxu0
        %v2510 = vadd.f32 %v2180, %v2509
        %v2511 = vpop.f32.mrb[0].mxu0
        %v2512 = vadd.f32 %v2176, %v2511
        %v2513 = vpop.f32.mrb[0].mxu0
        %v2514 = vadd.f32 %v2180, %v2513
        %2515 = vmatprep.mubr.bf16.mxu0 %v2104
        %2516 = vmatmul.mubr.bf16.gmra.mrb[0].mxu0 %v2103
        %v2517 = vpop.f32.mrb[0].mxu0
        %v2518 = vadd.f32 %v2176, %v2517
        %v2519 = vpop.f32.mrb[0].mxu0
        %v2520 = vadd.f32 %v2180, %v2519
        %v2521 = vpop.f32.mrb[0].mxu0
        %v2522 = vadd.f32 %v2176, %v2521
        %v2523 = vpop.f32.mrb[0].mxu0
        %v2524 = vadd.f32 %v2180, %v2523
        %2525 = vmatprep.mubr.bf16.mxu0 %v2106
        %2526 = vmatmul.mubr.bf16.gmra.mrb[0].mxu0 %v2105
        %v2527 = vpop.f32.mrb[0].mxu0
        %v2528 = vadd.f32 %v2176, %v2527
        %v2529 = vpop.f32.mrb[0].mxu0
        %v2530 = vadd.f32 %v2180, %v2529
        %v2531 = vpop.f32.mrb[0].mxu0
        %v2532 = vadd.f32 %v2176, %v2531
        %v2533 = vpop.f32.mrb[0].mxu0
        %v2534 = vadd.f32 %v2180, %v2533
        %2535 = vmatprep.mubr.bf16.mxu0 %v2108
        %2536 = vmatmul.mubr.bf16.gmra.mrb[0].mxu0 %v2107
        %v2537 = vpop.f32.mrb[0].mxu0
        %v2538 = vadd.f32 %v2176, %v2537
        %v2539 = vpop.f32.mrb[0].mxu0
        %v2540 = vadd.f32 %v2180, %v2539
        %v2541 = vpop.f32.mrb[0].mxu0
        %v2542 = vadd.f32 %v2176, %v2541
        %v2543 = vpop.f32.mrb[0].mxu0
        %v2544 = vadd.f32 %v2180, %v2543
        %2545 = vmatprep.mubr.bf16.mxu0 %v2110
        %2546 = vmatmul.mubr.bf16.gmra.mrb[0].mxu0 %v2109
        %v2547 = vpop.f32.mrb[0].mxu0
        %v2548 = vadd.f32 %v2176, %v2547
        %v2549 = vpop.f32.mrb[0].mxu0
        %v2550 = vadd.f32 %v2180, %v2549
        %v2551 = vpop.f32.mrb[0].mxu0
        %v2552 = vadd.f32 %v2176, %v2551
        %v2553 = vpop.f32.mrb[0].mxu0
        %v2554 = vadd.f32 %v2180, %v2553
        %2555 = vmatprep.mubr.bf16.mxu0 %v2112
        %2556 = vmatmul.mubr.bf16.gmra.mrb[0].mxu0 %v2111
        %v2557 = vpop.f32.mrb[0].mxu0
        %v2558 = vadd.f32 %v2176, %v2557
        %v2559 = vpop.f32.mrb[0].mxu0
        %v2560 = vadd.f32 %v2180, %v2559
        %v2561 = vpop.f32.mrb[0].mxu0
        %v2562 = vadd.f32 %v2176, %v2561
        %v2563 = vpop.f32.mrb[0].mxu0
        %v2564 = vadd.f32 %v2180, %v2563
        %2565 = vmatprep.mubr.bf16.mxu0 %v2114
        %2566 = vmatmul.mubr.bf16.gmra.mrb[0].mxu0 %v2113
        %v2567 = vpop.f32.mrb[0].mxu0
        %v2568 = vadd.f32 %v2176, %v2567
        %v2569 = vpop.f32.mrb[0].mxu0
        %v2570 = vadd.f32 %v2180, %v2569
        %v2571 = vpop.f32.mrb[0].mxu0
        %v2572 = vadd.f32 %v2176, %v2571
        %v2573 = vpop.f32.mrb[0].mxu0
        %v2574 = vadd.f32 %v2180, %v2573
        %2575 = vmatprep.mubr.bf16.mxu0 %v2116
        %2576 = vmatmul.mubr.bf16.gmra.mrb[0].mxu0 %v2115
        %v2577 = vpop.f32.mrb[0].mxu0
        %v2578 = vadd.f32 %v2176, %v2577
        %v2579 = vpop.f32.mrb[0].mxu0
        %v2580 = vadd.f32 %v2180, %v2579
        %v2581 = vpop.f32.mrb[0].mxu0
        %v2582 = vadd.f32 %v2176, %v2581
        %v2583 = vpop.f32.mrb[0].mxu0
        %v2584 = vadd.f32 %v2180, %v2583
        %2585 = vmatprep.mubr.bf16.mxu0 %v2118
        %2586 = vmatmul.mubr.bf16.gmra.mrb[0].mxu0 %v2117
        %v2587 = vpop.f32.mrb[0].mxu0
        %v2588 = vadd.f32 %v2176, %v2587
        %v2589 = vpop.f32.mrb[0].mxu0
        %v2590 = vadd.f32 %v2180, %v2589
        %v2591 = vpop.f32.mrb[0].mxu0
        %v2592 = vadd.f32 %v2176, %v2591
        %v2593 = vpop.f32.mrb[0].mxu0
        %v2594 = vadd.f32 %v2180, %v2593
        %2595 = vmatprep.mubr.bf16.mxu0 %v2120
        %2596 = vmatmul.mubr.bf16.gmra.mrb[0].mxu0 %v2119
        %v2597 = vpop.f32.mrb[0].mxu0
        %v2598 = vadd.f32 %v2176, %v2597
        %v2599 = vpop.f32.mrb[0].mxu0
        %v2600 = vadd.f32 %v2180, %v2599
        %v2601 = vpop.f32.mrb[0].mxu0
        %v2602 = vadd.f32 %v2176, %v2601
        %v2603 = vpop.f32.mrb[0].mxu0
        %v2604 = vadd.f32 %v2180, %v2603
        %2605 = vmatprep.mubr.bf16.mxu0 %v2122
        %2606 = vmatmul.mubr.bf16.gmra.mrb[0].mxu0 %v2121
        %v2607 = vpop.f32.mrb[0].mxu0
        %v2608 = vadd.f32 %v2176, %v2607
        %v2609 = vpop.f32.mrb[0].mxu0
        %v2610 = vadd.f32 %v2180, %v2609
        %v2611 = vpop.f32.mrb[0].mxu0
        %v2612 = vadd.f32 %v2176, %v2611
        %v2613 = vpop.f32.mrb[0].mxu0
        %v2614 = vadd.f32 %v2180, %v2613
        %2615 = vmatprep.mubr.bf16.mxu0 %v2124
        %2616 = vmatmul.mubr.bf16.gmra.mrb[0].mxu0 %v2123
        %v2617 = vpop.f32.mrb[0].mxu0
        %v2618 = vadd.f32 %v2176, %v2617
        %v2619 = vpop.f32.mrb[0].mxu0
        %v2620 = vadd.f32 %v2180, %v2619
        %v2621 = vpop.f32.mrb[0].mxu0
        %v2622 = vadd.f32 %v2176, %v2621
        %v2623 = vpop.f32.mrb[0].mxu0
        %v2624 = vadd.f32 %v2180, %v2623
        %2625 = vmatprep.mubr.bf16.mxu0 %v2126
        %2626 = vmatmul.mubr.bf16.gmra.mrb[0].mxu0 %v2125
        %v2627 = vpop.f32.mrb[0].mxu0
        %v2628 = vadd.f32 %v2176, %v2627
        %v2629 = vpop.f32.mrb[0].mxu0
        %v2630 = vadd.f32 %v2180, %v2629
        %v2631 = vpop.f32.mrb[0].mxu0
        %v2632 = vadd.f32 %v2176, %v2631
        %v2633 = vpop.f32.mrb[0].mxu0
        %v2634 = vadd.f32 %v2180, %v2633
        %2635 = vmatprep.mubr.bf16.mxu0 %v2128
        %2636 = vmatmul.mubr.bf16.gmra.mrb[0].mxu0 %v2127
        %v2637 = vpop.f32.mrb[0].mxu0
        %v2638 = vadd.f32 %v2176, %v2637
        %v2639 = vpop.f32.mrb[0].mxu0
        %v2640 = vadd.f32 %v2180, %v2639
        %v2641 = vpop.f32.mrb[0].mxu0
        %v2642 = vadd.f32 %v2176, %v2641
        %v2643 = vpop.f32.mrb[0].mxu0
        %v2644 = vadd.f32 %v2180, %v2643
        %2645 = vmatprep.mubr.bf16.mxu0 %v2130
        %2646 = vmatmul.mubr.bf16.gmra.mrb[0].mxu0 %v2129
        %v2647 = vpop.f32.mrb[0].mxu0
        %v2648 = vadd.f32 %v2176, %v2647
        %v2649 = vpop.f32.mrb[0].mxu0
        %v2650 = vadd.f32 %v2180, %v2649
        %v2651 = vpop.f32.mrb[0].mxu0
        %v2652 = vadd.f32 %v2176, %v2651
        %v2653 = vpop.f32.mrb[0].mxu0
        %v2654 = vadd.f32 %v2180, %v2653
        %2655 = vmatprep.mubr.bf16.mxu0 %v2132
        %2656 = vmatmul.mubr.bf16.gmra.mrb[0].mxu0 %v2131
        %v2657 = vpop.f32.mrb[0].mxu0
        %v2658 = vadd.f32 %v2176, %v2657
        %v2659 = vpop.f32.mrb[0].mxu0
        %v2660 = vadd.f32 %v2180, %v2659
        %v2661 = vpop.f32.mrb[0].mxu0
        %v2662 = vadd.f32 %v2176, %v2661
        %v2663 = vpop.f32.mrb[0].mxu0
        %v2664 = vadd.f32 %v2180, %v2663
        %2665 = vmatprep.mubr.bf16.mxu0 %v2134
        %2666 = vmatmul.mubr.bf16.gmra.mrb[0].mxu0 %v2133
        %v2667 = vpop.f32.mrb[0].mxu0
        %v2668 = vadd.f32 %v2176, %v2667
        %v2669 = vpop.f32.mrb[0].mxu0
        %v2670 = vadd.f32 %v2180, %v2669
        %v2671 = vpop.f32.mrb[0].mxu0
        %v2672 = vadd.f32 %v2176, %v2671
        %v2673 = vpop.f32.mrb[0].mxu0
        %v2674 = vadd.f32 %v2180, %v2673
        %2675 = vmatprep.mubr.bf16.mxu0 %v2136
        %2676 = vmatmul.mubr.bf16.gmra.mrb[0].mxu0 %v2135
        %v2677 = vpop.f32.mrb[0].mxu0
        %v2678 = vadd.f32 %v2176, %v2677
        %v2679 = vpop.f32.mrb[0].mxu0
        %v2680 = vadd.f32 %v2180, %v2679
        %v2681 = vpop.f32.mrb[0].mxu0
        %v2682 = vadd.f32 %v2176, %v2681
        %v2683 = vpop.f32.mrb[0].mxu0
        %v2684 = vadd.f32 %v2180, %v2683
        %2685 = vmatprep.mubr.bf16.mxu0 %v2138
        %2686 = vmatmul.mubr.bf16.gmra.mrb[0].mxu0 %v2137
        %v2687 = vpop.f32.mrb[0].mxu0
        %v2688 = vadd.f32 %v2176, %v2687
        %v2689 = vpop.f32.mrb[0].mxu0
        %v2690 = vadd.f32 %v2180, %v2689
        %v2691 = vpop.f32.mrb[0].mxu0
        %v2692 = vadd.f32 %v2176, %v2691
        %v2693 = vpop.f32.mrb[0].mxu0
        %v2694 = vadd.f32 %v2180, %v2693
        %2695 = vdwg.mxu0
        %v2696 = vmax.f32 %v2378, 0.0
        %v2697 = vmax.f32 %v2380, 0.0
        %v2698 = vmax.f32 %v2382, 0.0
        %v2699 = vmax.f32 %v2384, 0.0
        %v2700 = vmax.f32 %v2388, 0.0
        %v2701 = vmax.f32 %v2390, 0.0
        %v2702 = vmax.f32 %v2392, 0.0
        %v2703 = vmax.f32 %v2394, 0.0
        %v2704 = vmax.f32 %v2398, 0.0
        %v2705 = vmax.f32 %v2400, 0.0
        %v2706 = vmax.f32 %v2402, 0.0
        %v2707 = vmax.f32 %v2404, 0.0
        %v2708 = vmax.f32 %v2408, 0.0
        %v2709 = vmax.f32 %v2410, 0.0
        %v2710 = vmax.f32 %v2412, 0.0
        %v2711 = vmax.f32 %v2414, 0.0
        %v2712 = vmax.f32 %v2418, 0.0
        %v2713 = vmax.f32 %v2420, 0.0
        %v2714 = vmax.f32 %v2422, 0.0
        %v2715 = vmax.f32 %v2424, 0.0
        %v2716 = vmax.f32 %v2428, 0.0
        %v2717 = vmax.f32 %v2430, 0.0
        %v2718 = vmax.f32 %v2432, 0.0
        %v2719 = vmax.f32 %v2434, 0.0
        %v2720 = vmax.f32 %v2438, 0.0
        %v2721 = vmax.f32 %v2440, 0.0
        %v2722 = vmax.f32 %v2442, 0.0
        %v2723 = vmax.f32 %v2444, 0.0
        %v2724 = vmax.f32 %v2448, 0.0
        %v2725 = vmax.f32 %v2450, 0.0
        %v2726 = vmax.f32 %v2452, 0.0
        %v2727 = vmax.f32 %v2454, 0.0
        %v2728 = vmax.f32 %v2458, 0.0
        %v2729 = vmax.f32 %v2460, 0.0
        %v2730 = vmax.f32 %v2462, 0.0
        %v2731 = vmax.f32 %v2464, 0.0
        %v2732 = vmax.f32 %v2468, 0.0
        %v2733 = vmax.f32 %v2470, 0.0
        %v2734 = vmax.f32 %v2472, 0.0
        %v2735 = vmax.f32 %v2474, 0.0
        %v2736 = vmax.f32 %v2478, 0.0
        %v2737 = vmax.f32 %v2480, 0.0
        %v2738 = vmax.f32 %v2482, 0.0
        %v2739 = vmax.f32 %v2484, 0.0
        %v2740 = vmax.f32 %v2488, 0.0
        %v2741 = vmax.f32 %v2490, 0.0
        %v2742 = vmax.f32 %v2492, 0.0
        %v2743 = vmax.f32 %v2494, 0.0
        %v2744 = vmax.f32 %v2498, 0.0
        %v2745 = vmax.f32 %v2500, 0.0
        %v2746 = vmax.f32 %v2502, 0.0
        %v2747 = vmax.f32 %v2504, 0.0
        %v2748 = vmax.f32 %v2508, 0.0
        %v2749 = vmax.f32 %v2510, 0.0
        %v2750 = vmax.f32 %v2512, 0.0
        %v2751 = vmax.f32 %v2514, 0.0
        %v2752 = vmax.f32 %v2518, 0.0
        %v2753 = vmax.f32 %v2520, 0.0
        %v2754 = vmax.f32 %v2522, 0.0
        %v2755 = vmax.f32 %v2524, 0.0
        %v2756 = vmax.f32 %v2528, 0.0
        %v2757 = vmax.f32 %v2530, 0.0
        %v2758 = vmax.f32 %v2532, 0.0
        %v2759 = vmax.f32 %v2534, 0.0
        %v2760 = vmax.f32 %v2538, 0.0
        %v2761 = vmax.f32 %v2540, 0.0
        %v2762 = vmax.f32 %v2542, 0.0
        %v2763 = vmax.f32 %v2544, 0.0
        %v2764 = vmax.f32 %v2548, 0.0
        %v2765 = vmax.f32 %v2550, 0.0
        %v2766 = vmax.f32 %v2552, 0.0
        %v2767 = vmax.f32 %v2554, 0.0
        %v2768 = vmax.f32 %v2558, 0.0
        %v2769 = vmax.f32 %v2560, 0.0
        %v2770 = vmax.f32 %v2562, 0.0
        %v2771 = vmax.f32 %v2564, 0.0
        %v2772 = vmax.f32 %v2568, 0.0
        %v2773 = vmax.f32 %v2570, 0.0
        %v2774 = vmax.f32 %v2572, 0.0
        %v2775 = vmax.f32 %v2574, 0.0
        %v2776 = vmax.f32 %v2578, 0.0
        %v2777 = vmax.f32 %v2580, 0.0
        %v2778 = vmax.f32 %v2582, 0.0
        %v2779 = vmax.f32 %v2584, 0.0
        %v2780 = vmax.f32 %v2588, 0.0
        %v2781 = vmax.f32 %v2590, 0.0
        %v2782 = vmax.f32 %v2592, 0.0
        %v2783 = vmax.f32 %v2594, 0.0
        %v2784 = vmax.f32 %v2598, 0.0
        %v2785 = vmax.f32 %v2600, 0.0
        %v2786 = vmax.f32 %v2602, 0.0
        %v2787 = vmax.f32 %v2604, 0.0
        %v2788 = vmax.f32 %v2608, 0.0
        %v2789 = vmax.f32 %v2610, 0.0
        %v2790 = vmax.f32 %v2612, 0.0
        %v2791 = vmax.f32 %v2614, 0.0
        %v2792 = vmax.f32 %v2618, 0.0
        %v2793 = vmax.f32 %v2620, 0.0
        %v2794 = vmax.f32 %v2622, 0.0
        %v2795 = vmax.f32 %v2624, 0.0
        %v2796 = vmax.f32 %v2628, 0.0
        %v2797 = vmax.f32 %v2630, 0.0
        %v2798 = vmax.f32 %v2632, 0.0
        %v2799 = vmax.f32 %v2634, 0.0
        %v2800 = vmax.f32 %v2638, 0.0
        %v2801 = vmax.f32 %v2640, 0.0
        %v2802 = vmax.f32 %v2642, 0.0
        %v2803 = vmax.f32 %v2644, 0.0
        %v2804 = vmax.f32 %v2648, 0.0
        %v2805 = vmax.f32 %v2650, 0.0
        %v2806 = vmax.f32 %v2652, 0.0
        %v2807 = vmax.f32 %v2654, 0.0
        %v2808 = vmax.f32 %v2658, 0.0
        %v2809 = vmax.f32 %v2660, 0.0
        %v2810 = vmax.f32 %v2662, 0.0
        %v2811 = vmax.f32 %v2664, 0.0
        %v2812 = vmax.f32 %v2668, 0.0
        %v2813 = vmax.f32 %v2670, 0.0
        %v2814 = vmax.f32 %v2672, 0.0
        %v2815 = vmax.f32 %v2674, 0.0
        %v2816 = vmax.f32 %v2678, 0.0
        %v2817 = vmax.f32 %v2680, 0.0
        %v2818 = vmax.f32 %v2682, 0.0
        %v2819 = vmax.f32 %v2684, 0.0
        %v2820 = vmax.f32 %v2688, 0.0
        %v2821 = vmax.f32 %v2690, 0.0
        %v2822 = vmax.f32 %v2692, 0.0
        %v2823 = vmax.f32 %v2694, 0.0
        %v2824 = vpack.c.bf16 %v2698, %v2696
        %v2825 = vpack.c.bf16 %v2699, %v2697
        %v2826 = vpack.c.bf16 %v2702, %v2700
        %v2827 = vpack.c.bf16 %v2703, %v2701
        %v2828 = vpack.c.bf16 %v2706, %v2704
        %v2829 = vpack.c.bf16 %v2707, %v2705
        %v2830 = vpack.c.bf16 %v2710, %v2708
        %v2831 = vpack.c.bf16 %v2711, %v2709
        %v2832 = vpack.c.bf16 %v2714, %v2712
        %v2833 = vpack.c.bf16 %v2715, %v2713
        %v2834 = vpack.c.bf16 %v2718, %v2716
        %v2835 = vpack.c.bf16 %v2719, %v2717
        %v2836 = vpack.c.bf16 %v2722, %v2720
        %v2837 = vpack.c.bf16 %v2723, %v2721
        %v2838 = vpack.c.bf16 %v2726, %v2724
        %v2839 = vpack.c.bf16 %v2727, %v2725
        %v2840 = vpack.c.bf16 %v2730, %v2728
        %v2841 = vpack.c.bf16 %v2731, %v2729
        %v2842 = vpack.c.bf16 %v2734, %v2732
        %v2843 = vpack.c.bf16 %v2735, %v2733
        %v2844 = vpack.c.bf16 %v2738, %v2736
        %v2845 = vpack.c.bf16 %v2739, %v2737
        %v2846 = vpack.c.bf16 %v2742, %v2740
        %v2847 = vpack.c.bf16 %v2743, %v2741
        %v2848 = vpack.c.bf16 %v2746, %v2744
        %v2849 = vpack.c.bf16 %v2747, %v2745
        %v2850 = vpack.c.bf16 %v2750, %v2748
        %v2851 = vpack.c.bf16 %v2751, %v2749
        %v2852 = vpack.c.bf16 %v2754, %v2752
        %v2853 = vpack.c.bf16 %v2755, %v2753
        %v2854 = vpack.c.bf16 %v2758, %v2756
        %v2855 = vpack.c.bf16 %v2759, %v2757
        %v2856 = vpack.c.bf16 %v2762, %v2760
        %v2857 = vpack.c.bf16 %v2763, %v2761
        %v2858 = vpack.c.bf16 %v2766, %v2764
        %v2859 = vpack.c.bf16 %v2767, %v2765
        %v2860 = vpack.c.bf16 %v2770, %v2768
        %v2861 = vpack.c.bf16 %v2771, %v2769
        %v2862 = vpack.c.bf16 %v2774, %v2772
        %v2863 = vpack.c.bf16 %v2775, %v2773
        %v2864 = vpack.c.bf16 %v2778, %v2776
        %v2865 = vpack.c.bf16 %v2779, %v2777
        %v2866 = vpack.c.bf16 %v2782, %v2780
        %v2867 = vpack.c.bf16 %v2783, %v2781
        %v2868 = vpack.c.bf16 %v2786, %v2784
        %v2869 = vpack.c.bf16 %v2787, %v2785
        %v2870 = vpack.c.bf16 %v2790, %v2788
        %v2871 = vpack.c.bf16 %v2791, %v2789
        %v2872 = vpack.c.bf16 %v2794, %v2792
        %v2873 = vpack.c.bf16 %v2795, %v2793
        %v2874 = vpack.c.bf16 %v2798, %v2796
        %v2875 = vpack.c.bf16 %v2799, %v2797
        %v2876 = vpack.c.bf16 %v2802, %v2800
        %v2877 = vpack.c.bf16 %v2803, %v2801
        %v2878 = vpack.c.bf16 %v2806, %v2804
        %v2879 = vpack.c.bf16 %v2807, %v2805
        %v2880 = vpack.c.bf16 %v2810, %v2808
        %v2881 = vpack.c.bf16 %v2811, %v2809
        %v2882 = vpack.c.bf16 %v2814, %v2812
        %v2883 = vpack.c.bf16 %v2815, %v2813
        %v2884 = vpack.c.bf16 %v2818, %v2816
        %v2885 = vpack.c.bf16 %v2819, %v2817
        %v2886 = vpack.c.bf16 %v2822, %v2820
        %v2887 = vpack.c.bf16 %v2823, %v2821
        %v2888 = vld [vmem:[#allocation10] sm:$0xff]
        %v2889 = vld [vmem:[#allocation10 + $0x8] sm:$0xff]
        %v2890 = vld [vmem:[#allocation10 + $0x10] sm:$0xff]
        %v2891 = vld [vmem:[#allocation10 + $0x18] sm:$0xff]
        %v2892 = vld [vmem:[#allocation10 + $0x20] sm:$0xff]
        %v2893 = vld [vmem:[#allocation10 + $0x28] sm:$0xff]
        %v2894 = vld [vmem:[#allocation10 + $0x30] sm:$0xff]
        %v2895 = vld [vmem:[#allocation10 + $0x38] sm:$0xff]
        %v2896 = vld [vmem:[#allocation10 + $0x40] sm:$0xff]
        %v2897 = vld [vmem:[#allocation10 + $0x48] sm:$0xff]
        %v2898 = vld [vmem:[#allocation10 + $0x50] sm:$0xff]
        %v2899 = vld [vmem:[#allocation10 + $0x58] sm:$0xff]
        %v2900 = vld [vmem:[#allocation10 + $0x60] sm:$0xff]
        %v2901 = vld [vmem:[#allocation10 + $0x68] sm:$0xff]
        %v2902 = vld [vmem:[#allocation10 + $0x70] sm:$0xff]
        %v2903 = vld [vmem:[#allocation10 + $0x78] sm:$0xff]
        %v2904 = vld [vmem:[#allocation10 + $0x80] sm:$0xff]
        %v2905 = vld [vmem:[#allocation10 + $0x88] sm:$0xff]
        %v2906 = vld [vmem:[#allocation10 + $0x90] sm:$0xff]
        %v2907 = vld [vmem:[#allocation10 + $0x98] sm:$0xff]
        %v2908 = vld [vmem:[#allocation10 + $0xa0] sm:$0xff]
        %v2909 = vld [vmem:[#allocation10 + $0xa8] sm:$0xff]
        %v2910 = vld [vmem:[#allocation10 + $0xb0] sm:$0xff]
        %v2911 = vld [vmem:[#allocation10 + $0xb8] sm:$0xff]
        %v2912 = vld [vmem:[#allocation10 + $0xc0] sm:$0xff]
        %v2913 = vld [vmem:[#allocation10 + $0xc8] sm:$0xff]
        %v2914 = vld [vmem:[#allocation10 + $0xd0] sm:$0xff]
        %v2915 = vld [vmem:[#allocation10 + $0xd8] sm:$0xff]
        %v2916 = vld [vmem:[#allocation10 + $0xe0] sm:$0xff]
        %v2917 = vld [vmem:[#allocation10 + $0xe8] sm:$0xff]
        %v2918 = vld [vmem:[#allocation10 + $0xf0] sm:$0xff]
        %v2919 = vld [vmem:[#allocation10 + $0xf8] sm:$0xff]
        %v2920 = vld [vmem:[%s8] sm:$0x3]
        %v2922 = vlaneseq
        %v2923 = vshrl.u32 %v2922, 7
        %v2924 = vsub.s32 0, %v2923
        %v2925 = vrot.slane %v2920, %v2924
        %v2926 = vlaneseq
        %v2927 = vshrl.u32 %v2926, 7
        %v2928 = vsub.s32 1, %v2927
        %v2929 = vrot.slane %v2920, %v2928
        %v2964 = vunpack.c.l.b16 %v2888
        %v2965 = vunpack.c.h.b16 %v2888
        %v2966 = vunpack.c.l.b16 %v2889
        %v2967 = vunpack.c.h.b16 %v2889
        %v2968 = vunpack.c.l.b16 %v2890
        %v2969 = vunpack.c.h.b16 %v2890
        %v2970 = vunpack.c.l.b16 %v2891
        %v2971 = vunpack.c.h.b16 %v2891
        %v2972 = vunpack.c.l.b16 %v2892
        %v2973 = vunpack.c.h.b16 %v2892
        %v2974 = vunpack.c.l.b16 %v2893
        %v2975 = vunpack.c.h.b16 %v2893
        %v2976 = vunpack.c.l.b16 %v2894
        %v2977 = vunpack.c.h.b16 %v2894
        %v2978 = vunpack.c.l.b16 %v2895
        %v2979 = vunpack.c.h.b16 %v2895
        %v2980 = vunpack.c.l.b16 %v2896
        %v2981 = vunpack.c.h.b16 %v2896
        %v2982 = vunpack.c.l.b16 %v2897
        %v2983 = vunpack.c.h.b16 %v2897
        %v2984 = vunpack.c.l.b16 %v2898
        %v2985 = vunpack.c.h.b16 %v2898
        %v2986 = vunpack.c.l.b16 %v2899
        %v2987 = vunpack.c.h.b16 %v2899
        %v2988 = vunpack.c.l.b16 %v2900
        %v2989 = vunpack.c.h.b16 %v2900
        %v2990 = vunpack.c.l.b16 %v2901
        %v2991 = vunpack.c.h.b16 %v2901
        %v2992 = vunpack.c.l.b16 %v2902
        %v2993 = vunpack.c.h.b16 %v2902
        %v2994 = vunpack.c.l.b16 %v2903
        %v2995 = vunpack.c.h.b16 %v2903
        %v2996 = vunpack.c.l.b16 %v2904
        %v2997 = vunpack.c.h.b16 %v2904
        %v2998 = vunpack.c.l.b16 %v2905
        %v2999 = vunpack.c.h.b16 %v2905
        %v3000 = vunpack.c.l.b16 %v2906
        %v3001 = vunpack.c.h.b16 %v2906
        %v3002 = vunpack.c.l.b16 %v2907
        %v3003 = vunpack.c.h.b16 %v2907
        %v3004 = vunpack.c.l.b16 %v2908
        %v3005 = vunpack.c.h.b16 %v2908
        %v3006 = vunpack.c.l.b16 %v2909
        %v3007 = vunpack.c.h.b16 %v2909
        %v3008 = vunpack.c.l.b16 %v2910
        %v3009 = vunpack.c.h.b16 %v2910
        %v3010 = vunpack.c.l.b16 %v2911
        %v3011 = vunpack.c.h.b16 %v2911
        %v3012 = vunpack.c.l.b16 %v2912
        %v3013 = vunpack.c.h.b16 %v2912
        %v3014 = vunpack.c.l.b16 %v2913
        %v3015 = vunpack.c.h.b16 %v2913
        %v3016 = vunpack.c.l.b16 %v2914
        %v3017 = vunpack.c.h.b16 %v2914
        %v3018 = vunpack.c.l.b16 %v2915
        %v3019 = vunpack.c.h.b16 %v2915
        %v3020 = vunpack.c.l.b16 %v2916
        %v3021 = vunpack.c.h.b16 %v2916
        %v3022 = vunpack.c.l.b16 %v2917
        %v3023 = vunpack.c.h.b16 %v2917
        %v3024 = vunpack.c.l.b16 %v2918
        %v3025 = vunpack.c.h.b16 %v2918
        %v3026 = vunpack.c.l.b16 %v2919
        %v3027 = vunpack.c.h.b16 %v2919
        %v3028 = vpack.c.b16 %v2966, %v2964
        %v3029 = vpack.c.b16 %v2967, %v2965
        %v3030 = vpack.c.b16 %v2970, %v2968
        %v3031 = vpack.c.b16 %v2971, %v2969
        %v3032 = vpack.c.b16 %v2974, %v2972
        %v3033 = vpack.c.b16 %v2975, %v2973
        %v3034 = vpack.c.b16 %v2978, %v2976
        %v3035 = vpack.c.b16 %v2979, %v2977
        %v3036 = vpack.c.b16 %v2982, %v2980
        %v3037 = vpack.c.b16 %v2983, %v2981
        %v3038 = vpack.c.b16 %v2986, %v2984
        %v3039 = vpack.c.b16 %v2987, %v2985
        %v3040 = vpack.c.b16 %v2990, %v2988
        %v3041 = vpack.c.b16 %v2991, %v2989
        %v3042 = vpack.c.b16 %v2994, %v2992
        %v3043 = vpack.c.b16 %v2995, %v2993
        %v3044 = vpack.c.b16 %v2998, %v2996
        %v3045 = vpack.c.b16 %v2999, %v2997
        %v3046 = vpack.c.b16 %v3002, %v3000
        %v3047 = vpack.c.b16 %v3003, %v3001
        %v3048 = vpack.c.b16 %v3006, %v3004
        %v3049 = vpack.c.b16 %v3007, %v3005
        %v3050 = vpack.c.b16 %v3010, %v3008
        %v3051 = vpack.c.b16 %v3011, %v3009
        %v3052 = vpack.c.b16 %v3014, %v3012
        %v3053 = vpack.c.b16 %v3015, %v3013
        %v3054 = vpack.c.b16 %v3018, %v3016
        %v3055 = vpack.c.b16 %v3019, %v3017
        %v3056 = vpack.c.b16 %v3022, %v3020
        %v3057 = vpack.c.b16 %v3023, %v3021
        %v3058 = vpack.c.b16 %v3026, %v3024
        %v3059 = vpack.c.b16 %v3027, %v3025
        %3092 = vmatprep.subr.bf16.mxu0 %v3029
        %3093 = vmatpush1.bf16.msra.mxu0 %v3028
        %3094 = vmatprep.subr.bf16.mxu0 %v3031
        %3095 = vmatpush1.bf16.msra.mxu0 %v3030
        %3096 = vmatprep.subr.bf16.mxu0 %v3033
        %3097 = vmatpush1.bf16.msra.mxu0 %v3032
        %3098 = vmatprep.subr.bf16.mxu0 %v3035
        %3099 = vmatpush1.bf16.msra.mxu0 %v3034
        %3100 = vmatprep.subr.bf16.mxu0 %v3037
        %3101 = vmatpush1.bf16.msra.mxu0 %v3036
        %3102 = vmatprep.subr.bf16.mxu0 %v3039
        %3103 = vmatpush1.bf16.msra.mxu0 %v3038
        %3104 = vmatprep.subr.bf16.mxu0 %v3041
        %3105 = vmatpush1.bf16.msra.mxu0 %v3040
        %3106 = vmatprep.subr.bf16.mxu0 %v3043
        %3107 = vmatpush1.bf16.msra.mxu0 %v3042
        %3108 = vmatprep.subr.bf16.mxu0 %v3045
        %3109 = vmatpush1.bf16.msra.mxu0 %v3044
        %3110 = vmatprep.subr.bf16.mxu0 %v3047
        %3111 = vmatpush1.bf16.msra.mxu0 %v3046
        %3112 = vmatprep.subr.bf16.mxu0 %v3049
        %3113 = vmatpush1.bf16.msra.mxu0 %v3048
        %3114 = vmatprep.subr.bf16.mxu0 %v3051
        %3115 = vmatpush1.bf16.msra.mxu0 %v3050
        %3116 = vmatprep.subr.bf16.mxu0 %v3053
        %3117 = vmatpush1.bf16.msra.mxu0 %v3052
        %3118 = vmatprep.subr.bf16.mxu0 %v3055
        %3119 = vmatpush1.bf16.msra.mxu0 %v3054
        %3120 = vmatprep.subr.bf16.mxu0 %v3057
        %3121 = vmatpush1.bf16.msra.mxu0 %v3056
        %3122 = vmatprep.subr.bf16.mxu0 %v3059
        %3123 = vmatpush1.bf16.msra.mxu0 %v3058
        %3124 = vmatprep.mubr.bf16.mxu0 %v2825
        %3125 = vmatmul.mubr.bf16.gmra.mrb[0].mxu0 %v2824
        %v3126 = vpop.f32.mrb[0].mxu0
        %v3127 = vadd.f32 %v2925, %v3126
        %v3128 = vpop.f32.mrb[0].mxu0
        %v3129 = vadd.f32 %v2929, %v3128
        %v3130 = vpop.f32.mrb[0].mxu0
        %v3131 = vadd.f32 %v2925, %v3130
        %v3132 = vpop.f32.mrb[0].mxu0
        %v3133 = vadd.f32 %v2929, %v3132
        %3134 = vmatprep.mubr.bf16.mxu0 %v2827
        %3135 = vmatmul.mubr.bf16.gmra.mrb[0].mxu0 %v2826
        %v3136 = vpop.f32.mrb[0].mxu0
        %v3137 = vadd.f32 %v2925, %v3136
        %v3138 = vpop.f32.mrb[0].mxu0
        %v3139 = vadd.f32 %v2929, %v3138
        %v3140 = vpop.f32.mrb[0].mxu0
        %v3141 = vadd.f32 %v2925, %v3140
        %v3142 = vpop.f32.mrb[0].mxu0
        %v3143 = vadd.f32 %v2929, %v3142
        %3144 = vmatprep.mubr.bf16.mxu0 %v2829
        %3145 = vmatmul.mubr.bf16.gmra.mrb[0].mxu0 %v2828
        %v3146 = vpop.f32.mrb[0].mxu0
        %v3147 = vadd.f32 %v2925, %v3146
        %v3148 = vpop.f32.mrb[0].mxu0
        %v3149 = vadd.f32 %v2929, %v3148
        %v3150 = vpop.f32.mrb[0].mxu0
        %v3151 = vadd.f32 %v2925, %v3150
        %v3152 = vpop.f32.mrb[0].mxu0
        %v3153 = vadd.f32 %v2929, %v3152
        %3154 = vmatprep.mubr.bf16.mxu0 %v2831
        %3155 = vmatmul.mubr.bf16.gmra.mrb[0].mxu0 %v2830
        %v3156 = vpop.f32.mrb[0].mxu0
        %v3157 = vadd.f32 %v2925, %v3156
        %v3158 = vpop.f32.mrb[0].mxu0
        %v3159 = vadd.f32 %v2929, %v3158
        %v3160 = vpop.f32.mrb[0].mxu0
        %v3161 = vadd.f32 %v2925, %v3160
        %v3162 = vpop.f32.mrb[0].mxu0
        %v3163 = vadd.f32 %v2929, %v3162
        %3164 = vmatprep.mubr.bf16.mxu0 %v2833
        %3165 = vmatmul.mubr.bf16.gmra.mrb[0].mxu0 %v2832
        %v3166 = vpop.f32.mrb[0].mxu0
        %v3167 = vadd.f32 %v2925, %v3166
        %v3168 = vpop.f32.mrb[0].mxu0
        %v3169 = vadd.f32 %v2929, %v3168
        %v3170 = vpop.f32.mrb[0].mxu0
        %v3171 = vadd.f32 %v2925, %v3170
        %v3172 = vpop.f32.mrb[0].mxu0
        %v3173 = vadd.f32 %v2929, %v3172
        %3174 = vmatprep.mubr.bf16.mxu0 %v2835
        %3175 = vmatmul.mubr.bf16.gmra.mrb[0].mxu0 %v2834
        %v3176 = vpop.f32.mrb[0].mxu0
        %v3177 = vadd.f32 %v2925, %v3176
        %v3178 = vpop.f32.mrb[0].mxu0
        %v3179 = vadd.f32 %v2929, %v3178
        %v3180 = vpop.f32.mrb[0].mxu0
        %v3181 = vadd.f32 %v2925, %v3180
        %v3182 = vpop.f32.mrb[0].mxu0
        %v3183 = vadd.f32 %v2929, %v3182
        %3184 = vmatprep.mubr.bf16.mxu0 %v2837
        %3185 = vmatmul.mubr.bf16.gmra.mrb[0].mxu0 %v2836
        %v3186 = vpop.f32.mrb[0].mxu0
        %v3187 = vadd.f32 %v2925, %v3186
        %v3188 = vpop.f32.mrb[0].mxu0
        %v3189 = vadd.f32 %v2929, %v3188
        %v3190 = vpop.f32.mrb[0].mxu0
        %v3191 = vadd.f32 %v2925, %v3190
        %v3192 = vpop.f32.mrb[0].mxu0
        %v3193 = vadd.f32 %v2929, %v3192
        %3194 = vmatprep.mubr.bf16.mxu0 %v2839
        %3195 = vmatmul.mubr.bf16.gmra.mrb[0].mxu0 %v2838
        %v3196 = vpop.f32.mrb[0].mxu0
        %v3197 = vadd.f32 %v2925, %v3196
        %v3198 = vpop.f32.mrb[0].mxu0
        %v3199 = vadd.f32 %v2929, %v3198
        %v3200 = vpop.f32.mrb[0].mxu0
        %v3201 = vadd.f32 %v2925, %v3200
        %v3202 = vpop.f32.mrb[0].mxu0
        %v3203 = vadd.f32 %v2929, %v3202
        %3204 = vmatprep.mubr.bf16.mxu0 %v2841
        %3205 = vmatmul.mubr.bf16.gmra.mrb[0].mxu0 %v2840
        %v3206 = vpop.f32.mrb[0].mxu0
        %v3207 = vadd.f32 %v2925, %v3206
        %v3208 = vpop.f32.mrb[0].mxu0
        %v3209 = vadd.f32 %v2929, %v3208
        %v3210 = vpop.f32.mrb[0].mxu0
        %v3211 = vadd.f32 %v2925, %v3210
        %v3212 = vpop.f32.mrb[0].mxu0
        %v3213 = vadd.f32 %v2929, %v3212
        %3214 = vmatprep.mubr.bf16.mxu0 %v2843
        %3215 = vmatmul.mubr.bf16.gmra.mrb[0].mxu0 %v2842
        %v3216 = vpop.f32.mrb[0].mxu0
        %v3217 = vadd.f32 %v2925, %v3216
        %v3218 = vpop.f32.mrb[0].mxu0
        %v3219 = vadd.f32 %v2929, %v3218
        %v3220 = vpop.f32.mrb[0].mxu0
        %v3221 = vadd.f32 %v2925, %v3220
        %v3222 = vpop.f32.mrb[0].mxu0
        %v3223 = vadd.f32 %v2929, %v3222
        %3224 = vmatprep.mubr.bf16.mxu0 %v2845
        %3225 = vmatmul.mubr.bf16.gmra.mrb[0].mxu0 %v2844
        %v3226 = vpop.f32.mrb[0].mxu0
        %v3227 = vadd.f32 %v2925, %v3226
        %v3228 = vpop.f32.mrb[0].mxu0
        %v3229 = vadd.f32 %v2929, %v3228
        %v3230 = vpop.f32.mrb[0].mxu0
        %v3231 = vadd.f32 %v2925, %v3230
        %v3232 = vpop.f32.mrb[0].mxu0
        %v3233 = vadd.f32 %v2929, %v3232
        %3234 = vmatprep.mubr.bf16.mxu0 %v2847
        %3235 = vmatmul.mubr.bf16.gmra.mrb[0].mxu0 %v2846
        %v3236 = vpop.f32.mrb[0].mxu0
        %v3237 = vadd.f32 %v2925, %v3236
        %v3238 = vpop.f32.mrb[0].mxu0
        %v3239 = vadd.f32 %v2929, %v3238
        %v3240 = vpop.f32.mrb[0].mxu0
        %v3241 = vadd.f32 %v2925, %v3240
        %v3242 = vpop.f32.mrb[0].mxu0
        %v3243 = vadd.f32 %v2929, %v3242
        %3244 = vmatprep.mubr.bf16.mxu0 %v2849
        %3245 = vmatmul.mubr.bf16.gmra.mrb[0].mxu0 %v2848
        %v3246 = vpop.f32.mrb[0].mxu0
        %v3247 = vadd.f32 %v2925, %v3246
        %v3248 = vpop.f32.mrb[0].mxu0
        %v3249 = vadd.f32 %v2929, %v3248
        %v3250 = vpop.f32.mrb[0].mxu0
        %v3251 = vadd.f32 %v2925, %v3250
        %v3252 = vpop.f32.mrb[0].mxu0
        %v3253 = vadd.f32 %v2929, %v3252
        %3254 = vmatprep.mubr.bf16.mxu0 %v2851
        %3255 = vmatmul.mubr.bf16.gmra.mrb[0].mxu0 %v2850
        %v3256 = vpop.f32.mrb[0].mxu0
        %v3257 = vadd.f32 %v2925, %v3256
        %v3258 = vpop.f32.mrb[0].mxu0
        %v3259 = vadd.f32 %v2929, %v3258
        %v3260 = vpop.f32.mrb[0].mxu0
        %v3261 = vadd.f32 %v2925, %v3260
        %v3262 = vpop.f32.mrb[0].mxu0
        %v3263 = vadd.f32 %v2929, %v3262
        %3264 = vmatprep.mubr.bf16.mxu0 %v2853
        %3265 = vmatmul.mubr.bf16.gmra.mrb[0].mxu0 %v2852
        %v3266 = vpop.f32.mrb[0].mxu0
        %v3267 = vadd.f32 %v2925, %v3266
        %v3268 = vpop.f32.mrb[0].mxu0
        %v3269 = vadd.f32 %v2929, %v3268
        %v3270 = vpop.f32.mrb[0].mxu0
        %v3271 = vadd.f32 %v2925, %v3270
        %v3272 = vpop.f32.mrb[0].mxu0
        %v3273 = vadd.f32 %v2929, %v3272
        %3274 = vmatprep.mubr.bf16.mxu0 %v2855
        %3275 = vmatmul.mubr.bf16.gmra.mrb[0].mxu0 %v2854
        %v3276 = vpop.f32.mrb[0].mxu0
        %v3277 = vadd.f32 %v2925, %v3276
        %v3278 = vpop.f32.mrb[0].mxu0
        %v3279 = vadd.f32 %v2929, %v3278
        %v3280 = vpop.f32.mrb[0].mxu0
        %v3281 = vadd.f32 %v2925, %v3280
        %v3282 = vpop.f32.mrb[0].mxu0
        %v3283 = vadd.f32 %v2929, %v3282
        %3284 = vmatprep.mubr.bf16.mxu0 %v2857
        %3285 = vmatmul.mubr.bf16.gmra.mrb[0].mxu0 %v2856
        %v3286 = vpop.f32.mrb[0].mxu0
        %v3287 = vadd.f32 %v2925, %v3286
        %v3288 = vpop.f32.mrb[0].mxu0
        %v3289 = vadd.f32 %v2929, %v3288
        %v3290 = vpop.f32.mrb[0].mxu0
        %v3291 = vadd.f32 %v2925, %v3290
        %v3292 = vpop.f32.mrb[0].mxu0
        %v3293 = vadd.f32 %v2929, %v3292
        %3294 = vmatprep.mubr.bf16.mxu0 %v2859
        %3295 = vmatmul.mubr.bf16.gmra.mrb[0].mxu0 %v2858
        %v3296 = vpop.f32.mrb[0].mxu0
        %v3297 = vadd.f32 %v2925, %v3296
        %v3298 = vpop.f32.mrb[0].mxu0
        %v3299 = vadd.f32 %v2929, %v3298
        %v3300 = vpop.f32.mrb[0].mxu0
        %v3301 = vadd.f32 %v2925, %v3300
        %v3302 = vpop.f32.mrb[0].mxu0
        %v3303 = vadd.f32 %v2929, %v3302
        %3304 = vmatprep.mubr.bf16.mxu0 %v2861
        %3305 = vmatmul.mubr.bf16.gmra.mrb[0].mxu0 %v2860
        %v3306 = vpop.f32.mrb[0].mxu0
        %v3307 = vadd.f32 %v2925, %v3306
        %v3308 = vpop.f32.mrb[0].mxu0
        %v3309 = vadd.f32 %v2929, %v3308
        %v3310 = vpop.f32.mrb[0].mxu0
        %v3311 = vadd.f32 %v2925, %v3310
        %v3312 = vpop.f32.mrb[0].mxu0
        %v3313 = vadd.f32 %v2929, %v3312
        %3314 = vmatprep.mubr.bf16.mxu0 %v2863
        %3315 = vmatmul.mubr.bf16.gmra.mrb[0].mxu0 %v2862
        %v3316 = vpop.f32.mrb[0].mxu0
        %v3317 = vadd.f32 %v2925, %v3316
        %v3318 = vpop.f32.mrb[0].mxu0
        %v3319 = vadd.f32 %v2929, %v3318
        %v3320 = vpop.f32.mrb[0].mxu0
        %v3321 = vadd.f32 %v2925, %v3320
        %v3322 = vpop.f32.mrb[0].mxu0
        %v3323 = vadd.f32 %v2929, %v3322
        %3324 = vmatprep.mubr.bf16.mxu0 %v2865
        %3325 = vmatmul.mubr.bf16.gmra.mrb[0].mxu0 %v2864
        %v3326 = vpop.f32.mrb[0].mxu0
        %v3327 = vadd.f32 %v2925, %v3326
        %v3328 = vpop.f32.mrb[0].mxu0
        %v3329 = vadd.f32 %v2929, %v3328
        %v3330 = vpop.f32.mrb[0].mxu0
        %v3331 = vadd.f32 %v2925, %v3330
        %v3332 = vpop.f32.mrb[0].mxu0
        %v3333 = vadd.f32 %v2929, %v3332
        %3334 = vmatprep.mubr.bf16.mxu0 %v2867
        %3335 = vmatmul.mubr.bf16.gmra.mrb[0].mxu0 %v2866
        %v3336 = vpop.f32.mrb[0].mxu0
        %v3337 = vadd.f32 %v2925, %v3336
        %v3338 = vpop.f32.mrb[0].mxu0
        %v3339 = vadd.f32 %v2929, %v3338
        %v3340 = vpop.f32.mrb[0].mxu0
        %v3341 = vadd.f32 %v2925, %v3340
        %v3342 = vpop.f32.mrb[0].mxu0
        %v3343 = vadd.f32 %v2929, %v3342
        %3344 = vmatprep.mubr.bf16.mxu0 %v2869
        %3345 = vmatmul.mubr.bf16.gmra.mrb[0].mxu0 %v2868
        %v3346 = vpop.f32.mrb[0].mxu0
        %v3347 = vadd.f32 %v2925, %v3346
        %v3348 = vpop.f32.mrb[0].mxu0
        %v3349 = vadd.f32 %v2929, %v3348
        %v3350 = vpop.f32.mrb[0].mxu0
        %v3351 = vadd.f32 %v2925, %v3350
        %v3352 = vpop.f32.mrb[0].mxu0
        %v3353 = vadd.f32 %v2929, %v3352
        %3354 = vmatprep.mubr.bf16.mxu0 %v2871
        %3355 = vmatmul.mubr.bf16.gmra.mrb[0].mxu0 %v2870
        %v3356 = vpop.f32.mrb[0].mxu0
        %v3357 = vadd.f32 %v2925, %v3356
        %v3358 = vpop.f32.mrb[0].mxu0
        %v3359 = vadd.f32 %v2929, %v3358
        %v3360 = vpop.f32.mrb[0].mxu0
        %v3361 = vadd.f32 %v2925, %v3360
        %v3362 = vpop.f32.mrb[0].mxu0
        %v3363 = vadd.f32 %v2929, %v3362
        %3364 = vmatprep.mubr.bf16.mxu0 %v2873
        %3365 = vmatmul.mubr.bf16.gmra.mrb[0].mxu0 %v2872
        %v3366 = vpop.f32.mrb[0].mxu0
        %v3367 = vadd.f32 %v2925, %v3366
        %v3368 = vpop.f32.mrb[0].mxu0
        %v3369 = vadd.f32 %v2929, %v3368
        %v3370 = vpop.f32.mrb[0].mxu0
        %v3371 = vadd.f32 %v2925, %v3370
        %v3372 = vpop.f32.mrb[0].mxu0
        %v3373 = vadd.f32 %v2929, %v3372
        %3374 = vmatprep.mubr.bf16.mxu0 %v2875
        %3375 = vmatmul.mubr.bf16.gmra.mrb[0].mxu0 %v2874
        %v3376 = vpop.f32.mrb[0].mxu0
        %v3377 = vadd.f32 %v2925, %v3376
        %v3378 = vpop.f32.mrb[0].mxu0
        %v3379 = vadd.f32 %v2929, %v3378
        %v3380 = vpop.f32.mrb[0].mxu0
        %v3381 = vadd.f32 %v2925, %v3380
        %v3382 = vpop.f32.mrb[0].mxu0
        %v3383 = vadd.f32 %v2929, %v3382
        %3384 = vmatprep.mubr.bf16.mxu0 %v2877
        %3385 = vmatmul.mubr.bf16.gmra.mrb[0].mxu0 %v2876
        %v3386 = vpop.f32.mrb[0].mxu0
        %v3387 = vadd.f32 %v2925, %v3386
        %v3388 = vpop.f32.mrb[0].mxu0
        %v3389 = vadd.f32 %v2929, %v3388
        %v3390 = vpop.f32.mrb[0].mxu0
        %v3391 = vadd.f32 %v2925, %v3390
        %v3392 = vpop.f32.mrb[0].mxu0
        %v3393 = vadd.f32 %v2929, %v3392
        %3394 = vmatprep.mubr.bf16.mxu0 %v2879
        %3395 = vmatmul.mubr.bf16.gmra.mrb[0].mxu0 %v2878
        %v3396 = vpop.f32.mrb[0].mxu0
        %v3397 = vadd.f32 %v2925, %v3396
        %v3398 = vpop.f32.mrb[0].mxu0
        %v3399 = vadd.f32 %v2929, %v3398
        %v3400 = vpop.f32.mrb[0].mxu0
        %v3401 = vadd.f32 %v2925, %v3400
        %v3402 = vpop.f32.mrb[0].mxu0
        %v3403 = vadd.f32 %v2929, %v3402
        %3404 = vmatprep.mubr.bf16.mxu0 %v2881
        %3405 = vmatmul.mubr.bf16.gmra.mrb[0].mxu0 %v2880
        %v3406 = vpop.f32.mrb[0].mxu0
        %v3407 = vadd.f32 %v2925, %v3406
        %v3408 = vpop.f32.mrb[0].mxu0
        %v3409 = vadd.f32 %v2929, %v3408
        %v3410 = vpop.f32.mrb[0].mxu0
        %v3411 = vadd.f32 %v2925, %v3410
        %v3412 = vpop.f32.mrb[0].mxu0
        %v3413 = vadd.f32 %v2929, %v3412
        %3414 = vmatprep.mubr.bf16.mxu0 %v2883
        %3415 = vmatmul.mubr.bf16.gmra.mrb[0].mxu0 %v2882
        %v3416 = vpop.f32.mrb[0].mxu0
        %v3417 = vadd.f32 %v2925, %v3416
        %v3418 = vpop.f32.mrb[0].mxu0
        %v3419 = vadd.f32 %v2929, %v3418
        %v3420 = vpop.f32.mrb[0].mxu0
        %v3421 = vadd.f32 %v2925, %v3420
        %v3422 = vpop.f32.mrb[0].mxu0
        %v3423 = vadd.f32 %v2929, %v3422
        %3424 = vmatprep.mubr.bf16.mxu0 %v2885
        %3425 = vmatmul.mubr.bf16.gmra.mrb[0].mxu0 %v2884
        %v3426 = vpop.f32.mrb[0].mxu0
        %v3427 = vadd.f32 %v2925, %v3426
        %v3428 = vpop.f32.mrb[0].mxu0
        %v3429 = vadd.f32 %v2929, %v3428
        %v3430 = vpop.f32.mrb[0].mxu0
        %v3431 = vadd.f32 %v2925, %v3430
        %v3432 = vpop.f32.mrb[0].mxu0
        %v3433 = vadd.f32 %v2929, %v3432
        %3434 = vmatprep.mubr.bf16.mxu0 %v2887
        %3435 = vmatmul.mubr.bf16.gmra.mrb[0].mxu0 %v2886
        %v3436 = vpop.f32.mrb[0].mxu0
        %v3437 = vadd.f32 %v2925, %v3436
        %v3438 = vpop.f32.mrb[0].mxu0
        %v3439 = vadd.f32 %v2929, %v3438
        %v3440 = vpop.f32.mrb[0].mxu0
        %v3441 = vadd.f32 %v2925, %v3440
        %v3442 = vpop.f32.mrb[0].mxu0
        %v3443 = vadd.f32 %v2929, %v3442
        %3444 = vdwg.mxu0
        %v3445 = vmax.f32 %v3127, 0.0
        %v3446 = vmax.f32 %v3129, 0.0
        %v3447 = vmax.f32 %v3131, 0.0
        %v3448 = vmax.f32 %v3133, 0.0
        %v3449 = vmax.f32 %v3137, 0.0
        %v3450 = vmax.f32 %v3139, 0.0
        %v3451 = vmax.f32 %v3141, 0.0
        %v3452 = vmax.f32 %v3143, 0.0
        %v3453 = vmax.f32 %v3147, 0.0
        %v3454 = vmax.f32 %v3149, 0.0
        %v3455 = vmax.f32 %v3151, 0.0
        %v3456 = vmax.f32 %v3153, 0.0
        %v3457 = vmax.f32 %v3157, 0.0
        %v3458 = vmax.f32 %v3159, 0.0
        %v3459 = vmax.f32 %v3161, 0.0
        %v3460 = vmax.f32 %v3163, 0.0
        %v3461 = vmax.f32 %v3167, 0.0
        %v3462 = vmax.f32 %v3169, 0.0
        %v3463 = vmax.f32 %v3171, 0.0
        %v3464 = vmax.f32 %v3173, 0.0
        %v3465 = vmax.f32 %v3177, 0.0
        %v3466 = vmax.f32 %v3179, 0.0
        %v3467 = vmax.f32 %v3181, 0.0
        %v3468 = vmax.f32 %v3183, 0.0
        %v3469 = vmax.f32 %v3187, 0.0
        %v3470 = vmax.f32 %v3189, 0.0
        %v3471 = vmax.f32 %v3191, 0.0
        %v3472 = vmax.f32 %v3193, 0.0
        %v3473 = vmax.f32 %v3197, 0.0
        %v3474 = vmax.f32 %v3199, 0.0
        %v3475 = vmax.f32 %v3201, 0.0
        %v3476 = vmax.f32 %v3203, 0.0
        %v3477 = vmax.f32 %v3207, 0.0
        %v3478 = vmax.f32 %v3209, 0.0
        %v3479 = vmax.f32 %v3211, 0.0
        %v3480 = vmax.f32 %v3213, 0.0
        %v3481 = vmax.f32 %v3217, 0.0
        %v3482 = vmax.f32 %v3219, 0.0
        %v3483 = vmax.f32 %v3221, 0.0
        %v3484 = vmax.f32 %v3223, 0.0
        %v3485 = vmax.f32 %v3227, 0.0
        %v3486 = vmax.f32 %v3229, 0.0
        %v3487 = vmax.f32 %v3231, 0.0
        %v3488 = vmax.f32 %v3233, 0.0
        %v3489 = vmax.f32 %v3237, 0.0
        %v3490 = vmax.f32 %v3239, 0.0
        %v3491 = vmax.f32 %v3241, 0.0
        %v3492 = vmax.f32 %v3243, 0.0
        %v3493 = vmax.f32 %v3247, 0.0
        %v3494 = vmax.f32 %v3249, 0.0
        %v3495 = vmax.f32 %v3251, 0.0
        %v3496 = vmax.f32 %v3253, 0.0
        %v3497 = vmax.f32 %v3257, 0.0
        %v3498 = vmax.f32 %v3259, 0.0
        %v3499 = vmax.f32 %v3261, 0.0
        %v3500 = vmax.f32 %v3263, 0.0
        %v3501 = vmax.f32 %v3267, 0.0
        %v3502 = vmax.f32 %v3269, 0.0
        %v3503 = vmax.f32 %v3271, 0.0
        %v3504 = vmax.f32 %v3273, 0.0
        %v3505 = vmax.f32 %v3277, 0.0
        %v3506 = vmax.f32 %v3279, 0.0
        %v3507 = vmax.f32 %v3281, 0.0
        %v3508 = vmax.f32 %v3283, 0.0
        %v3509 = vmax.f32 %v3287, 0.0
        %v3510 = vmax.f32 %v3289, 0.0
        %v3511 = vmax.f32 %v3291, 0.0
        %v3512 = vmax.f32 %v3293, 0.0
        %v3513 = vmax.f32 %v3297, 0.0
        %v3514 = vmax.f32 %v3299, 0.0
        %v3515 = vmax.f32 %v3301, 0.0
        %v3516 = vmax.f32 %v3303, 0.0
        %v3517 = vmax.f32 %v3307, 0.0
        %v3518 = vmax.f32 %v3309, 0.0
        %v3519 = vmax.f32 %v3311, 0.0
        %v3520 = vmax.f32 %v3313, 0.0
        %v3521 = vmax.f32 %v3317, 0.0
        %v3522 = vmax.f32 %v3319, 0.0
        %v3523 = vmax.f32 %v3321, 0.0
        %v3524 = vmax.f32 %v3323, 0.0
        %v3525 = vmax.f32 %v3327, 0.0
        %v3526 = vmax.f32 %v3329, 0.0
        %v3527 = vmax.f32 %v3331, 0.0
        %v3528 = vmax.f32 %v3333, 0.0
        %v3529 = vmax.f32 %v3337, 0.0
        %v3530 = vmax.f32 %v3339, 0.0
        %v3531 = vmax.f32 %v3341, 0.0
        %v3532 = vmax.f32 %v3343, 0.0
        %v3533 = vmax.f32 %v3347, 0.0
        %v3534 = vmax.f32 %v3349, 0.0
        %v3535 = vmax.f32 %v3351, 0.0
        %v3536 = vmax.f32 %v3353, 0.0
        %v3537 = vmax.f32 %v3357, 0.0
        %v3538 = vmax.f32 %v3359, 0.0
        %v3539 = vmax.f32 %v3361, 0.0
        %v3540 = vmax.f32 %v3363, 0.0
        %v3541 = vmax.f32 %v3367, 0.0
        %v3542 = vmax.f32 %v3369, 0.0
        %v3543 = vmax.f32 %v3371, 0.0
        %v3544 = vmax.f32 %v3373, 0.0
        %v3545 = vmax.f32 %v3377, 0.0
        %v3546 = vmax.f32 %v3379, 0.0
        %v3547 = vmax.f32 %v3381, 0.0
        %v3548 = vmax.f32 %v3383, 0.0
        %v3549 = vmax.f32 %v3387, 0.0
        %v3550 = vmax.f32 %v3389, 0.0
        %v3551 = vmax.f32 %v3391, 0.0
        %v3552 = vmax.f32 %v3393, 0.0
        %v3553 = vmax.f32 %v3397, 0.0
        %v3554 = vmax.f32 %v3399, 0.0
        %v3555 = vmax.f32 %v3401, 0.0
        %v3556 = vmax.f32 %v3403, 0.0
        %v3557 = vmax.f32 %v3407, 0.0
        %v3558 = vmax.f32 %v3409, 0.0
        %v3559 = vmax.f32 %v3411, 0.0
        %v3560 = vmax.f32 %v3413, 0.0
        %v3561 = vmax.f32 %v3417, 0.0
        %v3562 = vmax.f32 %v3419, 0.0
        %v3563 = vmax.f32 %v3421, 0.0
        %v3564 = vmax.f32 %v3423, 0.0
        %v3565 = vmax.f32 %v3427, 0.0
        %v3566 = vmax.f32 %v3429, 0.0
        %v3567 = vmax.f32 %v3431, 0.0
        %v3568 = vmax.f32 %v3433, 0.0
        %v3569 = vmax.f32 %v3437, 0.0
        %v3570 = vmax.f32 %v3439, 0.0
        %v3571 = vmax.f32 %v3441, 0.0
        %v3572 = vmax.f32 %v3443, 0.0
        %v3573 = vpack.c.bf16 %v3447, %v3445
        %v3574 = vpack.c.bf16 %v3448, %v3446
        %v3575 = vpack.c.bf16 %v3451, %v3449
        %v3576 = vpack.c.bf16 %v3452, %v3450
        %v3577 = vpack.c.bf16 %v3455, %v3453
        %v3578 = vpack.c.bf16 %v3456, %v3454
        %v3579 = vpack.c.bf16 %v3459, %v3457
        %v3580 = vpack.c.bf16 %v3460, %v3458
        %v3581 = vpack.c.bf16 %v3463, %v3461
        %v3582 = vpack.c.bf16 %v3464, %v3462
        %v3583 = vpack.c.bf16 %v3467, %v3465
        %v3584 = vpack.c.bf16 %v3468, %v3466
        %v3585 = vpack.c.bf16 %v3471, %v3469
        %v3586 = vpack.c.bf16 %v3472, %v3470
        %v3587 = vpack.c.bf16 %v3475, %v3473
        %v3588 = vpack.c.bf16 %v3476, %v3474
        %v3589 = vpack.c.bf16 %v3479, %v3477
        %v3590 = vpack.c.bf16 %v3480, %v3478
        %v3591 = vpack.c.bf16 %v3483, %v3481
        %v3592 = vpack.c.bf16 %v3484, %v3482
        %v3593 = vpack.c.bf16 %v3487, %v3485
        %v3594 = vpack.c.bf16 %v3488, %v3486
        %v3595 = vpack.c.bf16 %v3491, %v3489
        %v3596 = vpack.c.bf16 %v3492, %v3490
        %v3597 = vpack.c.bf16 %v3495, %v3493
        %v3598 = vpack.c.bf16 %v3496, %v3494
        %v3599 = vpack.c.bf16 %v3499, %v3497
        %v3600 = vpack.c.bf16 %v3500, %v3498
        %v3601 = vpack.c.bf16 %v3503, %v3501
        %v3602 = vpack.c.bf16 %v3504, %v3502
        %v3603 = vpack.c.bf16 %v3507, %v3505
        %v3604 = vpack.c.bf16 %v3508, %v3506
        %v3605 = vpack.c.bf16 %v3511, %v3509
        %v3606 = vpack.c.bf16 %v3512, %v3510
        %v3607 = vpack.c.bf16 %v3515, %v3513
        %v3608 = vpack.c.bf16 %v3516, %v3514
        %v3609 = vpack.c.bf16 %v3519, %v3517
        %v3610 = vpack.c.bf16 %v3520, %v3518
        %v3611 = vpack.c.bf16 %v3523, %v3521
        %v3612 = vpack.c.bf16 %v3524, %v3522
        %v3613 = vpack.c.bf16 %v3527, %v3525
        %v3614 = vpack.c.bf16 %v3528, %v3526
        %v3615 = vpack.c.bf16 %v3531, %v3529
        %v3616 = vpack.c.bf16 %v3532, %v3530
        %v3617 = vpack.c.bf16 %v3535, %v3533
        %v3618 = vpack.c.bf16 %v3536, %v3534
        %v3619 = vpack.c.bf16 %v3539, %v3537
        %v3620 = vpack.c.bf16 %v3540, %v3538
        %v3621 = vpack.c.bf16 %v3543, %v3541
        %v3622 = vpack.c.bf16 %v3544, %v3542
        %v3623 = vpack.c.bf16 %v3547, %v3545
        %v3624 = vpack.c.bf16 %v3548, %v3546
        %v3625 = vpack.c.bf16 %v3551, %v3549
        %v3626 = vpack.c.bf16 %v3552, %v3550
        %v3627 = vpack.c.bf16 %v3555, %v3553
        %v3628 = vpack.c.bf16 %v3556, %v3554
        %v3629 = vpack.c.bf16 %v3559, %v3557
        %v3630 = vpack.c.bf16 %v3560, %v3558
        %v3631 = vpack.c.bf16 %v3563, %v3561
        %v3632 = vpack.c.bf16 %v3564, %v3562
        %v3633 = vpack.c.bf16 %v3567, %v3565
        %v3634 = vpack.c.bf16 %v3568, %v3566
        %v3635 = vpack.c.bf16 %v3571, %v3569
        %v3636 = vpack.c.bf16 %v3572, %v3570
        %v3637 = vld [vmem:[#allocation11] sm:$0xf]
        %v3638 = vld [vmem:[#allocation11 + $0x4] sm:$0xf]
        %v3639 = vld [vmem:[#allocation11 + $0x8] sm:$0xf]
        %v3640 = vld [vmem:[#allocation11 + $0xc] sm:$0xf]
        %v3641 = vld [vmem:[#allocation11 + $0x10] sm:$0xf]
        %v3642 = vld [vmem:[#allocation11 + $0x14] sm:$0xf]
        %v3643 = vld [vmem:[#allocation11 + $0x18] sm:$0xf]
        %v3644 = vld [vmem:[#allocation11 + $0x1c] sm:$0xf]
        %v3645 = vld [vmem:[#allocation11 + $0x20] sm:$0xf]
        %v3646 = vld [vmem:[#allocation11 + $0x24] sm:$0xf]
        %v3647 = vld [vmem:[#allocation11 + $0x28] sm:$0xf]
        %v3648 = vld [vmem:[#allocation11 + $0x2c] sm:$0xf]
        %v3649 = vld [vmem:[#allocation11 + $0x30] sm:$0xf]
        %v3650 = vld [vmem:[#allocation11 + $0x34] sm:$0xf]
        %v3651 = vld [vmem:[#allocation11 + $0x38] sm:$0xf]
        %v3652 = vld [vmem:[#allocation11 + $0x3c] sm:$0xf]
        %v3653 = vld [vmem:[#allocation11 + $0x40] sm:$0xf]
        %v3654 = vld [vmem:[#allocation11 + $0x44] sm:$0xf]
        %v3655 = vld [vmem:[#allocation11 + $0x48] sm:$0xf]
        %v3656 = vld [vmem:[#allocation11 + $0x4c] sm:$0xf]
        %v3657 = vld [vmem:[#allocation11 + $0x50] sm:$0xf]
        %v3658 = vld [vmem:[#allocation11 + $0x54] sm:$0xf]
        %v3659 = vld [vmem:[#allocation11 + $0x58] sm:$0xf]
        %v3660 = vld [vmem:[#allocation11 + $0x5c] sm:$0xf]
        %v3661 = vld [vmem:[#allocation11 + $0x60] sm:$0xf]
        %v3662 = vld [vmem:[#allocation11 + $0x64] sm:$0xf]
        %v3663 = vld [vmem:[#allocation11 + $0x68] sm:$0xf]
        %v3664 = vld [vmem:[#allocation11 + $0x6c] sm:$0xf]
        %v3665 = vld [vmem:[#allocation11 + $0x70] sm:$0xf]
        %v3666 = vld [vmem:[#allocation11 + $0x74] sm:$0xf]
        %v3667 = vld [vmem:[#allocation11 + $0x78] sm:$0xf]
        %v3668 = vld [vmem:[#allocation11 + $0x7c] sm:$0xf]
        %v3669 = vld [vmem:[%s10] sm:$0x1]
        %v3671 = vlaneseq
        %v3672 = vshrl.u32 %v3671, 7
        %v3673 = vsub.s32 0, %v3672
        %v3674 = vrot.slane %v3669, %v3673
        %v3708 = vunpack.c.l.b16 %v3637
        %v3709 = vunpack.c.l.b16 %v3638
        %v3710 = vunpack.c.l.b16 %v3639
        %v3711 = vunpack.c.l.b16 %v3640
        %v3712 = vunpack.c.l.b16 %v3641
        %v3713 = vunpack.c.l.b16 %v3642
        %v3714 = vunpack.c.l.b16 %v3643
        %v3715 = vunpack.c.l.b16 %v3644
        %v3716 = vunpack.c.l.b16 %v3645
        %v3717 = vunpack.c.l.b16 %v3646
        %v3718 = vunpack.c.l.b16 %v3647
        %v3719 = vunpack.c.l.b16 %v3648
        %v3720 = vunpack.c.l.b16 %v3649
        %v3721 = vunpack.c.l.b16 %v3650
        %v3722 = vunpack.c.l.b16 %v3651
        %v3723 = vunpack.c.l.b16 %v3652
        %v3724 = vunpack.c.l.b16 %v3653
        %v3725 = vunpack.c.l.b16 %v3654
        %v3726 = vunpack.c.l.b16 %v3655
        %v3727 = vunpack.c.l.b16 %v3656
        %v3728 = vunpack.c.l.b16 %v3657
        %v3729 = vunpack.c.l.b16 %v3658
        %v3730 = vunpack.c.l.b16 %v3659
        %v3731 = vunpack.c.l.b16 %v3660
        %v3732 = vunpack.c.l.b16 %v3661
        %v3733 = vunpack.c.l.b16 %v3662
        %v3734 = vunpack.c.l.b16 %v3663
        %v3735 = vunpack.c.l.b16 %v3664
        %v3736 = vunpack.c.l.b16 %v3665
        %v3737 = vunpack.c.l.b16 %v3666
        %v3738 = vunpack.c.l.b16 %v3667
        %v3739 = vunpack.c.l.b16 %v3668
        %v3740 = vpack.c.b16 %v3709, %v3708
        %v3741 = vpack.c.b16 %v3711, %v3710
        %v3742 = vpack.c.b16 %v3713, %v3712
        %v3743 = vpack.c.b16 %v3715, %v3714
        %v3744 = vpack.c.b16 %v3717, %v3716
        %v3745 = vpack.c.b16 %v3719, %v3718
        %v3746 = vpack.c.b16 %v3721, %v3720
        %v3747 = vpack.c.b16 %v3723, %v3722
        %v3748 = vpack.c.b16 %v3725, %v3724
        %v3749 = vpack.c.b16 %v3727, %v3726
        %v3750 = vpack.c.b16 %v3729, %v3728
        %v3751 = vpack.c.b16 %v3731, %v3730
        %v3752 = vpack.c.b16 %v3733, %v3732
        %v3753 = vpack.c.b16 %v3735, %v3734
        %v3754 = vpack.c.b16 %v3737, %v3736
        %v3755 = vpack.c.b16 %v3739, %v3738
        %3772 = vmatprep.subr.bf16.mxu0 0
        %3773 = vmatpush1.bf16.msra.mxu0 %v3740
        %3774 = vmatprep.subr.bf16.mxu0 0
        %3775 = vmatpush1.bf16.msra.mxu0 %v3741
        %3776 = vmatprep.subr.bf16.mxu0 0
        %3777 = vmatpush1.bf16.msra.mxu0 %v3742
        %3778 = vmatprep.subr.bf16.mxu0 0
        %3779 = vmatpush1.bf16.msra.mxu0 %v3743
        %3780 = vmatprep.subr.bf16.mxu0 0
        %3781 = vmatpush1.bf16.msra.mxu0 %v3744
        %3782 = vmatprep.subr.bf16.mxu0 0
        %3783 = vmatpush1.bf16.msra.mxu0 %v3745
        %3784 = vmatprep.subr.bf16.mxu0 0
        %3785 = vmatpush1.bf16.msra.mxu0 %v3746
        %3786 = vmatprep.subr.bf16.mxu0 0
        %3787 = vmatpush1.bf16.msra.mxu0 %v3747
        %3788 = vmatprep.subr.bf16.mxu0 0
        %3789 = vmatpush1.bf16.msra.mxu0 %v3748
        %3790 = vmatprep.subr.bf16.mxu0 0
        %3791 = vmatpush1.bf16.msra.mxu0 %v3749
        %3792 = vmatprep.subr.bf16.mxu0 0
        %3793 = vmatpush1.bf16.msra.mxu0 %v3750
        %3794 = vmatprep.subr.bf16.mxu0 0
        %3795 = vmatpush1.bf16.msra.mxu0 %v3751
        %3796 = vmatprep.subr.bf16.mxu0 0
        %3797 = vmatpush1.bf16.msra.mxu0 %v3752
        %3798 = vmatprep.subr.bf16.mxu0 0
        %3799 = vmatpush1.bf16.msra.mxu0 %v3753
        %3800 = vmatprep.subr.bf16.mxu0 0
        %3801 = vmatpush1.bf16.msra.mxu0 %v3754
        %3802 = vmatprep.subr.bf16.mxu0 0
        %3803 = vmatpush1.bf16.msra.mxu0 %v3755
        %3804 = vmatprep.mubr.bf16.mxu0 %v3574
        %3805 = vmatmul.mubr.bf16.gmra.mrb[0].mxu0 %v3573
        %v3806 = vpop.f32.mrb[0].mxu0
        %v3807 = vadd.f32 %v3674, %v3806
        %v3808 = vpop.f32.mrb[0].mxu0
        %v3809 = vpop.f32.mrb[0].mxu0
        %v3810 = vadd.f32 %v3674, %v3809
        %v3811 = vpop.f32.mrb[0].mxu0
        %3812 = vmatprep.mubr.bf16.mxu0 %v3576
        %3813 = vmatmul.mubr.bf16.gmra.mrb[0].mxu0 %v3575
        %v3814 = vpop.f32.mrb[0].mxu0
        %v3815 = vadd.f32 %v3674, %v3814
        %v3816 = vpop.f32.mrb[0].mxu0
        %v3817 = vpop.f32.mrb[0].mxu0
        %v3818 = vadd.f32 %v3674, %v3817
        %v3819 = vpop.f32.mrb[0].mxu0
        %3820 = vmatprep.mubr.bf16.mxu0 %v3578
        %3821 = vmatmul.mubr.bf16.gmra.mrb[0].mxu0 %v3577
        %v3822 = vpop.f32.mrb[0].mxu0
        %v3823 = vadd.f32 %v3674, %v3822
        %v3824 = vpop.f32.mrb[0].mxu0
        %v3825 = vpop.f32.mrb[0].mxu0
        %v3826 = vadd.f32 %v3674, %v3825
        %v3827 = vpop.f32.mrb[0].mxu0
        %3828 = vmatprep.mubr.bf16.mxu0 %v3580
        %3829 = vmatmul.mubr.bf16.gmra.mrb[0].mxu0 %v3579
        %v3830 = vpop.f32.mrb[0].mxu0
        %v3831 = vadd.f32 %v3674, %v3830
        %v3832 = vpop.f32.mrb[0].mxu0
        %v3833 = vpop.f32.mrb[0].mxu0
        %v3834 = vadd.f32 %v3674, %v3833
        %v3835 = vpop.f32.mrb[0].mxu0
        %3836 = vmatprep.mubr.bf16.mxu0 %v3582
        %3837 = vmatmul.mubr.bf16.gmra.mrb[0].mxu0 %v3581
        %v3838 = vpop.f32.mrb[0].mxu0
        %v3839 = vadd.f32 %v3674, %v3838
        %v3840 = vpop.f32.mrb[0].mxu0
        %v3841 = vpop.f32.mrb[0].mxu0
        %v3842 = vadd.f32 %v3674, %v3841
        %v3843 = vpop.f32.mrb[0].mxu0
        %3844 = vmatprep.mubr.bf16.mxu0 %v3584
        %3845 = vmatmul.mubr.bf16.gmra.mrb[0].mxu0 %v3583
        %v3846 = vpop.f32.mrb[0].mxu0
        %v3847 = vadd.f32 %v3674, %v3846
        %v3848 = vpop.f32.mrb[0].mxu0
        %v3849 = vpop.f32.mrb[0].mxu0
        %v3850 = vadd.f32 %v3674, %v3849
        %v3851 = vpop.f32.mrb[0].mxu0
        %3852 = vmatprep.mubr.bf16.mxu0 %v3586
        %3853 = vmatmul.mubr.bf16.gmra.mrb[0].mxu0 %v3585
        %v3854 = vpop.f32.mrb[0].mxu0
        %v3855 = vadd.f32 %v3674, %v3854
        %v3856 = vpop.f32.mrb[0].mxu0
        %v3857 = vpop.f32.mrb[0].mxu0
        %v3858 = vadd.f32 %v3674, %v3857
        %v3859 = vpop.f32.mrb[0].mxu0
        %3860 = vmatprep.mubr.bf16.mxu0 %v3588
        %3861 = vmatmul.mubr.bf16.gmra.mrb[0].mxu0 %v3587
        %v3862 = vpop.f32.mrb[0].mxu0
        %v3863 = vadd.f32 %v3674, %v3862
        %v3864 = vpop.f32.mrb[0].mxu0
        %v3865 = vpop.f32.mrb[0].mxu0
        %v3866 = vadd.f32 %v3674, %v3865
        %v3867 = vpop.f32.mrb[0].mxu0
        %3868 = vmatprep.mubr.bf16.mxu0 %v3590
        %3869 = vmatmul.mubr.bf16.gmra.mrb[0].mxu0 %v3589
        %v3870 = vpop.f32.mrb[0].mxu0
        %v3871 = vadd.f32 %v3674, %v3870
        %v3872 = vpop.f32.mrb[0].mxu0
        %v3873 = vpop.f32.mrb[0].mxu0
        %v3874 = vadd.f32 %v3674, %v3873
        %v3875 = vpop.f32.mrb[0].mxu0
        %3876 = vmatprep.mubr.bf16.mxu0 %v3592
        %3877 = vmatmul.mubr.bf16.gmra.mrb[0].mxu0 %v3591
        %v3878 = vpop.f32.mrb[0].mxu0
        %v3879 = vadd.f32 %v3674, %v3878
        %v3880 = vpop.f32.mrb[0].mxu0
        %v3881 = vpop.f32.mrb[0].mxu0
        %v3882 = vadd.f32 %v3674, %v3881
        %v3883 = vpop.f32.mrb[0].mxu0
        %3884 = vmatprep.mubr.bf16.mxu0 %v3594
        %3885 = vmatmul.mubr.bf16.gmra.mrb[0].mxu0 %v3593
        %v3886 = vpop.f32.mrb[0].mxu0
        %v3887 = vadd.f32 %v3674, %v3886
        %v3888 = vpop.f32.mrb[0].mxu0
        %v3889 = vpop.f32.mrb[0].mxu0
        %v3890 = vadd.f32 %v3674, %v3889
        %v3891 = vpop.f32.mrb[0].mxu0
        %3892 = vmatprep.mubr.bf16.mxu0 %v3596
        %3893 = vmatmul.mubr.bf16.gmra.mrb[0].mxu0 %v3595
        %v3894 = vpop.f32.mrb[0].mxu0
        %v3895 = vadd.f32 %v3674, %v3894
        %v3896 = vpop.f32.mrb[0].mxu0
        %v3897 = vpop.f32.mrb[0].mxu0
        %v3898 = vadd.f32 %v3674, %v3897
        %v3899 = vpop.f32.mrb[0].mxu0
        %3900 = vmatprep.mubr.bf16.mxu0 %v3598
        %3901 = vmatmul.mubr.bf16.gmra.mrb[0].mxu0 %v3597
        %v3902 = vpop.f32.mrb[0].mxu0
        %v3903 = vadd.f32 %v3674, %v3902
        %v3904 = vpop.f32.mrb[0].mxu0
        %v3905 = vpop.f32.mrb[0].mxu0
        %v3906 = vadd.f32 %v3674, %v3905
        %v3907 = vpop.f32.mrb[0].mxu0
        %3908 = vmatprep.mubr.bf16.mxu0 %v3600
        %3909 = vmatmul.mubr.bf16.gmra.mrb[0].mxu0 %v3599
        %v3910 = vpop.f32.mrb[0].mxu0
        %v3911 = vadd.f32 %v3674, %v3910
        %v3912 = vpop.f32.mrb[0].mxu0
        %v3913 = vpop.f32.mrb[0].mxu0
        %v3914 = vadd.f32 %v3674, %v3913
        %v3915 = vpop.f32.mrb[0].mxu0
        %3916 = vmatprep.mubr.bf16.mxu0 %v3602
        %3917 = vmatmul.mubr.bf16.gmra.mrb[0].mxu0 %v3601
        %v3918 = vpop.f32.mrb[0].mxu0
        %v3919 = vadd.f32 %v3674, %v3918
        %v3920 = vpop.f32.mrb[0].mxu0
        %v3921 = vpop.f32.mrb[0].mxu0
        %v3922 = vadd.f32 %v3674, %v3921
        %v3923 = vpop.f32.mrb[0].mxu0
        %3924 = vmatprep.mubr.bf16.mxu0 %v3604
        %3925 = vmatmul.mubr.bf16.gmra.mrb[0].mxu0 %v3603
        %v3926 = vpop.f32.mrb[0].mxu0
        %v3927 = vadd.f32 %v3674, %v3926
        %v3928 = vpop.f32.mrb[0].mxu0
        %v3929 = vpop.f32.mrb[0].mxu0
        %v3930 = vadd.f32 %v3674, %v3929
        %v3931 = vpop.f32.mrb[0].mxu0
        %3932 = vmatprep.mubr.bf16.mxu0 %v3606
        %3933 = vmatmul.mubr.bf16.gmra.mrb[0].mxu0 %v3605
        %v3934 = vpop.f32.mrb[0].mxu0
        %v3935 = vadd.f32 %v3674, %v3934
        %v3936 = vpop.f32.mrb[0].mxu0
        %v3937 = vpop.f32.mrb[0].mxu0
        %v3938 = vadd.f32 %v3674, %v3937
        %v3939 = vpop.f32.mrb[0].mxu0
        %3940 = vmatprep.mubr.bf16.mxu0 %v3608
        %3941 = vmatmul.mubr.bf16.gmra.mrb[0].mxu0 %v3607
        %v3942 = vpop.f32.mrb[0].mxu0
        %v3943 = vadd.f32 %v3674, %v3942
        %v3944 = vpop.f32.mrb[0].mxu0
        %v3945 = vpop.f32.mrb[0].mxu0
        %v3946 = vadd.f32 %v3674, %v3945
        %v3947 = vpop.f32.mrb[0].mxu0
        %3948 = vmatprep.mubr.bf16.mxu0 %v3610
        %3949 = vmatmul.mubr.bf16.gmra.mrb[0].mxu0 %v3609
        %v3950 = vpop.f32.mrb[0].mxu0
        %v3951 = vadd.f32 %v3674, %v3950
        %v3952 = vpop.f32.mrb[0].mxu0
        %v3953 = vpop.f32.mrb[0].mxu0
        %v3954 = vadd.f32 %v3674, %v3953
        %v3955 = vpop.f32.mrb[0].mxu0
        %3956 = vmatprep.mubr.bf16.mxu0 %v3612
        %3957 = vmatmul.mubr.bf16.gmra.mrb[0].mxu0 %v3611
        %v3958 = vpop.f32.mrb[0].mxu0
        %v3959 = vadd.f32 %v3674, %v3958
        %v3960 = vpop.f32.mrb[0].mxu0
        %v3961 = vpop.f32.mrb[0].mxu0
        %v3962 = vadd.f32 %v3674, %v3961
        %v3963 = vpop.f32.mrb[0].mxu0
        %3964 = vmatprep.mubr.bf16.mxu0 %v3614
        %3965 = vmatmul.mubr.bf16.gmra.mrb[0].mxu0 %v3613
        %v3966 = vpop.f32.mrb[0].mxu0
        %v3967 = vadd.f32 %v3674, %v3966
        %v3968 = vpop.f32.mrb[0].mxu0
        %v3969 = vpop.f32.mrb[0].mxu0
        %v3970 = vadd.f32 %v3674, %v3969
        %v3971 = vpop.f32.mrb[0].mxu0
        %3972 = vmatprep.mubr.bf16.mxu0 %v3616
        %3973 = vmatmul.mubr.bf16.gmra.mrb[0].mxu0 %v3615
        %v3974 = vpop.f32.mrb[0].mxu0
        %v3975 = vadd.f32 %v3674, %v3974
        %v3976 = vpop.f32.mrb[0].mxu0
        %v3977 = vpop.f32.mrb[0].mxu0
        %v3978 = vadd.f32 %v3674, %v3977
        %v3979 = vpop.f32.mrb[0].mxu0
        %3980 = vmatprep.mubr.bf16.mxu0 %v3618
        %3981 = vmatmul.mubr.bf16.gmra.mrb[0].mxu0 %v3617
        %v3982 = vpop.f32.mrb[0].mxu0
        %v3983 = vadd.f32 %v3674, %v3982
        %v3984 = vpop.f32.mrb[0].mxu0
        %v3985 = vpop.f32.mrb[0].mxu0
        %v3986 = vadd.f32 %v3674, %v3985
        %v3987 = vpop.f32.mrb[0].mxu0
        %3988 = vmatprep.mubr.bf16.mxu0 %v3620
        %3989 = vmatmul.mubr.bf16.gmra.mrb[0].mxu0 %v3619
        %v3990 = vpop.f32.mrb[0].mxu0
        %v3991 = vadd.f32 %v3674, %v3990
        %v3992 = vpop.f32.mrb[0].mxu0
        %v3993 = vpop.f32.mrb[0].mxu0
        %v3994 = vadd.f32 %v3674, %v3993
        %v3995 = vpop.f32.mrb[0].mxu0
        %3996 = vmatprep.mubr.bf16.mxu0 %v3622
        %3997 = vmatmul.mubr.bf16.gmra.mrb[0].mxu0 %v3621
        %v3998 = vpop.f32.mrb[0].mxu0
        %v3999 = vadd.f32 %v3674, %v3998
        %v4000 = vpop.f32.mrb[0].mxu0
        %v4001 = vpop.f32.mrb[0].mxu0
        %v4002 = vadd.f32 %v3674, %v4001
        %v4003 = vpop.f32.mrb[0].mxu0
        %4004 = vmatprep.mubr.bf16.mxu0 %v3624
        %4005 = vmatmul.mubr.bf16.gmra.mrb[0].mxu0 %v3623
        %v4006 = vpop.f32.mrb[0].mxu0
        %v4007 = vadd.f32 %v3674, %v4006
        %v4008 = vpop.f32.mrb[0].mxu0
        %v4009 = vpop.f32.mrb[0].mxu0
        %v4010 = vadd.f32 %v3674, %v4009
        %v4011 = vpop.f32.mrb[0].mxu0
        %4012 = vmatprep.mubr.bf16.mxu0 %v3626
        %4013 = vmatmul.mubr.bf16.gmra.mrb[0].mxu0 %v3625
        %v4014 = vpop.f32.mrb[0].mxu0
        %v4015 = vadd.f32 %v3674, %v4014
        %v4016 = vpop.f32.mrb[0].mxu0
        %v4017 = vpop.f32.mrb[0].mxu0
        %v4018 = vadd.f32 %v3674, %v4017
        %v4019 = vpop.f32.mrb[0].mxu0
        %4020 = vmatprep.mubr.bf16.mxu0 %v3628
        %4021 = vmatmul.mubr.bf16.gmra.mrb[0].mxu0 %v3627
        %v4022 = vpop.f32.mrb[0].mxu0
        %v4023 = vadd.f32 %v3674, %v4022
        %v4024 = vpop.f32.mrb[0].mxu0
        %v4025 = vpop.f32.mrb[0].mxu0
        %v4026 = vadd.f32 %v3674, %v4025
        %v4027 = vpop.f32.mrb[0].mxu0
        %4028 = vmatprep.mubr.bf16.mxu0 %v3630
        %4029 = vmatmul.mubr.bf16.gmra.mrb[0].mxu0 %v3629
        %v4030 = vpop.f32.mrb[0].mxu0
        %v4031 = vadd.f32 %v3674, %v4030
        %v4032 = vpop.f32.mrb[0].mxu0
        %v4033 = vpop.f32.mrb[0].mxu0
        %v4034 = vadd.f32 %v3674, %v4033
        %v4035 = vpop.f32.mrb[0].mxu0
        %4036 = vmatprep.mubr.bf16.mxu0 %v3632
        %4037 = vmatmul.mubr.bf16.gmra.mrb[0].mxu0 %v3631
        %v4038 = vpop.f32.mrb[0].mxu0
        %v4039 = vadd.f32 %v3674, %v4038
        %v4040 = vpop.f32.mrb[0].mxu0
        %v4041 = vpop.f32.mrb[0].mxu0
        %v4042 = vadd.f32 %v3674, %v4041
        %v4043 = vpop.f32.mrb[0].mxu0
        %4044 = vmatprep.mubr.bf16.mxu0 %v3634
        %4045 = vmatmul.mubr.bf16.gmra.mrb[0].mxu0 %v3633
        %v4046 = vpop.f32.mrb[0].mxu0
        %v4047 = vadd.f32 %v3674, %v4046
        %v4048 = vpop.f32.mrb[0].mxu0
        %v4049 = vpop.f32.mrb[0].mxu0
        %v4050 = vadd.f32 %v3674, %v4049
        %v4051 = vpop.f32.mrb[0].mxu0
        %4052 = vmatprep.mubr.bf16.mxu0 %v3636
        %4053 = vmatmul.mubr.bf16.gmra.mrb[0].mxu0 %v3635
        %v4054 = vpop.f32.mrb[0].mxu0
        %v4055 = vadd.f32 %v3674, %v4054
        %v4056 = vpop.f32.mrb[0].mxu0
        %v4057 = vpop.f32.mrb[0].mxu0
        %v4058 = vadd.f32 %v3674, %v4057
        %v4059 = vpop.f32.mrb[0].mxu0
        %4060 = vdwg.mxu0
        %v4061 = vxor.u32 %v3807, 2147483648
        %v4062 = vxor.u32 %v3810, 2147483648
        %v4063 = vxor.u32 %v3815, 2147483648
        %v4064 = vxor.u32 %v3818, 2147483648
        %v4065 = vxor.u32 %v3823, 2147483648
        %v4066 = vxor.u32 %v3826, 2147483648
        %v4067 = vxor.u32 %v3831, 2147483648
        %v4068 = vxor.u32 %v3834, 2147483648
        %v4069 = vxor.u32 %v3839, 2147483648
        %v4070 = vxor.u32 %v3842, 2147483648
        %v4071 = vxor.u32 %v3847, 2147483648
        %v4072 = vxor.u32 %v3850, 2147483648
        %v4073 = vxor.u32 %v3855, 2147483648
        %v4074 = vxor.u32 %v3858, 2147483648
        %v4075 = vxor.u32 %v3863, 2147483648
        %v4076 = vxor.u32 %v3866, 2147483648
        %v4077 = vxor.u32 %v3871, 2147483648
        %v4078 = vxor.u32 %v3874, 2147483648
        %v4079 = vxor.u32 %v3879, 2147483648
        %v4080 = vxor.u32 %v3882, 2147483648
        %v4081 = vxor.u32 %v3887, 2147483648
        %v4082 = vxor.u32 %v3890, 2147483648
        %v4083 = vxor.u32 %v3895, 2147483648
        %v4084 = vxor.u32 %v3898, 2147483648
        %v4085 = vxor.u32 %v3903, 2147483648
        %v4086 = vxor.u32 %v3906, 2147483648
        %v4087 = vxor.u32 %v3911, 2147483648
        %v4088 = vxor.u32 %v3914, 2147483648
        %v4089 = vxor.u32 %v3919, 2147483648
        %v4090 = vxor.u32 %v3922, 2147483648
        %v4091 = vxor.u32 %v3927, 2147483648
        %v4092 = vxor.u32 %v3930, 2147483648
        %v4093 = vxor.u32 %v3935, 2147483648
        %v4094 = vxor.u32 %v3938, 2147483648
        %v4095 = vxor.u32 %v3943, 2147483648
        %v4096 = vxor.u32 %v3946, 2147483648
        %v4097 = vxor.u32 %v3951, 2147483648
        %v4098 = vxor.u32 %v3954, 2147483648
        %v4099 = vxor.u32 %v3959, 2147483648
        %v4100 = vxor.u32 %v3962, 2147483648
        %v4101 = vxor.u32 %v3967, 2147483648
        %v4102 = vxor.u32 %v3970, 2147483648
        %v4103 = vxor.u32 %v3975, 2147483648
        %v4104 = vxor.u32 %v3978, 2147483648
        %v4105 = vxor.u32 %v3983, 2147483648
        %v4106 = vxor.u32 %v3986, 2147483648
        %v4107 = vxor.u32 %v3991, 2147483648
        %v4108 = vxor.u32 %v3994, 2147483648
        %v4109 = vxor.u32 %v3999, 2147483648
        %v4110 = vxor.u32 %v4002, 2147483648
        %v4111 = vxor.u32 %v4007, 2147483648
        %v4112 = vxor.u32 %v4010, 2147483648
        %v4113 = vxor.u32 %v4015, 2147483648
        %v4114 = vxor.u32 %v4018, 2147483648
        %v4115 = vxor.u32 %v4023, 2147483648
        %v4116 = vxor.u32 %v4026, 2147483648
        %v4117 = vxor.u32 %v4031, 2147483648
        %v4118 = vxor.u32 %v4034, 2147483648
        %v4119 = vxor.u32 %v4039, 2147483648
        %v4120 = vxor.u32 %v4042, 2147483648
        %v4121 = vxor.u32 %v4047, 2147483648
        %v4122 = vxor.u32 %v4050, 2147483648
        %v4123 = vxor.u32 %v4055, 2147483648
        %v4124 = vxor.u32 %v4058, 2147483648
        %v4125 = vmul.f32 %v4061, 1.442695
        %v4126 = vpow.pop %v4125
        %v4127 = vmul.f32 %v4062, 1.442695
        %v4128 = vpow.pop %v4127
        %v4129 = vmul.f32 %v4063, 1.442695
        %v4130 = vpow.pop %v4129
        %v4131 = vmul.f32 %v4064, 1.442695
        %v4132 = vpow.pop %v4131
        %v4133 = vmul.f32 %v4065, 1.442695
        %v4134 = vpow.pop %v4133
        %v4135 = vmul.f32 %v4066, 1.442695
        %v4136 = vpow.pop %v4135
        %v4137 = vmul.f32 %v4067, 1.442695
        %v4138 = vpow.pop %v4137
        %v4139 = vmul.f32 %v4068, 1.442695
        %v4140 = vpow.pop %v4139
        %v4141 = vmul.f32 %v4069, 1.442695
        %v4142 = vpow.pop %v4141
        %v4143 = vmul.f32 %v4070, 1.442695
        %v4144 = vpow.pop %v4143
        %v4145 = vmul.f32 %v4071, 1.442695
        %v4146 = vpow.pop %v4145
        %v4147 = vmul.f32 %v4072, 1.442695
        %v4148 = vpow.pop %v4147
        %v4149 = vmul.f32 %v4073, 1.442695
        %v4150 = vpow.pop %v4149
        %v4151 = vmul.f32 %v4074, 1.442695
        %v4152 = vpow.pop %v4151
        %v4153 = vmul.f32 %v4075, 1.442695
        %v4154 = vpow.pop %v4153
        %v4155 = vmul.f32 %v4076, 1.442695
        %v4156 = vpow.pop %v4155
        %v4157 = vmul.f32 %v4077, 1.442695
        %v4158 = vpow.pop %v4157
        %v4159 = vmul.f32 %v4078, 1.442695
        %v4160 = vpow.pop %v4159
        %v4161 = vmul.f32 %v4079, 1.442695
        %v4162 = vpow.pop %v4161
        %v4163 = vmul.f32 %v4080, 1.442695
        %v4164 = vpow.pop %v4163
        %v4165 = vmul.f32 %v4081, 1.442695
        %v4166 = vpow.pop %v4165
        %v4167 = vmul.f32 %v4082, 1.442695
        %v4168 = vpow.pop %v4167
        %v4169 = vmul.f32 %v4083, 1.442695
        %v4170 = vpow.pop %v4169
        %v4171 = vmul.f32 %v4084, 1.442695
        %v4172 = vpow.pop %v4171
        %v4173 = vmul.f32 %v4085, 1.442695
        %v4174 = vpow.pop %v4173
        %v4175 = vmul.f32 %v4086, 1.442695
        %v4176 = vpow.pop %v4175
        %v4177 = vmul.f32 %v4087, 1.442695
        %v4178 = vpow.pop %v4177
        %v4179 = vmul.f32 %v4088, 1.442695
        %v4180 = vpow.pop %v4179
        %v4181 = vmul.f32 %v4089, 1.442695
        %v4182 = vpow.pop %v4181
        %v4183 = vmul.f32 %v4090, 1.442695
        %v4184 = vpow.pop %v4183
        %v4185 = vmul.f32 %v4091, 1.442695
        %v4186 = vpow.pop %v4185
        %v4187 = vmul.f32 %v4092, 1.442695
        %v4188 = vpow.pop %v4187
        %v4189 = vmul.f32 %v4093, 1.442695
        %v4190 = vpow.pop %v4189
        %v4191 = vmul.f32 %v4094, 1.442695
        %v4192 = vpow.pop %v4191
        %v4193 = vmul.f32 %v4095, 1.442695
        %v4194 = vpow.pop %v4193
        %v4195 = vmul.f32 %v4096, 1.442695
        %v4196 = vpow.pop %v4195
        %v4197 = vmul.f32 %v4097, 1.442695
        %v4198 = vpow.pop %v4197
        %v4199 = vmul.f32 %v4098, 1.442695
        %v4200 = vpow.pop %v4199
        %v4201 = vmul.f32 %v4099, 1.442695
        %v4202 = vpow.pop %v4201
        %v4203 = vmul.f32 %v4100, 1.442695
        %v4204 = vpow.pop %v4203
        %v4205 = vmul.f32 %v4101, 1.442695
        %v4206 = vpow.pop %v4205
        %v4207 = vmul.f32 %v4102, 1.442695
        %v4208 = vpow.pop %v4207
        %v4209 = vmul.f32 %v4103, 1.442695
        %v4210 = vpow.pop %v4209
        %v4211 = vmul.f32 %v4104, 1.442695
        %v4212 = vpow.pop %v4211
        %v4213 = vmul.f32 %v4105, 1.442695
        %v4214 = vpow.pop %v4213
        %v4215 = vmul.f32 %v4106, 1.442695
        %v4216 = vpow.pop %v4215
        %v4217 = vmul.f32 %v4107, 1.442695
        %v4218 = vpow.pop %v4217
        %v4219 = vmul.f32 %v4108, 1.442695
        %v4220 = vpow.pop %v4219
        %v4221 = vmul.f32 %v4109, 1.442695
        %v4222 = vpow.pop %v4221
        %v4223 = vmul.f32 %v4110, 1.442695
        %v4224 = vpow.pop %v4223
        %v4225 = vmul.f32 %v4111, 1.442695
        %v4226 = vpow.pop %v4225
        %v4227 = vmul.f32 %v4112, 1.442695
        %v4228 = vpow.pop %v4227
        %v4229 = vmul.f32 %v4113, 1.442695
        %v4230 = vpow.pop %v4229
        %v4231 = vmul.f32 %v4114, 1.442695
        %v4232 = vpow.pop %v4231
        %v4233 = vmul.f32 %v4115, 1.442695
        %v4234 = vpow.pop %v4233
        %v4235 = vmul.f32 %v4116, 1.442695
        %v4236 = vpow.pop %v4235
        %v4237 = vmul.f32 %v4117, 1.442695
        %v4238 = vpow.pop %v4237
        %v4239 = vmul.f32 %v4118, 1.442695
        %v4240 = vpow.pop %v4239
        %v4241 = vmul.f32 %v4119, 1.442695
        %v4242 = vpow.pop %v4241
        %v4243 = vmul.f32 %v4120, 1.442695
        %v4244 = vpow.pop %v4243
        %v4245 = vmul.f32 %v4121, 1.442695
        %v4246 = vpow.pop %v4245
        %v4247 = vmul.f32 %v4122, 1.442695
        %v4248 = vpow.pop %v4247
        %v4249 = vmul.f32 %v4123, 1.442695
        %v4250 = vpow.pop %v4249
        %v4251 = vmul.f32 %v4124, 1.442695
        %v4252 = vpow.pop %v4251
        %v4253 = vadd.f32 %v4126, 1.0
        %v4254 = vadd.f32 %v4128, 1.0
        %v4255 = vadd.f32 %v4130, 1.0
        %v4256 = vadd.f32 %v4132, 1.0
        %v4257 = vadd.f32 %v4134, 1.0
        %v4258 = vadd.f32 %v4136, 1.0
        %v4259 = vadd.f32 %v4138, 1.0
        %v4260 = vadd.f32 %v4140, 1.0
        %v4261 = vadd.f32 %v4142, 1.0
        %v4262 = vadd.f32 %v4144, 1.0
        %v4263 = vadd.f32 %v4146, 1.0
        %v4264 = vadd.f32 %v4148, 1.0
        %v4265 = vadd.f32 %v4150, 1.0
        %v4266 = vadd.f32 %v4152, 1.0
        %v4267 = vadd.f32 %v4154, 1.0
        %v4268 = vadd.f32 %v4156, 1.0
        %v4269 = vadd.f32 %v4158, 1.0
        %v4270 = vadd.f32 %v4160, 1.0
        %v4271 = vadd.f32 %v4162, 1.0
        %v4272 = vadd.f32 %v4164, 1.0
        %v4273 = vadd.f32 %v4166, 1.0
        %v4274 = vadd.f32 %v4168, 1.0
        %v4275 = vadd.f32 %v4170, 1.0
        %v4276 = vadd.f32 %v4172, 1.0
        %v4277 = vadd.f32 %v4174, 1.0
        %v4278 = vadd.f32 %v4176, 1.0
        %v4279 = vadd.f32 %v4178, 1.0
        %v4280 = vadd.f32 %v4180, 1.0
        %v4281 = vadd.f32 %v4182, 1.0
        %v4282 = vadd.f32 %v4184, 1.0
        %v4283 = vadd.f32 %v4186, 1.0
        %v4284 = vadd.f32 %v4188, 1.0
        %v4285 = vadd.f32 %v4190, 1.0
        %v4286 = vadd.f32 %v4192, 1.0
        %v4287 = vadd.f32 %v4194, 1.0
        %v4288 = vadd.f32 %v4196, 1.0
        %v4289 = vadd.f32 %v4198, 1.0
        %v4290 = vadd.f32 %v4200, 1.0
        %v4291 = vadd.f32 %v4202, 1.0
        %v4292 = vadd.f32 %v4204, 1.0
        %v4293 = vadd.f32 %v4206, 1.0
        %v4294 = vadd.f32 %v4208, 1.0
        %v4295 = vadd.f32 %v4210, 1.0
        %v4296 = vadd.f32 %v4212, 1.0
        %v4297 = vadd.f32 %v4214, 1.0
        %v4298 = vadd.f32 %v4216, 1.0
        %v4299 = vadd.f32 %v4218, 1.0
        %v4300 = vadd.f32 %v4220, 1.0
        %v4301 = vadd.f32 %v4222, 1.0
        %v4302 = vadd.f32 %v4224, 1.0
        %v4303 = vadd.f32 %v4226, 1.0
        %v4304 = vadd.f32 %v4228, 1.0
        %v4305 = vadd.f32 %v4230, 1.0
        %v4306 = vadd.f32 %v4232, 1.0
        %v4307 = vadd.f32 %v4234, 1.0
        %v4308 = vadd.f32 %v4236, 1.0
        %v4309 = vadd.f32 %v4238, 1.0
        %v4310 = vadd.f32 %v4240, 1.0
        %v4311 = vadd.f32 %v4242, 1.0
        %v4312 = vadd.f32 %v4244, 1.0
        %v4313 = vadd.f32 %v4246, 1.0
        %v4314 = vadd.f32 %v4248, 1.0
        %v4315 = vadd.f32 %v4250, 1.0
        %v4316 = vadd.f32 %v4252, 1.0
        %v4317 = vrcp.pop %v4253
        %v4318 = vmul.f32 1.0, %v4317
        %v4319 = vrcp.pop %v4254
        %v4320 = vmul.f32 1.0, %v4319
        %v4321 = vrcp.pop %v4255
        %v4322 = vmul.f32 1.0, %v4321
        %v4323 = vrcp.pop %v4256
        %v4324 = vmul.f32 1.0, %v4323
        %v4325 = vrcp.pop %v4257
        %v4326 = vmul.f32 1.0, %v4325
        %v4327 = vrcp.pop %v4258
        %v4328 = vmul.f32 1.0, %v4327
        %v4329 = vrcp.pop %v4259
        %v4330 = vmul.f32 1.0, %v4329
        %v4331 = vrcp.pop %v4260
        %v4332 = vmul.f32 1.0, %v4331
        %v4333 = vrcp.pop %v4261
        %v4334 = vmul.f32 1.0, %v4333
        %v4335 = vrcp.pop %v4262
        %v4336 = vmul.f32 1.0, %v4335
        %v4337 = vrcp.pop %v4263
        %v4338 = vmul.f32 1.0, %v4337
        %v4339 = vrcp.pop %v4264
        %v4340 = vmul.f32 1.0, %v4339
        %v4341 = vrcp.pop %v4265
        %v4342 = vmul.f32 1.0, %v4341
        %v4343 = vrcp.pop %v4266
        %v4344 = vmul.f32 1.0, %v4343
        %v4345 = vrcp.pop %v4267
        %v4346 = vmul.f32 1.0, %v4345
        %v4347 = vrcp.pop %v4268
        %v4348 = vmul.f32 1.0, %v4347
        %v4349 = vrcp.pop %v4269
        %v4350 = vmul.f32 1.0, %v4349
        %v4351 = vrcp.pop %v4270
        %v4352 = vmul.f32 1.0, %v4351
        %v4353 = vrcp.pop %v4271
        %v4354 = vmul.f32 1.0, %v4353
        %v4355 = vrcp.pop %v4272
        %v4356 = vmul.f32 1.0, %v4355
        %v4357 = vrcp.pop %v4273
        %v4358 = vmul.f32 1.0, %v4357
        %v4359 = vrcp.pop %v4274
        %v4360 = vmul.f32 1.0, %v4359
        %v4361 = vrcp.pop %v4275
        %v4362 = vmul.f32 1.0, %v4361
        %v4363 = vrcp.pop %v4276
        %v4364 = vmul.f32 1.0, %v4363
        %v4365 = vrcp.pop %v4277
        %v4366 = vmul.f32 1.0, %v4365
        %v4367 = vrcp.pop %v4278
        %v4368 = vmul.f32 1.0, %v4367
        %v4369 = vrcp.pop %v4279
        %v4370 = vmul.f32 1.0, %v4369
        %v4371 = vrcp.pop %v4280
        %v4372 = vmul.f32 1.0, %v4371
        %v4373 = vrcp.pop %v4281
        %v4374 = vmul.f32 1.0, %v4373
        %v4375 = vrcp.pop %v4282
        %v4376 = vmul.f32 1.0, %v4375
        %v4377 = vrcp.pop %v4283
        %v4378 = vmul.f32 1.0, %v4377
        %v4379 = vrcp.pop %v4284
        %v4380 = vmul.f32 1.0, %v4379
        %v4381 = vrcp.pop %v4285
        %v4382 = vmul.f32 1.0, %v4381
        %v4383 = vrcp.pop %v4286
        %v4384 = vmul.f32 1.0, %v4383
        %v4385 = vrcp.pop %v4287
        %v4386 = vmul.f32 1.0, %v4385
        %v4387 = vrcp.pop %v4288
        %v4388 = vmul.f32 1.0, %v4387
        %v4389 = vrcp.pop %v4289
        %v4390 = vmul.f32 1.0, %v4389
        %v4391 = vrcp.pop %v4290
        %v4392 = vmul.f32 1.0, %v4391
        %v4393 = vrcp.pop %v4291
        %v4394 = vmul.f32 1.0, %v4393
        %v4395 = vrcp.pop %v4292
        %v4396 = vmul.f32 1.0, %v4395
        %v4397 = vrcp.pop %v4293
        %v4398 = vmul.f32 1.0, %v4397
        %v4399 = vrcp.pop %v4294
        %v4400 = vmul.f32 1.0, %v4399
        %v4401 = vrcp.pop %v4295
        %v4402 = vmul.f32 1.0, %v4401
        %v4403 = vrcp.pop %v4296
        %v4404 = vmul.f32 1.0, %v4403
        %v4405 = vrcp.pop %v4297
        %v4406 = vmul.f32 1.0, %v4405
        %v4407 = vrcp.pop %v4298
        %v4408 = vmul.f32 1.0, %v4407
        %v4409 = vrcp.pop %v4299
        %v4410 = vmul.f32 1.0, %v4409
        %v4411 = vrcp.pop %v4300
        %v4412 = vmul.f32 1.0, %v4411
        %v4413 = vrcp.pop %v4301
        %v4414 = vmul.f32 1.0, %v4413
        %v4415 = vrcp.pop %v4302
        %v4416 = vmul.f32 1.0, %v4415
        %v4417 = vrcp.pop %v4303
        %v4418 = vmul.f32 1.0, %v4417
        %v4419 = vrcp.pop %v4304
        %v4420 = vmul.f32 1.0, %v4419
        %v4421 = vrcp.pop %v4305
        %v4422 = vmul.f32 1.0, %v4421
        %v4423 = vrcp.pop %v4306
        %v4424 = vmul.f32 1.0, %v4423
        %v4425 = vrcp.pop %v4307
        %v4426 = vmul.f32 1.0, %v4425
        %v4427 = vrcp.pop %v4308
        %v4428 = vmul.f32 1.0, %v4427
        %v4429 = vrcp.pop %v4309
        %v4430 = vmul.f32 1.0, %v4429
        %v4431 = vrcp.pop %v4310
        %v4432 = vmul.f32 1.0, %v4431
        %v4433 = vrcp.pop %v4311
        %v4434 = vmul.f32 1.0, %v4433
        %v4435 = vrcp.pop %v4312
        %v4436 = vmul.f32 1.0, %v4435
        %v4437 = vrcp.pop %v4313
        %v4438 = vmul.f32 1.0, %v4437
        %v4439 = vrcp.pop %v4314
        %v4440 = vmul.f32 1.0, %v4439
        %v4441 = vrcp.pop %v4315
        %v4442 = vmul.f32 1.0, %v4441
        %v4443 = vrcp.pop %v4316
        %v4444 = vmul.f32 1.0, %v4443
        %v4445 = vpack.c.bf16 %v4320, %v4318
        %v4446 = vpack.c.bf16 %v4324, %v4322
        %v4447 = vpack.c.bf16 %v4328, %v4326
        %v4448 = vpack.c.bf16 %v4332, %v4330
        %v4449 = vpack.c.bf16 %v4336, %v4334
        %v4450 = vpack.c.bf16 %v4340, %v4338
        %v4451 = vpack.c.bf16 %v4344, %v4342
        %v4452 = vpack.c.bf16 %v4348, %v4346
        %v4453 = vpack.c.bf16 %v4352, %v4350
        %v4454 = vpack.c.bf16 %v4356, %v4354
        %v4455 = vpack.c.bf16 %v4360, %v4358
        %v4456 = vpack.c.bf16 %v4364, %v4362
        %v4457 = vpack.c.bf16 %v4368, %v4366
        %v4458 = vpack.c.bf16 %v4372, %v4370
        %v4459 = vpack.c.bf16 %v4376, %v4374
        %v4460 = vpack.c.bf16 %v4380, %v4378
        %v4461 = vpack.c.bf16 %v4384, %v4382
        %v4462 = vpack.c.bf16 %v4388, %v4386
        %v4463 = vpack.c.bf16 %v4392, %v4390
        %v4464 = vpack.c.bf16 %v4396, %v4394
        %v4465 = vpack.c.bf16 %v4400, %v4398
        %v4466 = vpack.c.bf16 %v4404, %v4402
        %v4467 = vpack.c.bf16 %v4408, %v4406
        %v4468 = vpack.c.bf16 %v4412, %v4410
        %v4469 = vpack.c.bf16 %v4416, %v4414
        %v4470 = vpack.c.bf16 %v4420, %v4418
        %v4471 = vpack.c.bf16 %v4424, %v4422
        %v4472 = vpack.c.bf16 %v4428, %v4426
        %v4473 = vpack.c.bf16 %v4432, %v4430
        %v4474 = vpack.c.bf16 %v4436, %v4434
        %v4475 = vpack.c.bf16 %v4440, %v4438
        %v4476 = vpack.c.bf16 %v4444, %v4442
        %v4509 = vunpack.c.l.b16 %v4445
        %v4510 = vunpack.c.h.b16 %v4445
        %v4511 = vunpack.c.l.b16 %v4446
        %v4512 = vunpack.c.h.b16 %v4446
        %v4513 = vunpack.c.l.b16 %v4447
        %v4514 = vunpack.c.h.b16 %v4447
        %v4515 = vunpack.c.l.b16 %v4448
        %v4516 = vunpack.c.h.b16 %v4448
        %v4517 = vunpack.c.l.b16 %v4449
        %v4518 = vunpack.c.h.b16 %v4449
        %v4519 = vunpack.c.l.b16 %v4450
        %v4520 = vunpack.c.h.b16 %v4450
        %v4521 = vunpack.c.l.b16 %v4451
        %v4522 = vunpack.c.h.b16 %v4451
        %v4523 = vunpack.c.l.b16 %v4452
        %v4524 = vunpack.c.h.b16 %v4452
        %v4525 = vunpack.c.l.b16 %v4453
        %v4526 = vunpack.c.h.b16 %v4453
        %v4527 = vunpack.c.l.b16 %v4454
        %v4528 = vunpack.c.h.b16 %v4454
        %v4529 = vunpack.c.l.b16 %v4455
        %v4530 = vunpack.c.h.b16 %v4455
        %v4531 = vunpack.c.l.b16 %v4456
        %v4532 = vunpack.c.h.b16 %v4456
        %v4533 = vunpack.c.l.b16 %v4457
        %v4534 = vunpack.c.h.b16 %v4457
        %v4535 = vunpack.c.l.b16 %v4458
        %v4536 = vunpack.c.h.b16 %v4458
        %v4537 = vunpack.c.l.b16 %v4459
        %v4538 = vunpack.c.h.b16 %v4459
        %v4539 = vunpack.c.l.b16 %v4460
        %v4540 = vunpack.c.h.b16 %v4460
        %v4541 = vunpack.c.l.b16 %v4461
        %v4542 = vunpack.c.h.b16 %v4461
        %v4543 = vunpack.c.l.b16 %v4462
        %v4544 = vunpack.c.h.b16 %v4462
        %v4545 = vunpack.c.l.b16 %v4463
        %v4546 = vunpack.c.h.b16 %v4463
        %v4547 = vunpack.c.l.b16 %v4464
        %v4548 = vunpack.c.h.b16 %v4464
        %v4549 = vunpack.c.l.b16 %v4465
        %v4550 = vunpack.c.h.b16 %v4465
        %v4551 = vunpack.c.l.b16 %v4466
        %v4552 = vunpack.c.h.b16 %v4466
        %v4553 = vunpack.c.l.b16 %v4467
        %v4554 = vunpack.c.h.b16 %v4467
        %v4555 = vunpack.c.l.b16 %v4468
        %v4556 = vunpack.c.h.b16 %v4468
        %v4557 = vunpack.c.l.b16 %v4469
        %v4558 = vunpack.c.h.b16 %v4469
        %v4559 = vunpack.c.l.b16 %v4470
        %v4560 = vunpack.c.h.b16 %v4470
        %v4561 = vunpack.c.l.b16 %v4471
        %v4562 = vunpack.c.h.b16 %v4471
        %v4563 = vunpack.c.l.b16 %v4472
        %v4564 = vunpack.c.h.b16 %v4472
        %v4565 = vunpack.c.l.b16 %v4473
        %v4566 = vunpack.c.h.b16 %v4473
        %v4567 = vunpack.c.l.b16 %v4474
        %v4568 = vunpack.c.h.b16 %v4474
        %v4569 = vunpack.c.l.b16 %v4475
        %v4570 = vunpack.c.h.b16 %v4475
        %v4571 = vunpack.c.l.b16 %v4476
        %v4572 = vunpack.c.h.b16 %v4476
        %v4573 = vpack.c.b16 %v4509, %v4509
        %v4574 = vpack.c.b16 %v4510, %v4510
        %v4575 = vpack.c.b16 %v4511, %v4511
        %v4576 = vpack.c.b16 %v4512, %v4512
        %v4577 = vpack.c.b16 %v4513, %v4513
        %v4578 = vpack.c.b16 %v4514, %v4514
        %v4579 = vpack.c.b16 %v4515, %v4515
        %v4580 = vpack.c.b16 %v4516, %v4516
        %v4581 = vpack.c.b16 %v4517, %v4517
        %v4582 = vpack.c.b16 %v4518, %v4518
        %v4583 = vpack.c.b16 %v4519, %v4519
        %v4584 = vpack.c.b16 %v4520, %v4520
        %v4585 = vpack.c.b16 %v4521, %v4521
        %v4586 = vpack.c.b16 %v4522, %v4522
        %v4587 = vpack.c.b16 %v4523, %v4523
        %v4588 = vpack.c.b16 %v4524, %v4524
        %v4589 = vpack.c.b16 %v4525, %v4525
        %v4590 = vpack.c.b16 %v4526, %v4526
        %v4591 = vpack.c.b16 %v4527, %v4527
        %v4592 = vpack.c.b16 %v4528, %v4528
        %v4593 = vpack.c.b16 %v4529, %v4529
        %v4594 = vpack.c.b16 %v4530, %v4530
        %v4595 = vpack.c.b16 %v4531, %v4531
        %v4596 = vpack.c.b16 %v4532, %v4532
        %v4597 = vpack.c.b16 %v4533, %v4533
        %v4598 = vpack.c.b16 %v4534, %v4534
        %v4599 = vpack.c.b16 %v4535, %v4535
        %v4600 = vpack.c.b16 %v4536, %v4536
        %v4601 = vpack.c.b16 %v4537, %v4537
        %v4602 = vpack.c.b16 %v4538, %v4538
        %v4603 = vpack.c.b16 %v4539, %v4539
        %v4604 = vpack.c.b16 %v4540, %v4540
        %v4605 = vpack.c.b16 %v4541, %v4541
        %v4606 = vpack.c.b16 %v4542, %v4542
        %v4607 = vpack.c.b16 %v4543, %v4543
        %v4608 = vpack.c.b16 %v4544, %v4544
        %v4609 = vpack.c.b16 %v4545, %v4545
        %v4610 = vpack.c.b16 %v4546, %v4546
        %v4611 = vpack.c.b16 %v4547, %v4547
        %v4612 = vpack.c.b16 %v4548, %v4548
        %v4613 = vpack.c.b16 %v4549, %v4549
        %v4614 = vpack.c.b16 %v4550, %v4550
        %v4615 = vpack.c.b16 %v4551, %v4551
        %v4616 = vpack.c.b16 %v4552, %v4552
        %v4617 = vpack.c.b16 %v4553, %v4553
        %v4618 = vpack.c.b16 %v4554, %v4554
        %v4619 = vpack.c.b16 %v4555, %v4555
        %v4620 = vpack.c.b16 %v4556, %v4556
        %v4621 = vpack.c.b16 %v4557, %v4557
        %v4622 = vpack.c.b16 %v4558, %v4558
        %v4623 = vpack.c.b16 %v4559, %v4559
        %v4624 = vpack.c.b16 %v4560, %v4560
        %v4625 = vpack.c.b16 %v4561, %v4561
        %v4626 = vpack.c.b16 %v4562, %v4562
        %v4627 = vpack.c.b16 %v4563, %v4563
        %v4628 = vpack.c.b16 %v4564, %v4564
        %v4629 = vpack.c.b16 %v4565, %v4565
        %v4630 = vpack.c.b16 %v4566, %v4566
        %v4631 = vpack.c.b16 %v4567, %v4567
        %v4632 = vpack.c.b16 %v4568, %v4568
        %v4633 = vpack.c.b16 %v4569, %v4569
        %v4634 = vpack.c.b16 %v4570, %v4570
        %v4635 = vpack.c.b16 %v4571, %v4571
        %v4636 = vpack.c.b16 %v4572, %v4572
        %4701 = vst [vmem:[%s477] sm:$0xf] %v4573
        %4702 = vst [vmem:[%s477 + $0x4] sm:$0xf] %v4574
        %4703 = vst [vmem:[%s477 + $0x8] sm:$0xf] %v4575
        %4704 = vst [vmem:[%s477 + $0xc] sm:$0xf] %v4576
        %4705 = vst [vmem:[%s477 + $0x10] sm:$0xf] %v4577
        %4706 = vst [vmem:[%s477 + $0x14] sm:$0xf] %v4578
        %4707 = vst [vmem:[%s477 + $0x18] sm:$0xf] %v4579
        %4708 = vst [vmem:[%s477 + $0x1c] sm:$0xf] %v4580
        %4709 = vst [vmem:[%s477 + $0x20] sm:$0xf] %v4581
        %4710 = vst [vmem:[%s477 + $0x24] sm:$0xf] %v4582
        %4711 = vst [vmem:[%s477 + $0x28] sm:$0xf] %v4583
        %4712 = vst [vmem:[%s477 + $0x2c] sm:$0xf] %v4584
        %4713 = vst [vmem:[%s477 + $0x30] sm:$0xf] %v4585
        %4714 = vst [vmem:[%s477 + $0x34] sm:$0xf] %v4586
        %4715 = vst [vmem:[%s477 + $0x38] sm:$0xf] %v4587
        %4716 = vst [vmem:[%s477 + $0x3c] sm:$0xf] %v4588
        %4717 = vst [vmem:[%s477 + $0x40] sm:$0xf] %v4589
        %4718 = vst [vmem:[%s477 + $0x44] sm:$0xf] %v4590
        %4719 = vst [vmem:[%s477 + $0x48] sm:$0xf] %v4591
        %4720 = vst [vmem:[%s477 + $0x4c] sm:$0xf] %v4592
        %4721 = vst [vmem:[%s477 + $0x50] sm:$0xf] %v4593
        %4722 = vst [vmem:[%s477 + $0x54] sm:$0xf] %v4594
        %4723 = vst [vmem:[%s477 + $0x58] sm:$0xf] %v4595
        %4724 = vst [vmem:[%s477 + $0x5c] sm:$0xf] %v4596
        %4725 = vst [vmem:[%s477 + $0x60] sm:$0xf] %v4597
        %4726 = vst [vmem:[%s477 + $0x64] sm:$0xf] %v4598
        %4727 = vst [vmem:[%s477 + $0x68] sm:$0xf] %v4599
        %4728 = vst [vmem:[%s477 + $0x6c] sm:$0xf] %v4600
        %4729 = vst [vmem:[%s477 + $0x70] sm:$0xf] %v4601
        %4730 = vst [vmem:[%s477 + $0x74] sm:$0xf] %v4602
        %4731 = vst [vmem:[%s477 + $0x78] sm:$0xf] %v4603
        %4732 = vst [vmem:[%s477 + $0x7c] sm:$0xf] %v4604
        %4733 = vst [vmem:[%s477 + $0x80] sm:$0xf] %v4605
        %4734 = vst [vmem:[%s477 + $0x84] sm:$0xf] %v4606
        %4735 = vst [vmem:[%s477 + $0x88] sm:$0xf] %v4607
        %4736 = vst [vmem:[%s477 + $0x8c] sm:$0xf] %v4608
        %4737 = vst [vmem:[%s477 + $0x90] sm:$0xf] %v4609
        %4738 = vst [vmem:[%s477 + $0x94] sm:$0xf] %v4610
        %4739 = vst [vmem:[%s477 + $0x98] sm:$0xf] %v4611
        %4740 = vst [vmem:[%s477 + $0x9c] sm:$0xf] %v4612
        %4741 = vst [vmem:[%s477 + $0xa0] sm:$0xf] %v4613
        %4742 = vst [vmem:[%s477 + $0xa4] sm:$0xf] %v4614
        %4743 = vst [vmem:[%s477 + $0xa8] sm:$0xf] %v4615
        %4744 = vst [vmem:[%s477 + $0xac] sm:$0xf] %v4616
        %4745 = vst [vmem:[%s477 + $0xb0] sm:$0xf] %v4617
        %4746 = vst [vmem:[%s477 + $0xb4] sm:$0xf] %v4618
        %4747 = vst [vmem:[%s477 + $0xb8] sm:$0xf] %v4619
        %4748 = vst [vmem:[%s477 + $0xbc] sm:$0xf] %v4620
        %4749 = vst [vmem:[%s477 + $0xc0] sm:$0xf] %v4621
        %4750 = vst [vmem:[%s477 + $0xc4] sm:$0xf] %v4622
        %4751 = vst [vmem:[%s477 + $0xc8] sm:$0xf] %v4623
        %4752 = vst [vmem:[%s477 + $0xcc] sm:$0xf] %v4624
        %4753 = vst [vmem:[%s477 + $0xd0] sm:$0xf] %v4625
        %4754 = vst [vmem:[%s477 + $0xd4] sm:$0xf] %v4626
        %4755 = vst [vmem:[%s477 + $0xd8] sm:$0xf] %v4627
        %4756 = vst [vmem:[%s477 + $0xdc] sm:$0xf] %v4628
        %4757 = vst [vmem:[%s477 + $0xe0] sm:$0xf] %v4629
        %4758 = vst [vmem:[%s477 + $0xe4] sm:$0xf] %v4630
        %4759 = vst [vmem:[%s477 + $0xe8] sm:$0xf] %v4631
        %4760 = vst [vmem:[%s477 + $0xec] sm:$0xf] %v4632
        %4761 = vst [vmem:[%s477 + $0xf0] sm:$0xf] %v4633
        %4762 = vst [vmem:[%s477 + $0xf4] sm:$0xf] %v4634
        %4763 = vst [vmem:[%s477 + $0xf8] sm:$0xf] %v4635
        %4764 = vst [vmem:[%s477 + $0xfc] sm:$0xf] %v4636
        %s4765 = sand.u32 %s275, 1
        %s4766 = scalar_lea.sflag [#allocation4], %s4765
        %s4767 = sand.u32 %s275, 1
        %s4768 = smul.addr %s4767, 256
        %s4769 = scalar_lea.vmem [#allocation13], %s4768
        // Predicated region
        $region89: #{tpu_custom_call.1} parent=63 // pred_check
          %p4770 = pneg %p285
        $region90: #{tpu_custom_call.1} parent=63 // pred_check_branch
          %4772 = sbr.rel (%p4770) target = $region92
        $region91: #{tpu_custom_call.1} parent=63 // pred_region
          %s4773 = smul.u32 64, %s31
          %s4775 = ssub.s32 4096, 4096
          %4776 = vsyncadd %s4766, %s4775
          %s4777 = smul.addr %s4773, 64
          %s4778 = scalar_lea.hbm %s11, %s4777
          %s4779 = sshll.u32 %s4769, 4
          %s4780 = int_to_ptr.vmem [resolvable:$true] %s4779
          %4785 = dma.vmem_to_hbm [thread:$0]  %s4780, 4096, %s4778, %s4766, 64, 64, 4
        $region92: #{tpu_custom_call.1} parent=63 // pred_fallthru
          _
      $region64: #{tpu_custom_call.1} parent=5 // pred_fallthru
        _
      %p4786 = scmp.le.s32.totalorder 2, %s26
      // Predicated region
      $region93: #{tpu_custom_call.1} parent=5 // pred_check
        %p4787 = pneg %p4786
      $region94: #{tpu_custom_call.1} parent=5 // pred_check_branch
        %4789 = sbr.rel (%p4787) target = $region96
      $region95: #{tpu_custom_call.1} parent=5 // pred_region
        %s4790 = ssub.s32 %s26, 2
        // Predicated region
        $region97: #{tpu_custom_call.1} parent=95 // pred_check
          %p4791 = pneg %p291
        $region98: #{tpu_custom_call.1} parent=95 // pred_check_branch
          %4793 = sbr.rel (%p4791) target = $region100
        $region99: #{tpu_custom_call.1} parent=95 // pred_region
          %s4794 = sand.u32 %s276, 1
          %s4795 = scalar_lea.sflag [#allocation4], %s4794
          %s4796 = sand.u32 %s276, 1
          %s4797 = smul.addr %s4796, 256
          %s4798 = scalar_lea.vmem [#allocation13], %s4797
          %4799 = dma.done %s4795, 4096
        $region100: #{tpu_custom_call.1} parent=95 // pred_fallthru
          _
      $region96: #{tpu_custom_call.1} parent=5 // pred_fallthru
        _
    $region6: #{tpu_custom_call.1} parent=1 // loop_footer
      %s30 = sadd.s32 1, %s26
    $region7: #{tpu_custom_call.1} parent=1 // loop_footer_branch
      %25 = sbr.rel target = $region3
    $region8: #{tpu_custom_call.1} parent=1 // loop_exit
      _
    %4800 = vsyncpa [#allocation3], 1
    %s4801 = scalar_lea.sflag [#allocation3], 1
    %4802 = vsyncpa %s4801, 1
    %4803 = vsyncpa [#allocation6], 1
    %4804 = vsyncpa [#allocation9], 1
    %4805 = vsyncpa [#allocation12], 1
    %4806 = vsyncpa [#allocation4], 1
    %s4807 = scalar_lea.sflag [#allocation4], 1
    %4808 = vsyncpa %s4807, 1

</llo_original>
